<compile_context>
chip_gen: v7x
topology: tpu7x:2x2x1
jax: 0.10.0
libtpu: 0.0.40
codegen_flags: <defaults>
</compile_context>

<pallas_src>
import jax
import jax.numpy as jnp
from jax.experimental import pallas as pl
from jax.experimental.pallas import tpu as pltpu


def _round_up(n, m):
    return ((n + m - 1) // m) * m


def _mha_kernel(x_ref, q_ref, k_ref, v_ref, m_ref, o_ref):
    # x_ref: (S, TB, D) bf16   -- seq-major so every matmul is lane-dense
    # q/k/v_ref: (S, D, E) bf16, E = nheads*out_dim (heads packed along lanes)
    # m_ref: (E, E) f32 block-diagonal head mask
    # o_ref: (TB, E) f32
    x = x_ref[...]
    q = jnp.einsum("sbd,sde->sbe", x, q_ref[...],
                   preferred_element_type=jnp.float32)
    k = jnp.einsum("sbd,sde->sbe", x, k_ref[...],
                   preferred_element_type=jnp.float32)
    v = jnp.einsum("sbd,sde->sbe", x, v_ref[...],
                   preferred_element_type=jnp.float32)

    # Per-head score: sum q*k over each head's O lanes and broadcast it back
    # to all lanes of that head, in one (S*TB, E) @ (E, E) MXU matmul.
    qk = q * k
    scores = jnp.einsum("sbe,ef->sbf", qk, m_ref[...],
                        preferred_element_type=jnp.float32)      # (S, TB, E)

    # weights = scores / ||scores||_2 over the seq axis (per row & head).
    # No epsilon, matching the reference module.
    nsq = jnp.sum(scores * scores, axis=0)                       # (TB, E)
    sv = jnp.sum(scores * v, axis=0)                             # (TB, E)
    o_ref[...] = (sv * jax.lax.rsqrt(nsq)).astype(o_ref.dtype)


def multihead_attention(x, Q, K, V, *, batch_tile=256):
    """x: (B, S*D); Q/K/V: (H, S, D, O) -> (B, H*O), matching the torch module."""
    B, F = x.shape
    H, S, D, O = Q.shape
    E = H * O
    assert F == S * D, (F, S, D)

    # Pack heads along the last (lane) dim: (H, S, D, O) -> (S, D, H*O).
    def pack(w):
        return jnp.transpose(w, (1, 2, 0, 3)).reshape(S, D, E).astype(jnp.bfloat16)

    qp, kp, vp = pack(Q), pack(K), pack(V)

    # Block-diagonal ones mask: mask[e, f] = 1 iff lanes e and f are in the
    # same head.  Drives the in-kernel per-head reduce+broadcast matmul.
    head = jnp.arange(E, dtype=jnp.int32) // O
    mask = (head[:, None] == head[None, :]).astype(jnp.float32)

    # Seq-major activations: (B, S*D) -> (S, B, D); pad batch to the tile.
    tb = min(_round_up(batch_tile, 8), _round_up(B, 8))
    b_pad = _round_up(B, tb)
    xs = jnp.transpose(x.reshape(B, S, D), (1, 0, 2)).astype(jnp.bfloat16)
    if b_pad != B:
        xs = jnp.pad(xs, ((0, 0), (0, b_pad - B), (0, 0)))

    out = pl.pallas_call(
        _mha_kernel,
        out_shape=jax.ShapeDtypeStruct((b_pad, E), jnp.float32),
        grid=(b_pad // tb,),
        in_specs=[
            pl.BlockSpec((S, tb, D), lambda i: (0, i, 0)),
            pl.BlockSpec((S, D, E), lambda i: (0, 0, 0)),
            pl.BlockSpec((S, D, E), lambda i: (0, 0, 0)),
            pl.BlockSpec((S, D, E), lambda i: (0, 0, 0)),
            pl.BlockSpec((E, E), lambda i: (0, 0)),
        ],
        out_specs=pl.BlockSpec((tb, E), lambda i: (i, 0)),
        compiler_params=pltpu.CompilerParams(
            dimension_semantics=("parallel",)),
    )(xs, qp, kp, vp, mask)
    return out[:B]


def mha_reference(x, Q, K, V):
    """Pure-JAX (f32) mirror of the PyTorch MultiHeadAttentionBlock forward."""
    B = x.shape[0]
    H, S, D, O = Q.shape
    xs = x.reshape(B, S, D)
    outs = []
    for h in range(H):
        q = jnp.einsum("bsd,sdo->bso", xs, Q[h])
        k = jnp.einsum("bsd,sdo->bso", xs, K[h])
        v = jnp.einsum("bsd,sdo->bso", xs, V[h])
        scores = jnp.sum(q * k, axis=-1)                          # (B, S)
        w = scores / jnp.linalg.norm(scores, axis=1, keepdims=True)
        outs.append(jnp.einsum("bs,bso->bo", w, v))
    return jnp.concatenate(outs, axis=1)


if __name__ == "__main__":
    NHEADS, NUM_SEQ, IN_DIM, OUT_DIM = 3, 16, 64, 32
    B = 16

    key = jax.random.PRNGKey(0)
    kq, kk, kv, kx = jax.random.split(key, 4)
    # torch.randn parameters (no fan-in scaling), as in the reference module.
    Q = jax.random.normal(kq, (NHEADS, NUM_SEQ, IN_DIM, OUT_DIM), jnp.float32)
    K = jax.random.normal(kk, (NHEADS, NUM_SEQ, IN_DIM, OUT_DIM), jnp.float32)
    V = jax.random.normal(kv, (NHEADS, NUM_SEQ, IN_DIM, OUT_DIM), jnp.float32)
    x = jax.random.normal(kx, (B, NUM_SEQ * IN_DIM), jnp.float32)

    # batch_tile=8 -> grid=(2,), exercising the parallel batch-tile axis.
    out = multihead_attention(x, Q, K, V, batch_tile=8)
    out = jax.block_until_ready(out)

    assert out.shape == (B, NHEADS * OUT_DIM), out.shape
    assert bool(jnp.all(jnp.isfinite(out)))

    # Loose numeric check vs. the f32 reference (kernel matmuls run in bf16).
    ref = mha_reference(x, Q, K, V)
    rel_err = float(jnp.max(jnp.abs(out - ref)) /
                    (jnp.max(jnp.abs(ref)) + 1e-6))
    assert rel_err < 0.1, rel_err
    print("KERNEL_OK")
</pallas_src>

<mosaic_0001>
module attributes {stable_mosaic.version = 11 : i64} {
  func.func @_mha_kernel(%arg0: i32, %arg1: memref<16x8x64xbf16, #tpu.memory_space<vmem>>, %arg2: memref<16x64x96xbf16, #tpu.memory_space<vmem>>, %arg3: memref<16x64x96xbf16, #tpu.memory_space<vmem>>, %arg4: memref<16x64x96xbf16, #tpu.memory_space<vmem>>, %arg5: memref<96x96xf32, #tpu.memory_space<vmem>>, %arg6: memref<8x96xf32, #tpu.memory_space<vmem>>) attributes {dimension_semantics = [#tpu.dimension_semantics<parallel>], iteration_bounds = array<i64: 2>, scalar_prefetch = 0 : i64, scratch_operands = 0 : i64, tpu.core_type = #tpu.core_type<tc>, window_params = [{transform_indices = @transform_0, window_bounds = array<i64: 16, 8, 64>}, {pipeline_mode = #tpu.pipeline_mode<synchronous>, transform_indices = @transform_1, window_bounds = array<i64: 16, 64, 96>}, {pipeline_mode = #tpu.pipeline_mode<synchronous>, transform_indices = @transform_2, window_bounds = array<i64: 16, 64, 96>}, {pipeline_mode = #tpu.pipeline_mode<synchronous>, transform_indices = @transform_3, window_bounds = array<i64: 16, 64, 96>}, {pipeline_mode = #tpu.pipeline_mode<synchronous>, transform_indices = @transform_4, window_bounds = array<i64: 96, 96>}, {transform_indices = @transform_5, window_bounds = array<i64: 8, 96>}]} {
    %c0 = arith.constant 0 : index
    %c0_0 = arith.constant 0 : index
    %c0_1 = arith.constant 0 : index
    %0 = vector.load %arg1[%c0, %c0_0, %c0_1] : memref<16x8x64xbf16, #tpu.memory_space<vmem>>, vector<16x8x64xbf16>
    %c0_2 = arith.constant 0 : index
    %c0_3 = arith.constant 0 : index
    %c0_4 = arith.constant 0 : index
    %1 = vector.load %arg2[%c0_2, %c0_3, %c0_4] : memref<16x64x96xbf16, #tpu.memory_space<vmem>>, vector<16x64x96xbf16>
    "tpu.trace_start"() <{level = 10 : i32, message = "sbd,sde->sbe"}> : () -> ()
    %cst = arith.constant dense<0.000000e+00> : vector<16x8x96xf32>
    %2 = tpu.matmul %0, %1, %cst {dimension_numbers = #tpu.dot_dimension_numbers<[2], [1], [1], [2], [0, 0, 0, 1, 1, 2], [0], [0]>} : vector<16x8x64xbf16>, vector<16x64x96xbf16>, vector<16x8x96xf32> -> vector<16x8x96xf32>
    "tpu.trace_stop"() : () -> ()
    %c0_5 = arith.constant 0 : index
    %c0_6 = arith.constant 0 : index
    %c0_7 = arith.constant 0 : index
    %3 = vector.load %arg3[%c0_5, %c0_6, %c0_7] : memref<16x64x96xbf16, #tpu.memory_space<vmem>>, vector<16x64x96xbf16>
    "tpu.trace_start"() <{level = 10 : i32, message = "sbd,sde->sbe"}> : () -> ()
    %cst_8 = arith.constant dense<0.000000e+00> : vector<16x8x96xf32>
    %4 = tpu.matmul %0, %3, %cst_8 {dimension_numbers = #tpu.dot_dimension_numbers<[2], [1], [1], [2], [0, 0, 0, 1, 1, 2], [0], [0]>} : vector<16x8x64xbf16>, vector<16x64x96xbf16>, vector<16x8x96xf32> -> vector<16x8x96xf32>
    "tpu.trace_stop"() : () -> ()
    %c0_9 = arith.constant 0 : index
    %c0_10 = arith.constant 0 : index
    %c0_11 = arith.constant 0 : index
    %5 = vector.load %arg4[%c0_9, %c0_10, %c0_11] : memref<16x64x96xbf16, #tpu.memory_space<vmem>>, vector<16x64x96xbf16>
    "tpu.trace_start"() <{level = 10 : i32, message = "sbd,sde->sbe"}> : () -> ()
    %cst_12 = arith.constant dense<0.000000e+00> : vector<16x8x96xf32>
    %6 = tpu.matmul %0, %5, %cst_12 {dimension_numbers = #tpu.dot_dimension_numbers<[2], [1], [1], [2], [0, 0, 0, 1, 1, 2], [0], [0]>} : vector<16x8x64xbf16>, vector<16x64x96xbf16>, vector<16x8x96xf32> -> vector<16x8x96xf32>
    "tpu.trace_stop"() : () -> ()
    %7 = arith.mulf %2, %4 : vector<16x8x96xf32>
    %c0_13 = arith.constant 0 : index
    %c0_14 = arith.constant 0 : index
    %8 = vector.load %arg5[%c0_13, %c0_14] : memref<96x96xf32, #tpu.memory_space<vmem>>, vector<96x96xf32>
    "tpu.trace_start"() <{level = 10 : i32, message = "sbe,ef->sbf"}> : () -> ()
    %cst_15 = arith.constant dense<0.000000e+00> : vector<16x8x96xf32>
    %9 = tpu.matmul %7, %8, %cst_15 {dimension_numbers = #tpu.dot_dimension_numbers<[2], [0], [0, 1], [1], [0, 0, 0, 1, 1, 1], [], []>} : vector<16x8x96xf32>, vector<96x96xf32>, vector<16x8x96xf32> -> vector<16x8x96xf32>
    "tpu.trace_stop"() : () -> ()
    %10 = arith.mulf %9, %9 : vector<16x8x96xf32>
    %cst_16 = arith.constant dense<0.000000e+00> : vector<8x96xf32>
    %11 = vector.multi_reduction <add>, %10, %cst_16 [0] : vector<16x8x96xf32> to vector<8x96xf32>
    %12 = arith.mulf %9, %6 : vector<16x8x96xf32>
    %cst_17 = arith.constant dense<0.000000e+00> : vector<8x96xf32>
    %13 = vector.multi_reduction <add>, %12, %cst_17 [0] : vector<16x8x96xf32> to vector<8x96xf32>
    %14 = math.rsqrt %11 : vector<8x96xf32>
    %15 = arith.mulf %13, %14 : vector<8x96xf32>
    %c0_18 = arith.constant 0 : index
    %c0_19 = arith.constant 0 : index
    %16 = vector.load %arg6[%c0_18, %c0_19] : memref<8x96xf32, #tpu.memory_space<vmem>>, vector<8x96xf32>
    tpu.vector_store %arg6[%c0_18, %c0_19], %15 {strides = array<i32>} : memref<8x96xf32, #tpu.memory_space<vmem>>, vector<8x96xf32>,
    return
  }
  func.func @transform_0(%arg0: i32) -> (i32, i32, i32) {
    %c0_i32 = arith.constant 0 : i32
    %c0_i32_0 = arith.constant 0 : i32
    %c0_i32_1 = arith.constant 0 : i32
    return %c0_i32, %arg0, %c0_i32_0 : i32, i32, i32
  }
  func.func @transform_1(%arg0: i32) -> (i32, i32, i32) {
    %c0_i32 = arith.constant 0 : i32
    %c0_i32_0 = arith.constant 0 : i32
    %c0_i32_1 = arith.constant 0 : i32
    %c0_i32_2 = arith.constant 0 : i32
    return %c0_i32, %c0_i32_0, %c0_i32_1 : i32, i32, i32
  }
  func.func @transform_2(%arg0: i32) -> (i32, i32, i32) {
    %c0_i32 = arith.constant 0 : i32
    %c0_i32_0 = arith.constant 0 : i32
    %c0_i32_1 = arith.constant 0 : i32
    %c0_i32_2 = arith.constant 0 : i32
    return %c0_i32, %c0_i32_0, %c0_i32_1 : i32, i32, i32
  }
  func.func @transform_3(%arg0: i32) -> (i32, i32, i32) {
    %c0_i32 = arith.constant 0 : i32
    %c0_i32_0 = arith.constant 0 : i32
    %c0_i32_1 = arith.constant 0 : i32
    %c0_i32_2 = arith.constant 0 : i32
    return %c0_i32, %c0_i32_0, %c0_i32_1 : i32, i32, i32
  }
  func.func @transform_4(%arg0: i32) -> (i32, i32) {
    %c0_i32 = arith.constant 0 : i32
    %c0_i32_0 = arith.constant 0 : i32
    %c0_i32_1 = arith.constant 0 : i32
    return %c0_i32, %c0_i32_0 : i32, i32
  }
  func.func @transform_5(%arg0: i32) -> (i32, i32) {
    %c0_i32 = arith.constant 0 : i32
    %c0_i32_0 = arith.constant 0 : i32
    return %arg0, %c0_i32 : i32, i32
  }
}

</mosaic_0001>

<llo_original>
// kernel: tpu_custom_call.1
$region0: #{tpu_custom_call.1}
  #allocation0 [shape = 'u32[]', space=smem, size = 0x4, offset = 0x4, fixed_abs, tag = 'smem constant byte address 0x4 - core index']
  #allocation1 [shape = 'u32[144,128]{1,0:T(1,128)}', space=vmem, size = 0x12000, scoped, tag = 'internal scratch']
  %s0 = inlined_call_operand.hbm [shape: bf16[16,16,64], index: 0, kind: input, shape index: {}]
  %s1 = inlined_call_operand.hbm [shape: bf16[16,64,96], index: 1, kind: input, shape index: {}]
  %s2 = inlined_call_operand.hbm [shape: bf16[16,64,96], index: 2, kind: input, shape index: {}]
  %s3 = inlined_call_operand.hbm [shape: bf16[16,64,96], index: 3, kind: input, shape index: {}]
  %s4 = inlined_call_operand.hbm [shape: f32[96,96], index: 4, kind: input, shape index: {}]
  %s5 = inlined_call_operand.hbm [shape: f32[16,96], index: 5, kind: output, shape index: {}]
  %s6 = sld [smem:[#allocation0]]
  $region73: #{tpu_custom_call.1} parent=0
    _
  %s8 = ssub.s32 1, %s6
  %s9 = scalar_select 0, %s8, %s6
  $region1: #{tpu_custom_call.1} parent=0
    #allocation2 [shape = 'u8[65536]{0}', space=vmem, size = 0x10000, scoped, tag = 'input window, operand 0']
    #allocation3 [shape = 's32[2]{0}', space=sflag, size = 0x8, scoped, tag = 'scoped memory for tpu_custom_call.1']
    #allocation4 [shape = 's32[2]{0}', space=sflag, size = 0x8, scoped, tag = 'scoped memory for tpu_custom_call.1']
    #allocation5 [shape = 'u8[262144]{0}', space=vmem, size = 0x40000, scoped, tag = 'input window, operand 1, single buffered']
    #allocation6 [shape = 's32[1]{0}', space=sflag, size = 0x4, scoped, tag = 'scoped memory for tpu_custom_call.1']
    #allocation7 [shape = 'u8[262144]{0}', space=vmem, size = 0x40000, scoped, tag = 'input window, operand 2, single buffered']
    #allocation8 [shape = 'u8[262144]{0}', space=vmem, size = 0x40000, scoped, tag = 'input window, operand 3, single buffered']
    #allocation9 [shape = 's32[1]{0}', space=sflag, size = 0x4, scoped, tag = 'scoped memory for tpu_custom_call.1']
    #allocation10 [shape = 'u8[49152]{0}', space=vmem, size = 0xc000, scoped, tag = 'input window, operand 4, single buffered']
    #allocation11 [shape = 'u8[8192]{0}', space=vmem, size = 0x2000, scoped, tag = 'output window, operand 0']
    %10 = vsyncpa [#allocation3], 0
    %s11 = scalar_lea.sflag [#allocation3], 1
    %12 = vsyncpa %s11, 0
    %13 = vsyncpa [#allocation6], 0
    %14 = vsyncpa [#allocation9], 0
    %15 = vsyncpa [#allocation4], 0
    %s16 = scalar_lea.sflag [#allocation4], 1
    %17 = vsyncpa %s16, 0
    loop: start=0, step=1, limit=4
    $region2: #{tpu_custom_call.1} parent=1 // loop_pre_header
      _
    $region3: #{tpu_custom_call.1} parent=1 // loop_header
      %s19 = sphi 0, %s23
      %p20 = scmp.ge.s32.totalorder %s19, 4
      %s29 = sphi 0, %s31
      %s32 = sphi 0, %s29
      %s33 = sphi 0, %s32
      %s49 = sphi 0, %s33
      %s53 = sphi 0, %s53
      %s55 = sphi 0, %s53
      %s56 = sphi 0, %s55
      %s70 = sphi 0, %s56
      %s74 = sphi 0, %s74
      %s76 = sphi 0, %s74
      %s77 = sphi 0, %s76
      %s91 = sphi 0, %s77
      %s95 = sphi 0, %s95
      %s97 = sphi 0, %s95
      %s98 = sphi 0, %s97
      %s112 = sphi 0, %s98
      %s116 = sphi 0, %s116
      %s118 = sphi 0, %s116
      %s119 = sphi 0, %s118
      %s133 = sphi 0, %s119
      %s139 = sphi 0, %s141
      %s142 = sphi 0, %s139
      %s143 = sphi 0, %s142
      %s159 = sphi 0, %s143
    $region4: #{tpu_custom_call.1} parent=1 // loop_header_branch
      %22 = sbr.rel (%p20) target = $region8
    $region5: #{tpu_custom_call.1} parent=1 // loop_body
      %s24 = ssub.s32 %s19, 1
      %s25 = ssub.s32 %s19, 2
      %s26 = sadd.s32 %s19, 1
      %s27 = ssub.s32 %s19, %s26
      %p28 = scmp.eq.s32.totalorder %s27, 0
      %s30 = sadd.s32 %s29, 1
      %s31 = scalar_select %p28, %s29, %s30
      %p34 = pneg %p28
      %p35 = scmp.eq.s32.totalorder %s19, 1
      %p36 = por %p34, %p35
      %p37 = scmp.ne.s32.totalorder %s29, %s32
      %p38 = scmp.eq.s32.totalorder %s19, 0
      %p39 = por %p37, %p38
      %p40 = scmp.ne.s32.totalorder %s29, %s32
      %p41 = scmp.eq.s32.totalorder %s24, 1
      %p42 = por %p40, %p41
      %p43 = scmp.ne.s32.totalorder %s32, %s33
      %p44 = scmp.eq.s32.totalorder %s24, 0
      %p45 = por %p43, %p44
      %p46 = scmp.ne.s32.totalorder %s32, %s33
      %p47 = scmp.eq.s32.totalorder %s25, 1
      %p48 = por %p46, %p47
      %p50 = scmp.ne.s32.totalorder %s33, %s49
      %p51 = scmp.eq.s32.totalorder %s25, 0
      %p52 = por %p50, %p51
      %s54 = sadd.s32 %s53, 1
      %p57 = scmp.eq.s32.totalorder %s19, 1
      %p58 = scmp.ne.s32.totalorder %s53, %s55
      %p59 = scmp.eq.s32.totalorder %s19, 0
      %p60 = por %p58, %p59
      %p61 = scmp.ne.s32.totalorder %s53, %s55
      %p62 = scmp.eq.s32.totalorder %s24, 1
      %p63 = por %p61, %p62
      %p64 = scmp.ne.s32.totalorder %s55, %s56
      %p65 = scmp.eq.s32.totalorder %s24, 0
      %p66 = por %p64, %p65
      %p67 = scmp.ne.s32.totalorder %s55, %s56
      %p68 = scmp.eq.s32.totalorder %s25, 1
      %p69 = por %p67, %p68
      %p71 = scmp.ne.s32.totalorder %s56, %s70
      %p72 = scmp.eq.s32.totalorder %s25, 0
      %p73 = por %p71, %p72
      %s75 = sadd.s32 %s74, 1
      %p78 = scmp.eq.s32.totalorder %s19, 1
      %p79 = scmp.ne.s32.totalorder %s74, %s76
      %p80 = scmp.eq.s32.totalorder %s19, 0
      %p81 = por %p79, %p80
      %p82 = scmp.ne.s32.totalorder %s74, %s76
      %p83 = scmp.eq.s32.totalorder %s24, 1
      %p84 = por %p82, %p83
      %p85 = scmp.ne.s32.totalorder %s76, %s77
      %p86 = scmp.eq.s32.totalorder %s24, 0
      %p87 = por %p85, %p86
      %p88 = scmp.ne.s32.totalorder %s76, %s77
      %p89 = scmp.eq.s32.totalorder %s25, 1
      %p90 = por %p88, %p89
      %p92 = scmp.ne.s32.totalorder %s77, %s91
      %p93 = scmp.eq.s32.totalorder %s25, 0
      %p94 = por %p92, %p93
      %s96 = sadd.s32 %s95, 1
      %p99 = scmp.eq.s32.totalorder %s19, 1
      %p100 = scmp.ne.s32.totalorder %s95, %s97
      %p101 = scmp.eq.s32.totalorder %s19, 0
      %p102 = por %p100, %p101
      %p103 = scmp.ne.s32.totalorder %s95, %s97
      %p104 = scmp.eq.s32.totalorder %s24, 1
      %p105 = por %p103, %p104
      %p106 = scmp.ne.s32.totalorder %s97, %s98
      %p107 = scmp.eq.s32.totalorder %s24, 0
      %p108 = por %p106, %p107
      %p109 = scmp.ne.s32.totalorder %s97, %s98
      %p110 = scmp.eq.s32.totalorder %s25, 1
      %p111 = por %p109, %p110
      %p113 = scmp.ne.s32.totalorder %s98, %s112
      %p114 = scmp.eq.s32.totalorder %s25, 0
      %p115 = por %p113, %p114
      %s117 = sadd.s32 %s116, 1
      %p120 = scmp.eq.s32.totalorder %s19, 1
      %p121 = scmp.ne.s32.totalorder %s116, %s118
      %p122 = scmp.eq.s32.totalorder %s19, 0
      %p123 = por %p121, %p122
      %p124 = scmp.ne.s32.totalorder %s116, %s118
      %p125 = scmp.eq.s32.totalorder %s24, 1
      %p126 = por %p124, %p125
      %p127 = scmp.ne.s32.totalorder %s118, %s119
      %p128 = scmp.eq.s32.totalorder %s24, 0
      %p129 = por %p127, %p128
      %p130 = scmp.ne.s32.totalorder %s118, %s119
      %p131 = scmp.eq.s32.totalorder %s25, 1
      %p132 = por %p130, %p131
      %p134 = scmp.ne.s32.totalorder %s119, %s133
      %p135 = scmp.eq.s32.totalorder %s25, 0
      %p136 = por %p134, %p135
      %s137 = ssub.s32 %s19, %s26
      %p138 = scmp.eq.s32.totalorder %s137, 0
      %s140 = sadd.s32 %s139, 1
      %s141 = scalar_select %p138, %s139, %s140
      %p144 = pneg %p138
      %p145 = scmp.eq.s32.totalorder %s19, 1
      %p146 = por %p144, %p145
      %p147 = scmp.ne.s32.totalorder %s139, %s142
      %p148 = scmp.eq.s32.totalorder %s19, 0
      %p149 = por %p147, %p148
      %p150 = scmp.ne.s32.totalorder %s139, %s142
      %p151 = scmp.eq.s32.totalorder %s24, 1
      %p152 = por %p150, %p151
      %p153 = scmp.ne.s32.totalorder %s142, %s143
      %p154 = scmp.eq.s32.totalorder %s24, 0
      %p155 = por %p153, %p154
      %p156 = scmp.ne.s32.totalorder %s142, %s143
      %p157 = scmp.eq.s32.totalorder %s25, 1
      %p158 = por %p156, %p157
      %p160 = scmp.ne.s32.totalorder %s143, %s159
      %p161 = scmp.eq.s32.totalorder %s25, 0
      %p162 = por %p160, %p161
      %p163 = scmp.le.s32.totalorder 1, %s19
      %p164 = scmp.lt.s32.totalorder %s19, 3
      %p165 = pnand %p163, %p164
      %p166 = pneg %p165
      // Predicated region
      $region9: #{tpu_custom_call.1} parent=5 // pred_check
        _
      $region10: #{tpu_custom_call.1} parent=5 // pred_check_branch
        %168 = sbr.rel (%p165) target = $region12
      $region11: #{tpu_custom_call.1} parent=5 // pred_region
        %s169 = ssub.s32 %s19, 1
        // Predicated region
        $region13: #{tpu_custom_call.1} parent=11 // pred_check
          %p170 = pneg %p66
        $region14: #{tpu_custom_call.1} parent=11 // pred_check_branch
          %172 = sbr.rel (%p170) target = $region16
        $region15: #{tpu_custom_call.1} parent=11 // pred_region
          %s174 = ssub.s32 8192, 8192
          %175 = vsyncadd [#allocation6], %s174
          %s176 = sshll.u32 [#allocation5], 4
          %s177 = int_to_ptr.vmem [resolvable:$true] %s176
          %182 = dma.hbm_to_vmem [thread:$0]  %s1, 8192, %s177, [#allocation6], 64, 64, 4
        $region16: #{tpu_custom_call.1} parent=11 // pred_fallthru
          _
        // Predicated region
        $region17: #{tpu_custom_call.1} parent=11 // pred_check
          %p183 = pneg %p87
        $region18: #{tpu_custom_call.1} parent=11 // pred_check_branch
          %185 = sbr.rel (%p183) target = $region20
        $region19: #{tpu_custom_call.1} parent=11 // pred_region
          %s187 = ssub.s32 8192, 8192
          %188 = vsyncadd [#allocation6], %s187
          %s189 = sshll.u32 [#allocation7], 4
          %s190 = int_to_ptr.vmem [resolvable:$true] %s189
          %195 = dma.hbm_to_vmem [thread:$0]  %s2, 8192, %s190, [#allocation6], 64, 64, 4
        $region20: #{tpu_custom_call.1} parent=11 // pred_fallthru
          _
        // Predicated region
        $region21: #{tpu_custom_call.1} parent=11 // pred_check
          %p196 = pneg %p108
        $region22: #{tpu_custom_call.1} parent=11 // pred_check_branch
          %198 = sbr.rel (%p196) target = $region24
        $region23: #{tpu_custom_call.1} parent=11 // pred_region
          %s200 = ssub.s32 8192, 8192
          %201 = vsyncadd [#allocation9], %s200
          %s202 = sshll.u32 [#allocation8], 4
          %s203 = int_to_ptr.vmem [resolvable:$true] %s202
          %208 = dma.hbm_to_vmem [thread:$0]  %s3, 8192, %s203, [#allocation9], 64, 64, 4
        $region24: #{tpu_custom_call.1} parent=11 // pred_fallthru
          _
        // Predicated region
        $region25: #{tpu_custom_call.1} parent=11 // pred_check
          %p209 = pneg %p129
        $region26: #{tpu_custom_call.1} parent=11 // pred_check_branch
          %211 = sbr.rel (%p209) target = $region28
        $region27: #{tpu_custom_call.1} parent=11 // pred_region
          %s213 = ssub.s32 1536, 1536
          %214 = vsyncadd [#allocation9], %s213
          %s215 = sshll.u32 [#allocation10], 4
          %s216 = int_to_ptr.vmem [resolvable:$true] %s215
          %221 = dma.hbm_to_vmem [thread:$0]  %s4, 1536, %s216, [#allocation9], 128, 128, 8
        $region28: #{tpu_custom_call.1} parent=11 // pred_fallthru
          _
      $region12: #{tpu_custom_call.1} parent=5 // pred_fallthru
        _
      %p222 = scmp.lt.s32.totalorder %s19, 2
      // Predicated region
      $region29: #{tpu_custom_call.1} parent=5 // pred_check
        %p223 = pneg %p222
      $region30: #{tpu_custom_call.1} parent=5 // pred_check_branch
        %225 = sbr.rel (%p223) target = $region32
      $region31: #{tpu_custom_call.1} parent=5 // pred_region
        // Predicated region
        $region33: #{tpu_custom_call.1} parent=31 // pred_check
          %p226 = pneg %p39
        $region34: #{tpu_custom_call.1} parent=31 // pred_check_branch
          %228 = sbr.rel (%p226) target = $region36
        $region35: #{tpu_custom_call.1} parent=31 // pred_region
          %s229 = sand.u32 %s29, 1
          %s230 = scalar_lea.sflag [#allocation3], %s229
          %s231 = sand.u32 %s29, 1
          %s232 = smul.addr %s231, 64
          %s233 = scalar_lea.vmem [#allocation2], %s232
          %s235 = ssub.s32 1024, 1024
          %236 = vsyncadd %s230, %s235
          %s237 = smul.addr %s19, 64
          %s238 = scalar_lea.hbm %s0, %s237
          %s239 = sshll.u32 %s233, 4
          %s240 = int_to_ptr.vmem [resolvable:$true] %s239
          %245 = dma.hbm_to_vmem [thread:$0]  %s238, 1024, %s240, %s230, 128, 64, 4
        $region36: #{tpu_custom_call.1} parent=31 // pred_fallthru
          _
      $region32: #{tpu_custom_call.1} parent=5 // pred_fallthru
        _
      %p246 = scmp.le.s32.totalorder 1, %s19
      %p247 = scmp.lt.s32.totalorder %s19, 3
      %p248 = pnand %p246, %p247
      %p249 = pneg %p248
      // Predicated region
      $region37: #{tpu_custom_call.1} parent=5 // pred_check
        _
      $region38: #{tpu_custom_call.1} parent=5 // pred_check_branch
        %251 = sbr.rel (%p248) target = $region40
      $region39: #{tpu_custom_call.1} parent=5 // pred_region
        %s252 = ssub.s32 %s19, 1
        %s253 = sand.u32 %s32, 1
        %s254 = scalar_lea.sflag [#allocation3], %s253
        %s255 = sand.u32 %s32, 1
        %s256 = smul.addr %s255, 64
        %s257 = scalar_lea.vmem [#allocation2], %s256
        // Predicated region
        $region41: #{tpu_custom_call.1} parent=39 // pred_check
          %p258 = pneg %p45
        $region42: #{tpu_custom_call.1} parent=39 // pred_check_branch
          %260 = sbr.rel (%p258) target = $region44
        $region43: #{tpu_custom_call.1} parent=39 // pred_region
          %261 = dma.done %s254, 1024
        $region44: #{tpu_custom_call.1} parent=39 // pred_fallthru
          _
        // Predicated region
        $region45: #{tpu_custom_call.1} parent=39 // pred_check
          %p262 = pneg %p66
        $region46: #{tpu_custom_call.1} parent=39 // pred_check_branch
          %264 = sbr.rel (%p262) target = $region48
        $region47: #{tpu_custom_call.1} parent=39 // pred_region
          %265 = dma.done [#allocation6], 8192
        $region48: #{tpu_custom_call.1} parent=39 // pred_fallthru
          _
        // Predicated region
        $region49: #{tpu_custom_call.1} parent=39 // pred_check
          %p266 = pneg %p87
        $region50: #{tpu_custom_call.1} parent=39 // pred_check_branch
          %268 = sbr.rel (%p266) target = $region52
        $region51: #{tpu_custom_call.1} parent=39 // pred_region
          %269 = dma.done [#allocation6], 8192
        $region52: #{tpu_custom_call.1} parent=39 // pred_fallthru
          _
        // Predicated region
        $region53: #{tpu_custom_call.1} parent=39 // pred_check
          %p270 = pneg %p108
        $region54: #{tpu_custom_call.1} parent=39 // pred_check_branch
          %272 = sbr.rel (%p270) target = $region56
        $region55: #{tpu_custom_call.1} parent=39 // pred_region
          %273 = dma.done [#allocation9], 8192
        $region56: #{tpu_custom_call.1} parent=39 // pred_fallthru
          _
        // Predicated region
        $region57: #{tpu_custom_call.1} parent=39 // pred_check
          %p274 = pneg %p129
        $region58: #{tpu_custom_call.1} parent=39 // pred_check_branch
          %276 = sbr.rel (%p274) target = $region60
        $region59: #{tpu_custom_call.1} parent=39 // pred_region
          %277 = dma.done [#allocation9], 1536
        $region60: #{tpu_custom_call.1} parent=39 // pred_fallthru
          _
        %s278 = sand.u32 %s32, 1
        %s279 = scalar_lea.sflag [#allocation3], %s278
        %s280 = sand.u32 %s32, 1
        %s281 = smul.addr %s280, 64
        %s282 = scalar_lea.vmem [#allocation2], %s281
        %p283 = pneg %p45
        %p284 = pneg %p42
        %p285 = pneg %p66
        %p286 = pneg %p63
        %p287 = pneg %p87
        %p288 = pneg %p84
        %p289 = pneg %p108
        %p290 = pneg %p105
        %p291 = pneg %p129
        %p292 = pneg %p126
        %p293 = pneg %p155
        %p294 = pneg %p152
        %s295 = sand.u32 %s142, 1
        %s296 = scalar_lea.sflag [#allocation4], %s295
        %s297 = sand.u32 %s142, 1
        %s298 = smul.addr %s297, 8
        %s299 = scalar_lea.vmem [#allocation11], %s298
        %v301 = vld [vmem:[%s257] sm:$0xf]
        %v302 = vld [vmem:[%s257 + $0x4] sm:$0xf]
        %v303 = vld [vmem:[%s257 + $0x8] sm:$0xf]
        %v304 = vld [vmem:[%s257 + $0xc] sm:$0xf]
        %v305 = vld [vmem:[%s257 + $0x10] sm:$0xf]
        %v306 = vld [vmem:[%s257 + $0x14] sm:$0xf]
        %v307 = vld [vmem:[%s257 + $0x18] sm:$0xf]
        %v308 = vld [vmem:[%s257 + $0x1c] sm:$0xf]
        %v309 = vld [vmem:[%s257 + $0x20] sm:$0xf]
        %v310 = vld [vmem:[%s257 + $0x24] sm:$0xf]
        %v311 = vld [vmem:[%s257 + $0x28] sm:$0xf]
        %v312 = vld [vmem:[%s257 + $0x2c] sm:$0xf]
        %v313 = vld [vmem:[%s257 + $0x30] sm:$0xf]
        %v314 = vld [vmem:[%s257 + $0x34] sm:$0xf]
        %v315 = vld [vmem:[%s257 + $0x38] sm:$0xf]
        %v316 = vld [vmem:[%s257 + $0x3c] sm:$0xf]
        %v317 = vld [vmem:[#allocation5] sm:$0xf]
        %v318 = vld [vmem:[#allocation5 + $0x4] sm:$0xf]
        %v319 = vld [vmem:[#allocation5 + $0x8] sm:$0xf]
        %v320 = vld [vmem:[#allocation5 + $0xc] sm:$0xf]
        %v321 = vld [vmem:[#allocation5 + $0x10] sm:$0xf]
        %v322 = vld [vmem:[#allocation5 + $0x14] sm:$0xf]
        %v323 = vld [vmem:[#allocation5 + $0x18] sm:$0xf]
        %v324 = vld [vmem:[#allocation5 + $0x1c] sm:$0xf]
        %v325 = vld [vmem:[#allocation5 + $0x20] sm:$0xf]
        %v326 = vld [vmem:[#allocation5 + $0x24] sm:$0xf]
        %v327 = vld [vmem:[#allocation5 + $0x28] sm:$0xf]
        %v328 = vld [vmem:[#allocation5 + $0x2c] sm:$0xf]
        %v329 = vld [vmem:[#allocation5 + $0x30] sm:$0xf]
        %v330 = vld [vmem:[#allocation5 + $0x34] sm:$0xf]
        %v331 = vld [vmem:[#allocation5 + $0x38] sm:$0xf]
        %v332 = vld [vmem:[#allocation5 + $0x3c] sm:$0xf]
        %v333 = vld [vmem:[#allocation5 + $0x40] sm:$0xf]
        %v334 = vld [vmem:[#allocation5 + $0x44] sm:$0xf]
        %v335 = vld [vmem:[#allocation5 + $0x48] sm:$0xf]
        %v336 = vld [vmem:[#allocation5 + $0x4c] sm:$0xf]
        %v337 = vld [vmem:[#allocation5 + $0x50] sm:$0xf]
        %v338 = vld [vmem:[#allocation5 + $0x54] sm:$0xf]
        %v339 = vld [vmem:[#allocation5 + $0x58] sm:$0xf]
        %v340 = vld [vmem:[#allocation5 + $0x5c] sm:$0xf]
        %v341 = vld [vmem:[#allocation5 + $0x60] sm:$0xf]
        %v342 = vld [vmem:[#allocation5 + $0x64] sm:$0xf]
        %v343 = vld [vmem:[#allocation5 + $0x68] sm:$0xf]
        %v344 = vld [vmem:[#allocation5 + $0x6c] sm:$0xf]
        %v345 = vld [vmem:[#allocation5 + $0x70] sm:$0xf]
        %v346 = vld [vmem:[#allocation5 + $0x74] sm:$0xf]
        %v347 = vld [vmem:[#allocation5 + $0x78] sm:$0xf]
        %v348 = vld [vmem:[#allocation5 + $0x7c] sm:$0xf]
        %v349 = vld [vmem:[#allocation5 + $0x80] sm:$0xf]
        %v350 = vld [vmem:[#allocation5 + $0x84] sm:$0xf]
        %v351 = vld [vmem:[#allocation5 + $0x88] sm:$0xf]
        %v352 = vld [vmem:[#allocation5 + $0x8c] sm:$0xf]
        %v353 = vld [vmem:[#allocation5 + $0x90] sm:$0xf]
        %v354 = vld [vmem:[#allocation5 + $0x94] sm:$0xf]
        %v355 = vld [vmem:[#allocation5 + $0x98] sm:$0xf]
        %v356 = vld [vmem:[#allocation5 + $0x9c] sm:$0xf]
        %v357 = vld [vmem:[#allocation5 + $0xa0] sm:$0xf]
        %v358 = vld [vmem:[#allocation5 + $0xa4] sm:$0xf]
        %v359 = vld [vmem:[#allocation5 + $0xa8] sm:$0xf]
        %v360 = vld [vmem:[#allocation5 + $0xac] sm:$0xf]
        %v361 = vld [vmem:[#allocation5 + $0xb0] sm:$0xf]
        %v362 = vld [vmem:[#allocation5 + $0xb4] sm:$0xf]
        %v363 = vld [vmem:[#allocation5 + $0xb8] sm:$0xf]
        %v364 = vld [vmem:[#allocation5 + $0xbc] sm:$0xf]
        %v365 = vld [vmem:[#allocation5 + $0xc0] sm:$0xf]
        %v366 = vld [vmem:[#allocation5 + $0xc4] sm:$0xf]
        %v367 = vld [vmem:[#allocation5 + $0xc8] sm:$0xf]
        %v368 = vld [vmem:[#allocation5 + $0xcc] sm:$0xf]
        %v369 = vld [vmem:[#allocation5 + $0xd0] sm:$0xf]
        %v370 = vld [vmem:[#allocation5 + $0xd4] sm:$0xf]
        %v371 = vld [vmem:[#allocation5 + $0xd8] sm:$0xf]
        %v372 = vld [vmem:[#allocation5 + $0xdc] sm:$0xf]
        %v373 = vld [vmem:[#allocation5 + $0xe0] sm:$0xf]
        %v374 = vld [vmem:[#allocation5 + $0xe4] sm:$0xf]
        %v375 = vld [vmem:[#allocation5 + $0xe8] sm:$0xf]
        %v376 = vld [vmem:[#allocation5 + $0xec] sm:$0xf]
        %v377 = vld [vmem:[#allocation5 + $0xf0] sm:$0xf]
        %v378 = vld [vmem:[#allocation5 + $0xf4] sm:$0xf]
        %v379 = vld [vmem:[#allocation5 + $0xf8] sm:$0xf]
        %v380 = vld [vmem:[#allocation5 + $0xfc] sm:$0xf]
        %v381 = vld [vmem:[#allocation5 + $0x100] sm:$0xf]
        %v382 = vld [vmem:[#allocation5 + $0x104] sm:$0xf]
        %v383 = vld [vmem:[#allocation5 + $0x108] sm:$0xf]
        %v384 = vld [vmem:[#allocation5 + $0x10c] sm:$0xf]
        %v385 = vld [vmem:[#allocation5 + $0x110] sm:$0xf]
        %v386 = vld [vmem:[#allocation5 + $0x114] sm:$0xf]
        %v387 = vld [vmem:[#allocation5 + $0x118] sm:$0xf]
        %v388 = vld [vmem:[#allocation5 + $0x11c] sm:$0xf]
        %v389 = vld [vmem:[#allocation5 + $0x120] sm:$0xf]
        %v390 = vld [vmem:[#allocation5 + $0x124] sm:$0xf]
        %v391 = vld [vmem:[#allocation5 + $0x128] sm:$0xf]
        %v392 = vld [vmem:[#allocation5 + $0x12c] sm:$0xf]
        %v393 = vld [vmem:[#allocation5 + $0x130] sm:$0xf]
        %v394 = vld [vmem:[#allocation5 + $0x134] sm:$0xf]
        %v395 = vld [vmem:[#allocation5 + $0x138] sm:$0xf]
        %v396 = vld [vmem:[#allocation5 + $0x13c] sm:$0xf]
        %v397 = vld [vmem:[#allocation5 + $0x140] sm:$0xf]
        %v398 = vld [vmem:[#allocation5 + $0x144] sm:$0xf]
        %v399 = vld [vmem:[#allocation5 + $0x148] sm:$0xf]
        %v400 = vld [vmem:[#allocation5 + $0x14c] sm:$0xf]
        %v401 = vld [vmem:[#allocation5 + $0x150] sm:$0xf]
        %v402 = vld [vmem:[#allocation5 + $0x154] sm:$0xf]
        %v403 = vld [vmem:[#allocation5 + $0x158] sm:$0xf]
        %v404 = vld [vmem:[#allocation5 + $0x15c] sm:$0xf]
        %v405 = vld [vmem:[#allocation5 + $0x160] sm:$0xf]
        %v406 = vld [vmem:[#allocation5 + $0x164] sm:$0xf]
        %v407 = vld [vmem:[#allocation5 + $0x168] sm:$0xf]
        %v408 = vld [vmem:[#allocation5 + $0x16c] sm:$0xf]
        %v409 = vld [vmem:[#allocation5 + $0x170] sm:$0xf]
        %v410 = vld [vmem:[#allocation5 + $0x174] sm:$0xf]
        %v411 = vld [vmem:[#allocation5 + $0x178] sm:$0xf]
        %v412 = vld [vmem:[#allocation5 + $0x17c] sm:$0xf]
        %v413 = vld [vmem:[#allocation5 + $0x180] sm:$0xf]
        %v414 = vld [vmem:[#allocation5 + $0x184] sm:$0xf]
        %v415 = vld [vmem:[#allocation5 + $0x188] sm:$0xf]
        %v416 = vld [vmem:[#allocation5 + $0x18c] sm:$0xf]
        %v417 = vld [vmem:[#allocation5 + $0x190] sm:$0xf]
        %v418 = vld [vmem:[#allocation5 + $0x194] sm:$0xf]
        %v419 = vld [vmem:[#allocation5 + $0x198] sm:$0xf]
        %v420 = vld [vmem:[#allocation5 + $0x19c] sm:$0xf]
        %v421 = vld [vmem:[#allocation5 + $0x1a0] sm:$0xf]
        %v422 = vld [vmem:[#allocation5 + $0x1a4] sm:$0xf]
        %v423 = vld [vmem:[#allocation5 + $0x1a8] sm:$0xf]
        %v424 = vld [vmem:[#allocation5 + $0x1ac] sm:$0xf]
        %v425 = vld [vmem:[#allocation5 + $0x1b0] sm:$0xf]
        %v426 = vld [vmem:[#allocation5 + $0x1b4] sm:$0xf]
        %v427 = vld [vmem:[#allocation5 + $0x1b8] sm:$0xf]
        %v428 = vld [vmem:[#allocation5 + $0x1bc] sm:$0xf]
        %v429 = vld [vmem:[#allocation5 + $0x1c0] sm:$0xf]
        %v430 = vld [vmem:[#allocation5 + $0x1c4] sm:$0xf]
        %v431 = vld [vmem:[#allocation5 + $0x1c8] sm:$0xf]
        %v432 = vld [vmem:[#allocation5 + $0x1cc] sm:$0xf]
        %v433 = vld [vmem:[#allocation5 + $0x1d0] sm:$0xf]
        %v434 = vld [vmem:[#allocation5 + $0x1d4] sm:$0xf]
        %v435 = vld [vmem:[#allocation5 + $0x1d8] sm:$0xf]
        %v436 = vld [vmem:[#allocation5 + $0x1dc] sm:$0xf]
        %v437 = vld [vmem:[#allocation5 + $0x1e0] sm:$0xf]
        %v438 = vld [vmem:[#allocation5 + $0x1e4] sm:$0xf]
        %v439 = vld [vmem:[#allocation5 + $0x1e8] sm:$0xf]
        %v440 = vld [vmem:[#allocation5 + $0x1ec] sm:$0xf]
        %v441 = vld [vmem:[#allocation5 + $0x1f0] sm:$0xf]
        %v442 = vld [vmem:[#allocation5 + $0x1f4] sm:$0xf]
        %v443 = vld [vmem:[#allocation5 + $0x1f8] sm:$0xf]
        %v444 = vld [vmem:[#allocation5 + $0x1fc] sm:$0xf]
        %v453 = vunpack.c.l.b16 %v317
        %v454 = vunpack.c.l.b16 %v318
        %v455 = vunpack.c.l.b16 %v319
        %v456 = vunpack.c.l.b16 %v320
        %v457 = vunpack.c.l.b16 %v321
        %v458 = vunpack.c.l.b16 %v322
        %v459 = vunpack.c.l.b16 %v323
        %v460 = vunpack.c.l.b16 %v324
        %v461 = vpack.c.b16 %v454, %v453
        %v462 = vpack.c.b16 %v456, %v455
        %v463 = vpack.c.b16 %v458, %v457
        %v464 = vpack.c.b16 %v460, %v459
        %vm469 = vcmask 523264
        %v471 = vsel %vm469, %v301, 0
        %473 = vmatprep.subr.bf16.mxu0 0
        %474 = vmatpush1.bf16.msra.mxu0 %v461
        %475 = vmatprep.subr.bf16.mxu0 0
        %476 = vmatpush1.bf16.msra.mxu0 %v462
        %477 = vmatprep.subr.bf16.mxu0 0
        %478 = vmatpush1.bf16.msra.mxu0 %v463
        %479 = vmatprep.subr.bf16.mxu0 0
        %480 = vmatpush1.bf16.msra.mxu0 %v464
        %481 = vmatprep.subr.bf16.mxu0 0
        %482 = vmatpush1.bf16.msra.mxu0 0
        %483 = vmatprep.subr.bf16.mxu0 0
        %484 = vmatpush1.bf16.msra.mxu0 0
        %485 = vmatprep.subr.bf16.mxu0 0
        %486 = vmatpush1.bf16.msra.mxu0 0
        %487 = vmatprep.subr.bf16.mxu0 0
        %488 = vmatpush1.bf16.msra.mxu0 0
        %489 = vmatprep.subr.bf16.mxu0 0
        %490 = vmatpush1.bf16.msra.mxu0 0
        %491 = vmatprep.subr.bf16.mxu0 0
        %492 = vmatpush1.bf16.msra.mxu0 0
        %493 = vmatprep.subr.bf16.mxu0 0
        %494 = vmatpush1.bf16.msra.mxu0 0
        %495 = vmatprep.subr.bf16.mxu0 0
        %496 = vmatpush1.bf16.msra.mxu0 0
        %497 = vmatprep.subr.bf16.mxu0 0
        %498 = vmatpush1.bf16.msra.mxu0 0
        %499 = vmatprep.subr.bf16.mxu0 0
        %500 = vmatpush1.bf16.msra.mxu0 0
        %501 = vmatprep.subr.bf16.mxu0 0
        %502 = vmatpush1.bf16.msra.mxu0 0
        %503 = vmatprep.subr.bf16.mxu0 0
        %504 = vmatpush1.bf16.msra.mxu0 0
        %505 = vmatprep.mubr.bf16.mxu0 0
        %506 = vmatmul.mubr.bf16.gmra.mrb[0].mxu0 %v471
        %v507 = vpop.f32.mrb[0].mxu0
        %v508 = vadd.f32 0.0, %v507
        %v509 = vpop.f32.mrb[0].mxu0
        %v510 = vpop.f32.mrb[0].mxu0
        %v511 = vpop.f32.mrb[0].mxu0
        %512 = vdwg.mxu0
        %v521 = vunpack.c.l.b16 %v325
        %v522 = vunpack.c.l.b16 %v326
        %v523 = vunpack.c.l.b16 %v327
        %v524 = vunpack.c.l.b16 %v328
        %v525 = vunpack.c.l.b16 %v329
        %v526 = vunpack.c.l.b16 %v330
        %v527 = vunpack.c.l.b16 %v331
        %v528 = vunpack.c.l.b16 %v332
        %v529 = vpack.c.b16 %v522, %v521
        %v530 = vpack.c.b16 %v524, %v523
        %v531 = vpack.c.b16 %v526, %v525
        %v532 = vpack.c.b16 %v528, %v527
        %v538 = vsel %vm469, %v302, 0
        %540 = vmatprep.subr.bf16.mxu0 0
        %541 = vmatpush1.bf16.msra.mxu0 %v529
        %542 = vmatprep.subr.bf16.mxu0 0
        %543 = vmatpush1.bf16.msra.mxu0 %v530
        %544 = vmatprep.subr.bf16.mxu0 0
        %545 = vmatpush1.bf16.msra.mxu0 %v531
        %546 = vmatprep.subr.bf16.mxu0 0
        %547 = vmatpush1.bf16.msra.mxu0 %v532
        %548 = vmatprep.subr.bf16.mxu0 0
        %549 = vmatpush1.bf16.msra.mxu0 0
        %550 = vmatprep.subr.bf16.mxu0 0
        %551 = vmatpush1.bf16.msra.mxu0 0
        %552 = vmatprep.subr.bf16.mxu0 0
        %553 = vmatpush1.bf16.msra.mxu0 0
        %554 = vmatprep.subr.bf16.mxu0 0
        %555 = vmatpush1.bf16.msra.mxu0 0
        %556 = vmatprep.subr.bf16.mxu0 0
        %557 = vmatpush1.bf16.msra.mxu0 0
        %558 = vmatprep.subr.bf16.mxu0 0
        %559 = vmatpush1.bf16.msra.mxu0 0
        %560 = vmatprep.subr.bf16.mxu0 0
        %561 = vmatpush1.bf16.msra.mxu0 0
        %562 = vmatprep.subr.bf16.mxu0 0
        %563 = vmatpush1.bf16.msra.mxu0 0
        %564 = vmatprep.subr.bf16.mxu0 0
        %565 = vmatpush1.bf16.msra.mxu0 0
        %566 = vmatprep.subr.bf16.mxu0 0
        %567 = vmatpush1.bf16.msra.mxu0 0
        %568 = vmatprep.subr.bf16.mxu0 0
        %569 = vmatpush1.bf16.msra.mxu0 0
        %570 = vmatprep.subr.bf16.mxu0 0
        %571 = vmatpush1.bf16.msra.mxu0 0
        %572 = vmatprep.mubr.bf16.mxu0 0
        %573 = vmatmul.mubr.bf16.gmra.mrb[0].mxu0 %v538
        %v574 = vpop.f32.mrb[0].mxu0
        %v575 = vadd.f32 0.0, %v574
        %v576 = vpop.f32.mrb[0].mxu0
        %v577 = vpop.f32.mrb[0].mxu0
        %v578 = vpop.f32.mrb[0].mxu0
        %579 = vdwg.mxu0
        %v588 = vunpack.c.l.b16 %v333
        %v589 = vunpack.c.l.b16 %v334
        %v590 = vunpack.c.l.b16 %v335
        %v591 = vunpack.c.l.b16 %v336
        %v592 = vunpack.c.l.b16 %v337
        %v593 = vunpack.c.l.b16 %v338
        %v594 = vunpack.c.l.b16 %v339
        %v595 = vunpack.c.l.b16 %v340
        %v596 = vpack.c.b16 %v589, %v588
        %v597 = vpack.c.b16 %v591, %v590
        %v598 = vpack.c.b16 %v593, %v592
        %v599 = vpack.c.b16 %v595, %v594
        %v605 = vsel %vm469, %v303, 0
        %607 = vmatprep.subr.bf16.mxu0 0
        %608 = vmatpush1.bf16.msra.mxu0 %v596
        %609 = vmatprep.subr.bf16.mxu0 0
        %610 = vmatpush1.bf16.msra.mxu0 %v597
        %611 = vmatprep.subr.bf16.mxu0 0
        %612 = vmatpush1.bf16.msra.mxu0 %v598
        %613 = vmatprep.subr.bf16.mxu0 0
        %614 = vmatpush1.bf16.msra.mxu0 %v599
        %615 = vmatprep.subr.bf16.mxu0 0
        %616 = vmatpush1.bf16.msra.mxu0 0
        %617 = vmatprep.subr.bf16.mxu0 0
        %618 = vmatpush1.bf16.msra.mxu0 0
        %619 = vmatprep.subr.bf16.mxu0 0
        %620 = vmatpush1.bf16.msra.mxu0 0
        %621 = vmatprep.subr.bf16.mxu0 0
        %622 = vmatpush1.bf16.msra.mxu0 0
        %623 = vmatprep.subr.bf16.mxu0 0
        %624 = vmatpush1.bf16.msra.mxu0 0
        %625 = vmatprep.subr.bf16.mxu0 0
        %626 = vmatpush1.bf16.msra.mxu0 0
        %627 = vmatprep.subr.bf16.mxu0 0
        %628 = vmatpush1.bf16.msra.mxu0 0
        %629 = vmatprep.subr.bf16.mxu0 0
        %630 = vmatpush1.bf16.msra.mxu0 0
        %631 = vmatprep.subr.bf16.mxu0 0
        %632 = vmatpush1.bf16.msra.mxu0 0
        %633 = vmatprep.subr.bf16.mxu0 0
        %634 = vmatpush1.bf16.msra.mxu0 0
        %635 = vmatprep.subr.bf16.mxu0 0
        %636 = vmatpush1.bf16.msra.mxu0 0
        %637 = vmatprep.subr.bf16.mxu0 0
        %638 = vmatpush1.bf16.msra.mxu0 0
        %639 = vmatprep.mubr.bf16.mxu0 0
        %640 = vmatmul.mubr.bf16.gmra.mrb[0].mxu0 %v605
        %v641 = vpop.f32.mrb[0].mxu0
        %v642 = vadd.f32 0.0, %v641
        %v643 = vpop.f32.mrb[0].mxu0
        %v644 = vpop.f32.mrb[0].mxu0
        %v645 = vpop.f32.mrb[0].mxu0
        %646 = vdwg.mxu0
        %v655 = vunpack.c.l.b16 %v341
        %v656 = vunpack.c.l.b16 %v342
        %v657 = vunpack.c.l.b16 %v343
        %v658 = vunpack.c.l.b16 %v344
        %v659 = vunpack.c.l.b16 %v345
        %v660 = vunpack.c.l.b16 %v346
        %v661 = vunpack.c.l.b16 %v347
        %v662 = vunpack.c.l.b16 %v348
        %v663 = vpack.c.b16 %v656, %v655
        %v664 = vpack.c.b16 %v658, %v657
        %v665 = vpack.c.b16 %v660, %v659
        %v666 = vpack.c.b16 %v662, %v661
        %v672 = vsel %vm469, %v304, 0
        %674 = vmatprep.subr.bf16.mxu0 0
        %675 = vmatpush1.bf16.msra.mxu0 %v663
        %676 = vmatprep.subr.bf16.mxu0 0
        %677 = vmatpush1.bf16.msra.mxu0 %v664
        %678 = vmatprep.subr.bf16.mxu0 0
        %679 = vmatpush1.bf16.msra.mxu0 %v665
        %680 = vmatprep.subr.bf16.mxu0 0
        %681 = vmatpush1.bf16.msra.mxu0 %v666
        %682 = vmatprep.subr.bf16.mxu0 0
        %683 = vmatpush1.bf16.msra.mxu0 0
        %684 = vmatprep.subr.bf16.mxu0 0
        %685 = vmatpush1.bf16.msra.mxu0 0
        %686 = vmatprep.subr.bf16.mxu0 0
        %687 = vmatpush1.bf16.msra.mxu0 0
        %688 = vmatprep.subr.bf16.mxu0 0
        %689 = vmatpush1.bf16.msra.mxu0 0
        %690 = vmatprep.subr.bf16.mxu0 0
        %691 = vmatpush1.bf16.msra.mxu0 0
        %692 = vmatprep.subr.bf16.mxu0 0
        %693 = vmatpush1.bf16.msra.mxu0 0
        %694 = vmatprep.subr.bf16.mxu0 0
        %695 = vmatpush1.bf16.msra.mxu0 0
        %696 = vmatprep.subr.bf16.mxu0 0
        %697 = vmatpush1.bf16.msra.mxu0 0
        %698 = vmatprep.subr.bf16.mxu0 0
        %699 = vmatpush1.bf16.msra.mxu0 0
        %700 = vmatprep.subr.bf16.mxu0 0
        %701 = vmatpush1.bf16.msra.mxu0 0
        %702 = vmatprep.subr.bf16.mxu0 0
        %703 = vmatpush1.bf16.msra.mxu0 0
        %704 = vmatprep.subr.bf16.mxu0 0
        %705 = vmatpush1.bf16.msra.mxu0 0
        %706 = vmatprep.mubr.bf16.mxu0 0
        %707 = vmatmul.mubr.bf16.gmra.mrb[0].mxu0 %v672
        %v708 = vpop.f32.mrb[0].mxu0
        %v709 = vadd.f32 0.0, %v708
        %v710 = vpop.f32.mrb[0].mxu0
        %v711 = vpop.f32.mrb[0].mxu0
        %v712 = vpop.f32.mrb[0].mxu0
        %713 = vdwg.mxu0
        %v722 = vunpack.c.l.b16 %v349
        %v723 = vunpack.c.l.b16 %v350
        %v724 = vunpack.c.l.b16 %v351
        %v725 = vunpack.c.l.b16 %v352
        %v726 = vunpack.c.l.b16 %v353
        %v727 = vunpack.c.l.b16 %v354
        %v728 = vunpack.c.l.b16 %v355
        %v729 = vunpack.c.l.b16 %v356
        %v730 = vpack.c.b16 %v723, %v722
        %v731 = vpack.c.b16 %v725, %v724
        %v732 = vpack.c.b16 %v727, %v726
        %v733 = vpack.c.b16 %v729, %v728
        %v739 = vsel %vm469, %v305, 0
        %741 = vmatprep.subr.bf16.mxu0 0
        %742 = vmatpush1.bf16.msra.mxu0 %v730
        %743 = vmatprep.subr.bf16.mxu0 0
        %744 = vmatpush1.bf16.msra.mxu0 %v731
        %745 = vmatprep.subr.bf16.mxu0 0
        %746 = vmatpush1.bf16.msra.mxu0 %v732
        %747 = vmatprep.subr.bf16.mxu0 0
        %748 = vmatpush1.bf16.msra.mxu0 %v733
        %749 = vmatprep.subr.bf16.mxu0 0
        %750 = vmatpush1.bf16.msra.mxu0 0
        %751 = vmatprep.subr.bf16.mxu0 0
        %752 = vmatpush1.bf16.msra.mxu0 0
        %753 = vmatprep.subr.bf16.mxu0 0
        %754 = vmatpush1.bf16.msra.mxu0 0
        %755 = vmatprep.subr.bf16.mxu0 0
        %756 = vmatpush1.bf16.msra.mxu0 0
        %757 = vmatprep.subr.bf16.mxu0 0
        %758 = vmatpush1.bf16.msra.mxu0 0
        %759 = vmatprep.subr.bf16.mxu0 0
        %760 = vmatpush1.bf16.msra.mxu0 0
        %761 = vmatprep.subr.bf16.mxu0 0
        %762 = vmatpush1.bf16.msra.mxu0 0
        %763 = vmatprep.subr.bf16.mxu0 0
        %764 = vmatpush1.bf16.msra.mxu0 0
        %765 = vmatprep.subr.bf16.mxu0 0
        %766 = vmatpush1.bf16.msra.mxu0 0
        %767 = vmatprep.subr.bf16.mxu0 0
        %768 = vmatpush1.bf16.msra.mxu0 0
        %769 = vmatprep.subr.bf16.mxu0 0
        %770 = vmatpush1.bf16.msra.mxu0 0
        %771 = vmatprep.subr.bf16.mxu0 0
        %772 = vmatpush1.bf16.msra.mxu0 0
        %773 = vmatprep.mubr.bf16.mxu0 0
        %774 = vmatmul.mubr.bf16.gmra.mrb[0].mxu0 %v739
        %v775 = vpop.f32.mrb[0].mxu0
        %v776 = vadd.f32 0.0, %v775
        %v777 = vpop.f32.mrb[0].mxu0
        %v778 = vpop.f32.mrb[0].mxu0
        %v779 = vpop.f32.mrb[0].mxu0
        %780 = vdwg.mxu0
        %v789 = vunpack.c.l.b16 %v357
        %v790 = vunpack.c.l.b16 %v358
        %v791 = vunpack.c.l.b16 %v359
        %v792 = vunpack.c.l.b16 %v360
        %v793 = vunpack.c.l.b16 %v361
        %v794 = vunpack.c.l.b16 %v362
        %v795 = vunpack.c.l.b16 %v363
        %v796 = vunpack.c.l.b16 %v364
        %v797 = vpack.c.b16 %v790, %v789
        %v798 = vpack.c.b16 %v792, %v791
        %v799 = vpack.c.b16 %v794, %v793
        %v800 = vpack.c.b16 %v796, %v795
        %v806 = vsel %vm469, %v306, 0
        %808 = vmatprep.subr.bf16.mxu0 0
        %809 = vmatpush1.bf16.msra.mxu0 %v797
        %810 = vmatprep.subr.bf16.mxu0 0
        %811 = vmatpush1.bf16.msra.mxu0 %v798
        %812 = vmatprep.subr.bf16.mxu0 0
        %813 = vmatpush1.bf16.msra.mxu0 %v799
        %814 = vmatprep.subr.bf16.mxu0 0
        %815 = vmatpush1.bf16.msra.mxu0 %v800
        %816 = vmatprep.subr.bf16.mxu0 0
        %817 = vmatpush1.bf16.msra.mxu0 0
        %818 = vmatprep.subr.bf16.mxu0 0
        %819 = vmatpush1.bf16.msra.mxu0 0
        %820 = vmatprep.subr.bf16.mxu0 0
        %821 = vmatpush1.bf16.msra.mxu0 0
        %822 = vmatprep.subr.bf16.mxu0 0
        %823 = vmatpush1.bf16.msra.mxu0 0
        %824 = vmatprep.subr.bf16.mxu0 0
        %825 = vmatpush1.bf16.msra.mxu0 0
        %826 = vmatprep.subr.bf16.mxu0 0
        %827 = vmatpush1.bf16.msra.mxu0 0
        %828 = vmatprep.subr.bf16.mxu0 0
        %829 = vmatpush1.bf16.msra.mxu0 0
        %830 = vmatprep.subr.bf16.mxu0 0
        %831 = vmatpush1.bf16.msra.mxu0 0
        %832 = vmatprep.subr.bf16.mxu0 0
        %833 = vmatpush1.bf16.msra.mxu0 0
        %834 = vmatprep.subr.bf16.mxu0 0
        %835 = vmatpush1.bf16.msra.mxu0 0
        %836 = vmatprep.subr.bf16.mxu0 0
        %837 = vmatpush1.bf16.msra.mxu0 0
        %838 = vmatprep.subr.bf16.mxu0 0
        %839 = vmatpush1.bf16.msra.mxu0 0
        %840 = vmatprep.mubr.bf16.mxu0 0
        %841 = vmatmul.mubr.bf16.gmra.mrb[0].mxu0 %v806
        %v842 = vpop.f32.mrb[0].mxu0
        %v843 = vadd.f32 0.0, %v842
        %v844 = vpop.f32.mrb[0].mxu0
        %v845 = vpop.f32.mrb[0].mxu0
        %v846 = vpop.f32.mrb[0].mxu0
        %847 = vdwg.mxu0
        %v856 = vunpack.c.l.b16 %v365
        %v857 = vunpack.c.l.b16 %v366
        %v858 = vunpack.c.l.b16 %v367
        %v859 = vunpack.c.l.b16 %v368
        %v860 = vunpack.c.l.b16 %v369
        %v861 = vunpack.c.l.b16 %v370
        %v862 = vunpack.c.l.b16 %v371
        %v863 = vunpack.c.l.b16 %v372
        %v864 = vpack.c.b16 %v857, %v856
        %v865 = vpack.c.b16 %v859, %v858
        %v866 = vpack.c.b16 %v861, %v860
        %v867 = vpack.c.b16 %v863, %v862
        %v873 = vsel %vm469, %v307, 0
        %875 = vmatprep.subr.bf16.mxu0 0
        %876 = vmatpush1.bf16.msra.mxu0 %v864
        %877 = vmatprep.subr.bf16.mxu0 0
        %878 = vmatpush1.bf16.msra.mxu0 %v865
        %879 = vmatprep.subr.bf16.mxu0 0
        %880 = vmatpush1.bf16.msra.mxu0 %v866
        %881 = vmatprep.subr.bf16.mxu0 0
        %882 = vmatpush1.bf16.msra.mxu0 %v867
        %883 = vmatprep.subr.bf16.mxu0 0
        %884 = vmatpush1.bf16.msra.mxu0 0
        %885 = vmatprep.subr.bf16.mxu0 0
        %886 = vmatpush1.bf16.msra.mxu0 0
        %887 = vmatprep.subr.bf16.mxu0 0
        %888 = vmatpush1.bf16.msra.mxu0 0
        %889 = vmatprep.subr.bf16.mxu0 0
        %890 = vmatpush1.bf16.msra.mxu0 0
        %891 = vmatprep.subr.bf16.mxu0 0
        %892 = vmatpush1.bf16.msra.mxu0 0
        %893 = vmatprep.subr.bf16.mxu0 0
        %894 = vmatpush1.bf16.msra.mxu0 0
        %895 = vmatprep.subr.bf16.mxu0 0
        %896 = vmatpush1.bf16.msra.mxu0 0
        %897 = vmatprep.subr.bf16.mxu0 0
        %898 = vmatpush1.bf16.msra.mxu0 0
        %899 = vmatprep.subr.bf16.mxu0 0
        %900 = vmatpush1.bf16.msra.mxu0 0
        %901 = vmatprep.subr.bf16.mxu0 0
        %902 = vmatpush1.bf16.msra.mxu0 0
        %903 = vmatprep.subr.bf16.mxu0 0
        %904 = vmatpush1.bf16.msra.mxu0 0
        %905 = vmatprep.subr.bf16.mxu0 0
        %906 = vmatpush1.bf16.msra.mxu0 0
        %907 = vmatprep.mubr.bf16.mxu0 0
        %908 = vmatmul.mubr.bf16.gmra.mrb[0].mxu0 %v873
        %v909 = vpop.f32.mrb[0].mxu0
        %v910 = vadd.f32 0.0, %v909
        %v911 = vpop.f32.mrb[0].mxu0
        %v912 = vpop.f32.mrb[0].mxu0
        %v913 = vpop.f32.mrb[0].mxu0
        %914 = vdwg.mxu0
        %v923 = vunpack.c.l.b16 %v373
        %v924 = vunpack.c.l.b16 %v374
        %v925 = vunpack.c.l.b16 %v375
        %v926 = vunpack.c.l.b16 %v376
        %v927 = vunpack.c.l.b16 %v377
        %v928 = vunpack.c.l.b16 %v378
        %v929 = vunpack.c.l.b16 %v379
        %v930 = vunpack.c.l.b16 %v380
        %v931 = vpack.c.b16 %v924, %v923
        %v932 = vpack.c.b16 %v926, %v925
        %v933 = vpack.c.b16 %v928, %v927
        %v934 = vpack.c.b16 %v930, %v929
        %v940 = vsel %vm469, %v308, 0
        %942 = vmatprep.subr.bf16.mxu0 0
        %943 = vmatpush1.bf16.msra.mxu0 %v931
        %944 = vmatprep.subr.bf16.mxu0 0
        %945 = vmatpush1.bf16.msra.mxu0 %v932
        %946 = vmatprep.subr.bf16.mxu0 0
        %947 = vmatpush1.bf16.msra.mxu0 %v933
        %948 = vmatprep.subr.bf16.mxu0 0
        %949 = vmatpush1.bf16.msra.mxu0 %v934
        %950 = vmatprep.subr.bf16.mxu0 0
        %951 = vmatpush1.bf16.msra.mxu0 0
        %952 = vmatprep.subr.bf16.mxu0 0
        %953 = vmatpush1.bf16.msra.mxu0 0
        %954 = vmatprep.subr.bf16.mxu0 0
        %955 = vmatpush1.bf16.msra.mxu0 0
        %956 = vmatprep.subr.bf16.mxu0 0
        %957 = vmatpush1.bf16.msra.mxu0 0
        %958 = vmatprep.subr.bf16.mxu0 0
        %959 = vmatpush1.bf16.msra.mxu0 0
        %960 = vmatprep.subr.bf16.mxu0 0
        %961 = vmatpush1.bf16.msra.mxu0 0
        %962 = vmatprep.subr.bf16.mxu0 0
        %963 = vmatpush1.bf16.msra.mxu0 0
        %964 = vmatprep.subr.bf16.mxu0 0
        %965 = vmatpush1.bf16.msra.mxu0 0
        %966 = vmatprep.subr.bf16.mxu0 0
        %967 = vmatpush1.bf16.msra.mxu0 0
        %968 = vmatprep.subr.bf16.mxu0 0
        %969 = vmatpush1.bf16.msra.mxu0 0
        %970 = vmatprep.subr.bf16.mxu0 0
        %971 = vmatpush1.bf16.msra.mxu0 0
        %972 = vmatprep.subr.bf16.mxu0 0
        %973 = vmatpush1.bf16.msra.mxu0 0
        %974 = vmatprep.mubr.bf16.mxu0 0
        %975 = vmatmul.mubr.bf16.gmra.mrb[0].mxu0 %v940
        %v976 = vpop.f32.mrb[0].mxu0
        %v977 = vadd.f32 0.0, %v976
        %v978 = vpop.f32.mrb[0].mxu0
        %v979 = vpop.f32.mrb[0].mxu0
        %v980 = vpop.f32.mrb[0].mxu0
        %981 = vdwg.mxu0
        %v990 = vunpack.c.l.b16 %v381
        %v991 = vunpack.c.l.b16 %v382
        %v992 = vunpack.c.l.b16 %v383
        %v993 = vunpack.c.l.b16 %v384
        %v994 = vunpack.c.l.b16 %v385
        %v995 = vunpack.c.l.b16 %v386
        %v996 = vunpack.c.l.b16 %v387
        %v997 = vunpack.c.l.b16 %v388
        %v998 = vpack.c.b16 %v991, %v990
        %v999 = vpack.c.b16 %v993, %v992
        %v1000 = vpack.c.b16 %v995, %v994
        %v1001 = vpack.c.b16 %v997, %v996
        %v1007 = vsel %vm469, %v309, 0
        %1009 = vmatprep.subr.bf16.mxu0 0
        %1010 = vmatpush1.bf16.msra.mxu0 %v998
        %1011 = vmatprep.subr.bf16.mxu0 0
        %1012 = vmatpush1.bf16.msra.mxu0 %v999
        %1013 = vmatprep.subr.bf16.mxu0 0
        %1014 = vmatpush1.bf16.msra.mxu0 %v1000
        %1015 = vmatprep.subr.bf16.mxu0 0
        %1016 = vmatpush1.bf16.msra.mxu0 %v1001
        %1017 = vmatprep.subr.bf16.mxu0 0
        %1018 = vmatpush1.bf16.msra.mxu0 0
        %1019 = vmatprep.subr.bf16.mxu0 0
        %1020 = vmatpush1.bf16.msra.mxu0 0
        %1021 = vmatprep.subr.bf16.mxu0 0
        %1022 = vmatpush1.bf16.msra.mxu0 0
        %1023 = vmatprep.subr.bf16.mxu0 0
        %1024 = vmatpush1.bf16.msra.mxu0 0
        %1025 = vmatprep.subr.bf16.mxu0 0
        %1026 = vmatpush1.bf16.msra.mxu0 0
        %1027 = vmatprep.subr.bf16.mxu0 0
        %1028 = vmatpush1.bf16.msra.mxu0 0
        %1029 = vmatprep.subr.bf16.mxu0 0
        %1030 = vmatpush1.bf16.msra.mxu0 0
        %1031 = vmatprep.subr.bf16.mxu0 0
        %1032 = vmatpush1.bf16.msra.mxu0 0
        %1033 = vmatprep.subr.bf16.mxu0 0
        %1034 = vmatpush1.bf16.msra.mxu0 0
        %1035 = vmatprep.subr.bf16.mxu0 0
        %1036 = vmatpush1.bf16.msra.mxu0 0
        %1037 = vmatprep.subr.bf16.mxu0 0
        %1038 = vmatpush1.bf16.msra.mxu0 0
        %1039 = vmatprep.subr.bf16.mxu0 0
        %1040 = vmatpush1.bf16.msra.mxu0 0
        %1041 = vmatprep.mubr.bf16.mxu0 0
        %1042 = vmatmul.mubr.bf16.gmra.mrb[0].mxu0 %v1007
        %v1043 = vpop.f32.mrb[0].mxu0
        %v1044 = vadd.f32 0.0, %v1043
        %v1045 = vpop.f32.mrb[0].mxu0
        %v1046 = vpop.f32.mrb[0].mxu0
        %v1047 = vpop.f32.mrb[0].mxu0
        %1048 = vdwg.mxu0
        %v1057 = vunpack.c.l.b16 %v389
        %v1058 = vunpack.c.l.b16 %v390
        %v1059 = vunpack.c.l.b16 %v391
        %v1060 = vunpack.c.l.b16 %v392
        %v1061 = vunpack.c.l.b16 %v393
        %v1062 = vunpack.c.l.b16 %v394
        %v1063 = vunpack.c.l.b16 %v395
        %v1064 = vunpack.c.l.b16 %v396
        %v1065 = vpack.c.b16 %v1058, %v1057
        %v1066 = vpack.c.b16 %v1060, %v1059
        %v1067 = vpack.c.b16 %v1062, %v1061
        %v1068 = vpack.c.b16 %v1064, %v1063
        %v1074 = vsel %vm469, %v310, 0
        %1076 = vmatprep.subr.bf16.mxu0 0
        %1077 = vmatpush1.bf16.msra.mxu0 %v1065
        %1078 = vmatprep.subr.bf16.mxu0 0
        %1079 = vmatpush1.bf16.msra.mxu0 %v1066
        %1080 = vmatprep.subr.bf16.mxu0 0
        %1081 = vmatpush1.bf16.msra.mxu0 %v1067
        %1082 = vmatprep.subr.bf16.mxu0 0
        %1083 = vmatpush1.bf16.msra.mxu0 %v1068
        %1084 = vmatprep.subr.bf16.mxu0 0
        %1085 = vmatpush1.bf16.msra.mxu0 0
        %1086 = vmatprep.subr.bf16.mxu0 0
        %1087 = vmatpush1.bf16.msra.mxu0 0
        %1088 = vmatprep.subr.bf16.mxu0 0
        %1089 = vmatpush1.bf16.msra.mxu0 0
        %1090 = vmatprep.subr.bf16.mxu0 0
        %1091 = vmatpush1.bf16.msra.mxu0 0
        %1092 = vmatprep.subr.bf16.mxu0 0
        %1093 = vmatpush1.bf16.msra.mxu0 0
        %1094 = vmatprep.subr.bf16.mxu0 0
        %1095 = vmatpush1.bf16.msra.mxu0 0
        %1096 = vmatprep.subr.bf16.mxu0 0
        %1097 = vmatpush1.bf16.msra.mxu0 0
        %1098 = vmatprep.subr.bf16.mxu0 0
        %1099 = vmatpush1.bf16.msra.mxu0 0
        %1100 = vmatprep.subr.bf16.mxu0 0
        %1101 = vmatpush1.bf16.msra.mxu0 0
        %1102 = vmatprep.subr.bf16.mxu0 0
        %1103 = vmatpush1.bf16.msra.mxu0 0
        %1104 = vmatprep.subr.bf16.mxu0 0
        %1105 = vmatpush1.bf16.msra.mxu0 0
        %1106 = vmatprep.subr.bf16.mxu0 0
        %1107 = vmatpush1.bf16.msra.mxu0 0
        %1108 = vmatprep.mubr.bf16.mxu0 0
        %1109 = vmatmul.mubr.bf16.gmra.mrb[0].mxu0 %v1074
        %v1110 = vpop.f32.mrb[0].mxu0
        %v1111 = vadd.f32 0.0, %v1110
        %v1112 = vpop.f32.mrb[0].mxu0
        %v1113 = vpop.f32.mrb[0].mxu0
        %v1114 = vpop.f32.mrb[0].mxu0
        %1115 = vdwg.mxu0
        %v1124 = vunpack.c.l.b16 %v397
        %v1125 = vunpack.c.l.b16 %v398
        %v1126 = vunpack.c.l.b16 %v399
        %v1127 = vunpack.c.l.b16 %v400
        %v1128 = vunpack.c.l.b16 %v401
        %v1129 = vunpack.c.l.b16 %v402
        %v1130 = vunpack.c.l.b16 %v403
        %v1131 = vunpack.c.l.b16 %v404
        %v1132 = vpack.c.b16 %v1125, %v1124
        %v1133 = vpack.c.b16 %v1127, %v1126
        %v1134 = vpack.c.b16 %v1129, %v1128
        %v1135 = vpack.c.b16 %v1131, %v1130
        %v1141 = vsel %vm469, %v311, 0
        %1143 = vmatprep.subr.bf16.mxu0 0
        %1144 = vmatpush1.bf16.msra.mxu0 %v1132
        %1145 = vmatprep.subr.bf16.mxu0 0
        %1146 = vmatpush1.bf16.msra.mxu0 %v1133
        %1147 = vmatprep.subr.bf16.mxu0 0
        %1148 = vmatpush1.bf16.msra.mxu0 %v1134
        %1149 = vmatprep.subr.bf16.mxu0 0
        %1150 = vmatpush1.bf16.msra.mxu0 %v1135
        %1151 = vmatprep.subr.bf16.mxu0 0
        %1152 = vmatpush1.bf16.msra.mxu0 0
        %1153 = vmatprep.subr.bf16.mxu0 0
        %1154 = vmatpush1.bf16.msra.mxu0 0
        %1155 = vmatprep.subr.bf16.mxu0 0
        %1156 = vmatpush1.bf16.msra.mxu0 0
        %1157 = vmatprep.subr.bf16.mxu0 0
        %1158 = vmatpush1.bf16.msra.mxu0 0
        %1159 = vmatprep.subr.bf16.mxu0 0
        %1160 = vmatpush1.bf16.msra.mxu0 0
        %1161 = vmatprep.subr.bf16.mxu0 0
        %1162 = vmatpush1.bf16.msra.mxu0 0
        %1163 = vmatprep.subr.bf16.mxu0 0
        %1164 = vmatpush1.bf16.msra.mxu0 0
        %1165 = vmatprep.subr.bf16.mxu0 0
        %1166 = vmatpush1.bf16.msra.mxu0 0
        %1167 = vmatprep.subr.bf16.mxu0 0
        %1168 = vmatpush1.bf16.msra.mxu0 0
        %1169 = vmatprep.subr.bf16.mxu0 0
        %1170 = vmatpush1.bf16.msra.mxu0 0
        %1171 = vmatprep.subr.bf16.mxu0 0
        %1172 = vmatpush1.bf16.msra.mxu0 0
        %1173 = vmatprep.subr.bf16.mxu0 0
        %1174 = vmatpush1.bf16.msra.mxu0 0
        %1175 = vmatprep.mubr.bf16.mxu0 0
        %1176 = vmatmul.mubr.bf16.gmra.mrb[0].mxu0 %v1141
        %v1177 = vpop.f32.mrb[0].mxu0
        %v1178 = vadd.f32 0.0, %v1177
        %v1179 = vpop.f32.mrb[0].mxu0
        %v1180 = vpop.f32.mrb[0].mxu0
        %v1181 = vpop.f32.mrb[0].mxu0
        %1182 = vdwg.mxu0
        %v1191 = vunpack.c.l.b16 %v405
        %v1192 = vunpack.c.l.b16 %v406
        %v1193 = vunpack.c.l.b16 %v407
        %v1194 = vunpack.c.l.b16 %v408
        %v1195 = vunpack.c.l.b16 %v409
        %v1196 = vunpack.c.l.b16 %v410
        %v1197 = vunpack.c.l.b16 %v411
        %v1198 = vunpack.c.l.b16 %v412
        %v1199 = vpack.c.b16 %v1192, %v1191
        %v1200 = vpack.c.b16 %v1194, %v1193
        %v1201 = vpack.c.b16 %v1196, %v1195
        %v1202 = vpack.c.b16 %v1198, %v1197
        %v1208 = vsel %vm469, %v312, 0
        %1210 = vmatprep.subr.bf16.mxu0 0
        %1211 = vmatpush1.bf16.msra.mxu0 %v1199
        %1212 = vmatprep.subr.bf16.mxu0 0
        %1213 = vmatpush1.bf16.msra.mxu0 %v1200
        %1214 = vmatprep.subr.bf16.mxu0 0
        %1215 = vmatpush1.bf16.msra.mxu0 %v1201
        %1216 = vmatprep.subr.bf16.mxu0 0
        %1217 = vmatpush1.bf16.msra.mxu0 %v1202
        %1218 = vmatprep.subr.bf16.mxu0 0
        %1219 = vmatpush1.bf16.msra.mxu0 0
        %1220 = vmatprep.subr.bf16.mxu0 0
        %1221 = vmatpush1.bf16.msra.mxu0 0
        %1222 = vmatprep.subr.bf16.mxu0 0
        %1223 = vmatpush1.bf16.msra.mxu0 0
        %1224 = vmatprep.subr.bf16.mxu0 0
        %1225 = vmatpush1.bf16.msra.mxu0 0
        %1226 = vmatprep.subr.bf16.mxu0 0
        %1227 = vmatpush1.bf16.msra.mxu0 0
        %1228 = vmatprep.subr.bf16.mxu0 0
        %1229 = vmatpush1.bf16.msra.mxu0 0
        %1230 = vmatprep.subr.bf16.mxu0 0
        %1231 = vmatpush1.bf16.msra.mxu0 0
        %1232 = vmatprep.subr.bf16.mxu0 0
        %1233 = vmatpush1.bf16.msra.mxu0 0
        %1234 = vmatprep.subr.bf16.mxu0 0
        %1235 = vmatpush1.bf16.msra.mxu0 0
        %1236 = vmatprep.subr.bf16.mxu0 0
        %1237 = vmatpush1.bf16.msra.mxu0 0
        %1238 = vmatprep.subr.bf16.mxu0 0
        %1239 = vmatpush1.bf16.msra.mxu0 0
        %1240 = vmatprep.subr.bf16.mxu0 0
        %1241 = vmatpush1.bf16.msra.mxu0 0
        %1242 = vmatprep.mubr.bf16.mxu0 0
        %1243 = vmatmul.mubr.bf16.gmra.mrb[0].mxu0 %v1208
        %v1244 = vpop.f32.mrb[0].mxu0
        %v1245 = vadd.f32 0.0, %v1244
        %v1246 = vpop.f32.mrb[0].mxu0
        %v1247 = vpop.f32.mrb[0].mxu0
        %v1248 = vpop.f32.mrb[0].mxu0
        %1249 = vdwg.mxu0
        %v1258 = vunpack.c.l.b16 %v413
        %v1259 = vunpack.c.l.b16 %v414
        %v1260 = vunpack.c.l.b16 %v415
        %v1261 = vunpack.c.l.b16 %v416
        %v1262 = vunpack.c.l.b16 %v417
        %v1263 = vunpack.c.l.b16 %v418
        %v1264 = vunpack.c.l.b16 %v419
        %v1265 = vunpack.c.l.b16 %v420
        %v1266 = vpack.c.b16 %v1259, %v1258
        %v1267 = vpack.c.b16 %v1261, %v1260
        %v1268 = vpack.c.b16 %v1263, %v1262
        %v1269 = vpack.c.b16 %v1265, %v1264
        %v1275 = vsel %vm469, %v313, 0
        %1277 = vmatprep.subr.bf16.mxu0 0
        %1278 = vmatpush1.bf16.msra.mxu0 %v1266
        %1279 = vmatprep.subr.bf16.mxu0 0
        %1280 = vmatpush1.bf16.msra.mxu0 %v1267
        %1281 = vmatprep.subr.bf16.mxu0 0
        %1282 = vmatpush1.bf16.msra.mxu0 %v1268
        %1283 = vmatprep.subr.bf16.mxu0 0
        %1284 = vmatpush1.bf16.msra.mxu0 %v1269
        %1285 = vmatprep.subr.bf16.mxu0 0
        %1286 = vmatpush1.bf16.msra.mxu0 0
        %1287 = vmatprep.subr.bf16.mxu0 0
        %1288 = vmatpush1.bf16.msra.mxu0 0
        %1289 = vmatprep.subr.bf16.mxu0 0
        %1290 = vmatpush1.bf16.msra.mxu0 0
        %1291 = vmatprep.subr.bf16.mxu0 0
        %1292 = vmatpush1.bf16.msra.mxu0 0
        %1293 = vmatprep.subr.bf16.mxu0 0
        %1294 = vmatpush1.bf16.msra.mxu0 0
        %1295 = vmatprep.subr.bf16.mxu0 0
        %1296 = vmatpush1.bf16.msra.mxu0 0
        %1297 = vmatprep.subr.bf16.mxu0 0
        %1298 = vmatpush1.bf16.msra.mxu0 0
        %1299 = vmatprep.subr.bf16.mxu0 0
        %1300 = vmatpush1.bf16.msra.mxu0 0
        %1301 = vmatprep.subr.bf16.mxu0 0
        %1302 = vmatpush1.bf16.msra.mxu0 0
        %1303 = vmatprep.subr.bf16.mxu0 0
        %1304 = vmatpush1.bf16.msra.mxu0 0
        %1305 = vmatprep.subr.bf16.mxu0 0
        %1306 = vmatpush1.bf16.msra.mxu0 0
        %1307 = vmatprep.subr.bf16.mxu0 0
        %1308 = vmatpush1.bf16.msra.mxu0 0
        %1309 = vmatprep.mubr.bf16.mxu0 0
        %1310 = vmatmul.mubr.bf16.gmra.mrb[0].mxu0 %v1275
        %v1311 = vpop.f32.mrb[0].mxu0
        %v1312 = vadd.f32 0.0, %v1311
        %v1313 = vpop.f32.mrb[0].mxu0
        %v1314 = vpop.f32.mrb[0].mxu0
        %v1315 = vpop.f32.mrb[0].mxu0
        %1316 = vdwg.mxu0
        %v1325 = vunpack.c.l.b16 %v421
        %v1326 = vunpack.c.l.b16 %v422
        %v1327 = vunpack.c.l.b16 %v423
        %v1328 = vunpack.c.l.b16 %v424
        %v1329 = vunpack.c.l.b16 %v425
        %v1330 = vunpack.c.l.b16 %v426
        %v1331 = vunpack.c.l.b16 %v427
        %v1332 = vunpack.c.l.b16 %v428
        %v1333 = vpack.c.b16 %v1326, %v1325
        %v1334 = vpack.c.b16 %v1328, %v1327
        %v1335 = vpack.c.b16 %v1330, %v1329
        %v1336 = vpack.c.b16 %v1332, %v1331
        %v1342 = vsel %vm469, %v314, 0
        %1344 = vmatprep.subr.bf16.mxu0 0
        %1345 = vmatpush1.bf16.msra.mxu0 %v1333
        %1346 = vmatprep.subr.bf16.mxu0 0
        %1347 = vmatpush1.bf16.msra.mxu0 %v1334
        %1348 = vmatprep.subr.bf16.mxu0 0
        %1349 = vmatpush1.bf16.msra.mxu0 %v1335
        %1350 = vmatprep.subr.bf16.mxu0 0
        %1351 = vmatpush1.bf16.msra.mxu0 %v1336
        %1352 = vmatprep.subr.bf16.mxu0 0
        %1353 = vmatpush1.bf16.msra.mxu0 0
        %1354 = vmatprep.subr.bf16.mxu0 0
        %1355 = vmatpush1.bf16.msra.mxu0 0
        %1356 = vmatprep.subr.bf16.mxu0 0
        %1357 = vmatpush1.bf16.msra.mxu0 0
        %1358 = vmatprep.subr.bf16.mxu0 0
        %1359 = vmatpush1.bf16.msra.mxu0 0
        %1360 = vmatprep.subr.bf16.mxu0 0
        %1361 = vmatpush1.bf16.msra.mxu0 0
        %1362 = vmatprep.subr.bf16.mxu0 0
        %1363 = vmatpush1.bf16.msra.mxu0 0
        %1364 = vmatprep.subr.bf16.mxu0 0
        %1365 = vmatpush1.bf16.msra.mxu0 0
        %1366 = vmatprep.subr.bf16.mxu0 0
        %1367 = vmatpush1.bf16.msra.mxu0 0
        %1368 = vmatprep.subr.bf16.mxu0 0
        %1369 = vmatpush1.bf16.msra.mxu0 0
        %1370 = vmatprep.subr.bf16.mxu0 0
        %1371 = vmatpush1.bf16.msra.mxu0 0
        %1372 = vmatprep.subr.bf16.mxu0 0
        %1373 = vmatpush1.bf16.msra.mxu0 0
        %1374 = vmatprep.subr.bf16.mxu0 0
        %1375 = vmatpush1.bf16.msra.mxu0 0
        %1376 = vmatprep.mubr.bf16.mxu0 0
        %1377 = vmatmul.mubr.bf16.gmra.mrb[0].mxu0 %v1342
        %v1378 = vpop.f32.mrb[0].mxu0
        %v1379 = vadd.f32 0.0, %v1378
        %v1380 = vpop.f32.mrb[0].mxu0
        %v1381 = vpop.f32.mrb[0].mxu0
        %v1382 = vpop.f32.mrb[0].mxu0
        %1383 = vdwg.mxu0
        %v1392 = vunpack.c.l.b16 %v429
        %v1393 = vunpack.c.l.b16 %v430
        %v1394 = vunpack.c.l.b16 %v431
        %v1395 = vunpack.c.l.b16 %v432
        %v1396 = vunpack.c.l.b16 %v433
        %v1397 = vunpack.c.l.b16 %v434
        %v1398 = vunpack.c.l.b16 %v435
        %v1399 = vunpack.c.l.b16 %v436
        %v1400 = vpack.c.b16 %v1393, %v1392
        %v1401 = vpack.c.b16 %v1395, %v1394
        %v1402 = vpack.c.b16 %v1397, %v1396
        %v1403 = vpack.c.b16 %v1399, %v1398
        %v1409 = vsel %vm469, %v315, 0
        %1411 = vmatprep.subr.bf16.mxu0 0
        %1412 = vmatpush1.bf16.msra.mxu0 %v1400
        %1413 = vmatprep.subr.bf16.mxu0 0
        %1414 = vmatpush1.bf16.msra.mxu0 %v1401
        %1415 = vmatprep.subr.bf16.mxu0 0
        %1416 = vmatpush1.bf16.msra.mxu0 %v1402
        %1417 = vmatprep.subr.bf16.mxu0 0
        %1418 = vmatpush1.bf16.msra.mxu0 %v1403
        %1419 = vmatprep.subr.bf16.mxu0 0
        %1420 = vmatpush1.bf16.msra.mxu0 0
        %1421 = vmatprep.subr.bf16.mxu0 0
        %1422 = vmatpush1.bf16.msra.mxu0 0
        %1423 = vmatprep.subr.bf16.mxu0 0
        %1424 = vmatpush1.bf16.msra.mxu0 0
        %1425 = vmatprep.subr.bf16.mxu0 0
        %1426 = vmatpush1.bf16.msra.mxu0 0
        %1427 = vmatprep.subr.bf16.mxu0 0
        %1428 = vmatpush1.bf16.msra.mxu0 0
        %1429 = vmatprep.subr.bf16.mxu0 0
        %1430 = vmatpush1.bf16.msra.mxu0 0
        %1431 = vmatprep.subr.bf16.mxu0 0
        %1432 = vmatpush1.bf16.msra.mxu0 0
        %1433 = vmatprep.subr.bf16.mxu0 0
        %1434 = vmatpush1.bf16.msra.mxu0 0
        %1435 = vmatprep.subr.bf16.mxu0 0
        %1436 = vmatpush1.bf16.msra.mxu0 0
        %1437 = vmatprep.subr.bf16.mxu0 0
        %1438 = vmatpush1.bf16.msra.mxu0 0
        %1439 = vmatprep.subr.bf16.mxu0 0
        %1440 = vmatpush1.bf16.msra.mxu0 0
        %1441 = vmatprep.subr.bf16.mxu0 0
        %1442 = vmatpush1.bf16.msra.mxu0 0
        %1443 = vmatprep.mubr.bf16.mxu0 0
        %1444 = vmatmul.mubr.bf16.gmra.mrb[0].mxu0 %v1409
        %v1445 = vpop.f32.mrb[0].mxu0
        %v1446 = vadd.f32 0.0, %v1445
        %v1447 = vpop.f32.mrb[0].mxu0
        %v1448 = vpop.f32.mrb[0].mxu0
        %v1449 = vpop.f32.mrb[0].mxu0
        %1450 = vdwg.mxu0
        %v1459 = vunpack.c.l.b16 %v437
        %v1460 = vunpack.c.l.b16 %v438
        %v1461 = vunpack.c.l.b16 %v439
        %v1462 = vunpack.c.l.b16 %v440
        %v1463 = vunpack.c.l.b16 %v441
        %v1464 = vunpack.c.l.b16 %v442
        %v1465 = vunpack.c.l.b16 %v443
        %v1466 = vunpack.c.l.b16 %v444
        %v1467 = vpack.c.b16 %v1460, %v1459
        %v1468 = vpack.c.b16 %v1462, %v1461
        %v1469 = vpack.c.b16 %v1464, %v1463
        %v1470 = vpack.c.b16 %v1466, %v1465
        %v1476 = vsel %vm469, %v316, 0
        %1478 = vmatprep.subr.bf16.mxu0 0
        %1479 = vmatpush1.bf16.msra.mxu0 %v1467
        %1480 = vmatprep.subr.bf16.mxu0 0
        %1481 = vmatpush1.bf16.msra.mxu0 %v1468
        %1482 = vmatprep.subr.bf16.mxu0 0
        %1483 = vmatpush1.bf16.msra.mxu0 %v1469
        %1484 = vmatprep.subr.bf16.mxu0 0
        %1485 = vmatpush1.bf16.msra.mxu0 %v1470
        %1486 = vmatprep.subr.bf16.mxu0 0
        %1487 = vmatpush1.bf16.msra.mxu0 0
        %1488 = vmatprep.subr.bf16.mxu0 0
        %1489 = vmatpush1.bf16.msra.mxu0 0
        %1490 = vmatprep.subr.bf16.mxu0 0
        %1491 = vmatpush1.bf16.msra.mxu0 0
        %1492 = vmatprep.subr.bf16.mxu0 0
        %1493 = vmatpush1.bf16.msra.mxu0 0
        %1494 = vmatprep.subr.bf16.mxu0 0
        %1495 = vmatpush1.bf16.msra.mxu0 0
        %1496 = vmatprep.subr.bf16.mxu0 0
        %1497 = vmatpush1.bf16.msra.mxu0 0
        %1498 = vmatprep.subr.bf16.mxu0 0
        %1499 = vmatpush1.bf16.msra.mxu0 0
        %1500 = vmatprep.subr.bf16.mxu0 0
        %1501 = vmatpush1.bf16.msra.mxu0 0
        %1502 = vmatprep.subr.bf16.mxu0 0
        %1503 = vmatpush1.bf16.msra.mxu0 0
        %1504 = vmatprep.subr.bf16.mxu0 0
        %1505 = vmatpush1.bf16.msra.mxu0 0
        %1506 = vmatprep.subr.bf16.mxu0 0
        %1507 = vmatpush1.bf16.msra.mxu0 0
        %1508 = vmatprep.subr.bf16.mxu0 0
        %1509 = vmatpush1.bf16.msra.mxu0 0
        %1510 = vmatprep.mubr.bf16.mxu0 0
        %1511 = vmatmul.mubr.bf16.gmra.mrb[0].mxu0 %v1476
        %v1512 = vpop.f32.mrb[0].mxu0
        %v1513 = vadd.f32 0.0, %v1512
        %v1514 = vpop.f32.mrb[0].mxu0
        %v1515 = vpop.f32.mrb[0].mxu0
        %v1516 = vpop.f32.mrb[0].mxu0
        %1517 = vdwg.mxu0
        %v1518 = vld [vmem:[#allocation7] sm:$0xf]
        %v1519 = vld [vmem:[#allocation7 + $0x4] sm:$0xf]
        %v1520 = vld [vmem:[#allocation7 + $0x8] sm:$0xf]
        %v1521 = vld [vmem:[#allocation7 + $0xc] sm:$0xf]
        %v1522 = vld [vmem:[#allocation7 + $0x10] sm:$0xf]
        %v1523 = vld [vmem:[#allocation7 + $0x14] sm:$0xf]
        %v1524 = vld [vmem:[#allocation7 + $0x18] sm:$0xf]
        %v1525 = vld [vmem:[#allocation7 + $0x1c] sm:$0xf]
        %v1526 = vld [vmem:[#allocation7 + $0x20] sm:$0xf]
        %v1527 = vld [vmem:[#allocation7 + $0x24] sm:$0xf]
        %v1528 = vld [vmem:[#allocation7 + $0x28] sm:$0xf]
        %v1529 = vld [vmem:[#allocation7 + $0x2c] sm:$0xf]
        %v1530 = vld [vmem:[#allocation7 + $0x30] sm:$0xf]
        %v1531 = vld [vmem:[#allocation7 + $0x34] sm:$0xf]
        %v1532 = vld [vmem:[#allocation7 + $0x38] sm:$0xf]
        %v1533 = vld [vmem:[#allocation7 + $0x3c] sm:$0xf]
        %v1534 = vld [vmem:[#allocation7 + $0x40] sm:$0xf]
        %v1535 = vld [vmem:[#allocation7 + $0x44] sm:$0xf]
        %v1536 = vld [vmem:[#allocation7 + $0x48] sm:$0xf]
        %v1537 = vld [vmem:[#allocation7 + $0x4c] sm:$0xf]
        %v1538 = vld [vmem:[#allocation7 + $0x50] sm:$0xf]
        %v1539 = vld [vmem:[#allocation7 + $0x54] sm:$0xf]
        %v1540 = vld [vmem:[#allocation7 + $0x58] sm:$0xf]
        %v1541 = vld [vmem:[#allocation7 + $0x5c] sm:$0xf]
        %v1542 = vld [vmem:[#allocation7 + $0x60] sm:$0xf]
        %v1543 = vld [vmem:[#allocation7 + $0x64] sm:$0xf]
        %v1544 = vld [vmem:[#allocation7 + $0x68] sm:$0xf]
        %v1545 = vld [vmem:[#allocation7 + $0x6c] sm:$0xf]
        %v1546 = vld [vmem:[#allocation7 + $0x70] sm:$0xf]
        %v1547 = vld [vmem:[#allocation7 + $0x74] sm:$0xf]
        %v1548 = vld [vmem:[#allocation7 + $0x78] sm:$0xf]
        %v1549 = vld [vmem:[#allocation7 + $0x7c] sm:$0xf]
        %v1550 = vld [vmem:[#allocation7 + $0x80] sm:$0xf]
        %v1551 = vld [vmem:[#allocation7 + $0x84] sm:$0xf]
        %v1552 = vld [vmem:[#allocation7 + $0x88] sm:$0xf]
        %v1553 = vld [vmem:[#allocation7 + $0x8c] sm:$0xf]
        %v1554 = vld [vmem:[#allocation7 + $0x90] sm:$0xf]
        %v1555 = vld [vmem:[#allocation7 + $0x94] sm:$0xf]
        %v1556 = vld [vmem:[#allocation7 + $0x98] sm:$0xf]
        %v1557 = vld [vmem:[#allocation7 + $0x9c] sm:$0xf]
        %v1558 = vld [vmem:[#allocation7 + $0xa0] sm:$0xf]
        %v1559 = vld [vmem:[#allocation7 + $0xa4] sm:$0xf]
        %v1560 = vld [vmem:[#allocation7 + $0xa8] sm:$0xf]
        %v1561 = vld [vmem:[#allocation7 + $0xac] sm:$0xf]
        %v1562 = vld [vmem:[#allocation7 + $0xb0] sm:$0xf]
        %v1563 = vld [vmem:[#allocation7 + $0xb4] sm:$0xf]
        %v1564 = vld [vmem:[#allocation7 + $0xb8] sm:$0xf]
        %v1565 = vld [vmem:[#allocation7 + $0xbc] sm:$0xf]
        %v1566 = vld [vmem:[#allocation7 + $0xc0] sm:$0xf]
        %v1567 = vld [vmem:[#allocation7 + $0xc4] sm:$0xf]
        %v1568 = vld [vmem:[#allocation7 + $0xc8] sm:$0xf]
        %v1569 = vld [vmem:[#allocation7 + $0xcc] sm:$0xf]
        %v1570 = vld [vmem:[#allocation7 + $0xd0] sm:$0xf]
        %v1571 = vld [vmem:[#allocation7 + $0xd4] sm:$0xf]
        %v1572 = vld [vmem:[#allocation7 + $0xd8] sm:$0xf]
        %v1573 = vld [vmem:[#allocation7 + $0xdc] sm:$0xf]
        %v1574 = vld [vmem:[#allocation7 + $0xe0] sm:$0xf]
        %v1575 = vld [vmem:[#allocation7 + $0xe4] sm:$0xf]
        %v1576 = vld [vmem:[#allocation7 + $0xe8] sm:$0xf]
        %v1577 = vld [vmem:[#allocation7 + $0xec] sm:$0xf]
        %v1578 = vld [vmem:[#allocation7 + $0xf0] sm:$0xf]
        %v1579 = vld [vmem:[#allocation7 + $0xf4] sm:$0xf]
        %v1580 = vld [vmem:[#allocation7 + $0xf8] sm:$0xf]
        %v1581 = vld [vmem:[#allocation7 + $0xfc] sm:$0xf]
        %v1582 = vld [vmem:[#allocation7 + $0x100] sm:$0xf]
        %v1583 = vld [vmem:[#allocation7 + $0x104] sm:$0xf]
        %v1584 = vld [vmem:[#allocation7 + $0x108] sm:$0xf]
        %v1585 = vld [vmem:[#allocation7 + $0x10c] sm:$0xf]
        %v1586 = vld [vmem:[#allocation7 + $0x110] sm:$0xf]
        %v1587 = vld [vmem:[#allocation7 + $0x114] sm:$0xf]
        %v1588 = vld [vmem:[#allocation7 + $0x118] sm:$0xf]
        %v1589 = vld [vmem:[#allocation7 + $0x11c] sm:$0xf]
        %v1590 = vld [vmem:[#allocation7 + $0x120] sm:$0xf]
        %v1591 = vld [vmem:[#allocation7 + $0x124] sm:$0xf]
        %v1592 = vld [vmem:[#allocation7 + $0x128] sm:$0xf]
        %v1593 = vld [vmem:[#allocation7 + $0x12c] sm:$0xf]
        %v1594 = vld [vmem:[#allocation7 + $0x130] sm:$0xf]
        %v1595 = vld [vmem:[#allocation7 + $0x134] sm:$0xf]
        %v1596 = vld [vmem:[#allocation7 + $0x138] sm:$0xf]
        %v1597 = vld [vmem:[#allocation7 + $0x13c] sm:$0xf]
        %v1598 = vld [vmem:[#allocation7 + $0x140] sm:$0xf]
        %v1599 = vld [vmem:[#allocation7 + $0x144] sm:$0xf]
        %v1600 = vld [vmem:[#allocation7 + $0x148] sm:$0xf]
        %v1601 = vld [vmem:[#allocation7 + $0x14c] sm:$0xf]
        %v1602 = vld [vmem:[#allocation7 + $0x150] sm:$0xf]
        %v1603 = vld [vmem:[#allocation7 + $0x154] sm:$0xf]
        %v1604 = vld [vmem:[#allocation7 + $0x158] sm:$0xf]
        %v1605 = vld [vmem:[#allocation7 + $0x15c] sm:$0xf]
        %v1606 = vld [vmem:[#allocation7 + $0x160] sm:$0xf]
        %v1607 = vld [vmem:[#allocation7 + $0x164] sm:$0xf]
        %v1608 = vld [vmem:[#allocation7 + $0x168] sm:$0xf]
        %v1609 = vld [vmem:[#allocation7 + $0x16c] sm:$0xf]
        %v1610 = vld [vmem:[#allocation7 + $0x170] sm:$0xf]
        %v1611 = vld [vmem:[#allocation7 + $0x174] sm:$0xf]
        %v1612 = vld [vmem:[#allocation7 + $0x178] sm:$0xf]
        %v1613 = vld [vmem:[#allocation7 + $0x17c] sm:$0xf]
        %v1614 = vld [vmem:[#allocation7 + $0x180] sm:$0xf]
        %v1615 = vld [vmem:[#allocation7 + $0x184] sm:$0xf]
        %v1616 = vld [vmem:[#allocation7 + $0x188] sm:$0xf]
        %v1617 = vld [vmem:[#allocation7 + $0x18c] sm:$0xf]
        %v1618 = vld [vmem:[#allocation7 + $0x190] sm:$0xf]
        %v1619 = vld [vmem:[#allocation7 + $0x194] sm:$0xf]
        %v1620 = vld [vmem:[#allocation7 + $0x198] sm:$0xf]
        %v1621 = vld [vmem:[#allocation7 + $0x19c] sm:$0xf]
        %v1622 = vld [vmem:[#allocation7 + $0x1a0] sm:$0xf]
        %v1623 = vld [vmem:[#allocation7 + $0x1a4] sm:$0xf]
        %v1624 = vld [vmem:[#allocation7 + $0x1a8] sm:$0xf]
        %v1625 = vld [vmem:[#allocation7 + $0x1ac] sm:$0xf]
        %v1626 = vld [vmem:[#allocation7 + $0x1b0] sm:$0xf]
        %v1627 = vld [vmem:[#allocation7 + $0x1b4] sm:$0xf]
        %v1628 = vld [vmem:[#allocation7 + $0x1b8] sm:$0xf]
        %v1629 = vld [vmem:[#allocation7 + $0x1bc] sm:$0xf]
        %v1630 = vld [vmem:[#allocation7 + $0x1c0] sm:$0xf]
        %v1631 = vld [vmem:[#allocation7 + $0x1c4] sm:$0xf]
        %v1632 = vld [vmem:[#allocation7 + $0x1c8] sm:$0xf]
        %v1633 = vld [vmem:[#allocation7 + $0x1cc] sm:$0xf]
        %v1634 = vld [vmem:[#allocation7 + $0x1d0] sm:$0xf]
        %v1635 = vld [vmem:[#allocation7 + $0x1d4] sm:$0xf]
        %v1636 = vld [vmem:[#allocation7 + $0x1d8] sm:$0xf]
        %v1637 = vld [vmem:[#allocation7 + $0x1dc] sm:$0xf]
        %v1638 = vld [vmem:[#allocation7 + $0x1e0] sm:$0xf]
        %v1639 = vld [vmem:[#allocation7 + $0x1e4] sm:$0xf]
        %v1640 = vld [vmem:[#allocation7 + $0x1e8] sm:$0xf]
        %v1641 = vld [vmem:[#allocation7 + $0x1ec] sm:$0xf]
        %v1642 = vld [vmem:[#allocation7 + $0x1f0] sm:$0xf]
        %v1643 = vld [vmem:[#allocation7 + $0x1f4] sm:$0xf]
        %v1644 = vld [vmem:[#allocation7 + $0x1f8] sm:$0xf]
        %v1645 = vld [vmem:[#allocation7 + $0x1fc] sm:$0xf]
        %v1654 = vunpack.c.l.b16 %v1518
        %v1655 = vunpack.c.l.b16 %v1519
        %v1656 = vunpack.c.l.b16 %v1520
        %v1657 = vunpack.c.l.b16 %v1521
        %v1658 = vunpack.c.l.b16 %v1522
        %v1659 = vunpack.c.l.b16 %v1523
        %v1660 = vunpack.c.l.b16 %v1524
        %v1661 = vunpack.c.l.b16 %v1525
        %v1662 = vpack.c.b16 %v1655, %v1654
        %v1663 = vpack.c.b16 %v1657, %v1656
        %v1664 = vpack.c.b16 %v1659, %v1658
        %v1665 = vpack.c.b16 %v1661, %v1660
        %1670 = vmatprep.subr.bf16.mxu0 0
        %1671 = vmatpush1.bf16.msra.mxu0 %v1662
        %1672 = vmatprep.subr.bf16.mxu0 0
        %1673 = vmatpush1.bf16.msra.mxu0 %v1663
        %1674 = vmatprep.subr.bf16.mxu0 0
        %1675 = vmatpush1.bf16.msra.mxu0 %v1664
        %1676 = vmatprep.subr.bf16.mxu0 0
        %1677 = vmatpush1.bf16.msra.mxu0 %v1665
        %1678 = vmatprep.subr.bf16.mxu0 0
        %1679 = vmatpush1.bf16.msra.mxu0 0
        %1680 = vmatprep.subr.bf16.mxu0 0
        %1681 = vmatpush1.bf16.msra.mxu0 0
        %1682 = vmatprep.subr.bf16.mxu0 0
        %1683 = vmatpush1.bf16.msra.mxu0 0
        %1684 = vmatprep.subr.bf16.mxu0 0
        %1685 = vmatpush1.bf16.msra.mxu0 0
        %1686 = vmatprep.subr.bf16.mxu0 0
        %1687 = vmatpush1.bf16.msra.mxu0 0
        %1688 = vmatprep.subr.bf16.mxu0 0
        %1689 = vmatpush1.bf16.msra.mxu0 0
        %1690 = vmatprep.subr.bf16.mxu0 0
        %1691 = vmatpush1.bf16.msra.mxu0 0
        %1692 = vmatprep.subr.bf16.mxu0 0
        %1693 = vmatpush1.bf16.msra.mxu0 0
        %1694 = vmatprep.subr.bf16.mxu0 0
        %1695 = vmatpush1.bf16.msra.mxu0 0
        %1696 = vmatprep.subr.bf16.mxu0 0
        %1697 = vmatpush1.bf16.msra.mxu0 0
        %1698 = vmatprep.subr.bf16.mxu0 0
        %1699 = vmatpush1.bf16.msra.mxu0 0
        %1700 = vmatprep.subr.bf16.mxu0 0
        %1701 = vmatpush1.bf16.msra.mxu0 0
        %1702 = vmatprep.mubr.bf16.mxu0 0
        %1703 = vmatmul.mubr.bf16.gmra.mrb[0].mxu0 %v471
        %v1704 = vpop.f32.mrb[0].mxu0
        %v1705 = vadd.f32 0.0, %v1704
        %v1706 = vpop.f32.mrb[0].mxu0
        %v1707 = vpop.f32.mrb[0].mxu0
        %v1708 = vpop.f32.mrb[0].mxu0
        %1709 = vdwg.mxu0
        %v1718 = vunpack.c.l.b16 %v1526
        %v1719 = vunpack.c.l.b16 %v1527
        %v1720 = vunpack.c.l.b16 %v1528
        %v1721 = vunpack.c.l.b16 %v1529
        %v1722 = vunpack.c.l.b16 %v1530
        %v1723 = vunpack.c.l.b16 %v1531
        %v1724 = vunpack.c.l.b16 %v1532
        %v1725 = vunpack.c.l.b16 %v1533
        %v1726 = vpack.c.b16 %v1719, %v1718
        %v1727 = vpack.c.b16 %v1721, %v1720
        %v1728 = vpack.c.b16 %v1723, %v1722
        %v1729 = vpack.c.b16 %v1725, %v1724
        %1734 = vmatprep.subr.bf16.mxu0 0
        %1735 = vmatpush1.bf16.msra.mxu0 %v1726
        %1736 = vmatprep.subr.bf16.mxu0 0
        %1737 = vmatpush1.bf16.msra.mxu0 %v1727
        %1738 = vmatprep.subr.bf16.mxu0 0
        %1739 = vmatpush1.bf16.msra.mxu0 %v1728
        %1740 = vmatprep.subr.bf16.mxu0 0
        %1741 = vmatpush1.bf16.msra.mxu0 %v1729
        %1742 = vmatprep.subr.bf16.mxu0 0
        %1743 = vmatpush1.bf16.msra.mxu0 0
        %1744 = vmatprep.subr.bf16.mxu0 0
        %1745 = vmatpush1.bf16.msra.mxu0 0
        %1746 = vmatprep.subr.bf16.mxu0 0
        %1747 = vmatpush1.bf16.msra.mxu0 0
        %1748 = vmatprep.subr.bf16.mxu0 0
        %1749 = vmatpush1.bf16.msra.mxu0 0
        %1750 = vmatprep.subr.bf16.mxu0 0
        %1751 = vmatpush1.bf16.msra.mxu0 0
        %1752 = vmatprep.subr.bf16.mxu0 0
        %1753 = vmatpush1.bf16.msra.mxu0 0
        %1754 = vmatprep.subr.bf16.mxu0 0
        %1755 = vmatpush1.bf16.msra.mxu0 0
        %1756 = vmatprep.subr.bf16.mxu0 0
        %1757 = vmatpush1.bf16.msra.mxu0 0
        %1758 = vmatprep.subr.bf16.mxu0 0
        %1759 = vmatpush1.bf16.msra.mxu0 0
        %1760 = vmatprep.subr.bf16.mxu0 0
        %1761 = vmatpush1.bf16.msra.mxu0 0
        %1762 = vmatprep.subr.bf16.mxu0 0
        %1763 = vmatpush1.bf16.msra.mxu0 0
        %1764 = vmatprep.subr.bf16.mxu0 0
        %1765 = vmatpush1.bf16.msra.mxu0 0
        %1766 = vmatprep.mubr.bf16.mxu0 0
        %1767 = vmatmul.mubr.bf16.gmra.mrb[0].mxu0 %v538
        %v1768 = vpop.f32.mrb[0].mxu0
        %v1769 = vadd.f32 0.0, %v1768
        %v1770 = vpop.f32.mrb[0].mxu0
        %v1771 = vpop.f32.mrb[0].mxu0
        %v1772 = vpop.f32.mrb[0].mxu0
        %1773 = vdwg.mxu0
        %v1782 = vunpack.c.l.b16 %v1534
        %v1783 = vunpack.c.l.b16 %v1535
        %v1784 = vunpack.c.l.b16 %v1536
        %v1785 = vunpack.c.l.b16 %v1537
        %v1786 = vunpack.c.l.b16 %v1538
        %v1787 = vunpack.c.l.b16 %v1539
        %v1788 = vunpack.c.l.b16 %v1540
        %v1789 = vunpack.c.l.b16 %v1541
        %v1790 = vpack.c.b16 %v1783, %v1782
        %v1791 = vpack.c.b16 %v1785, %v1784
        %v1792 = vpack.c.b16 %v1787, %v1786
        %v1793 = vpack.c.b16 %v1789, %v1788
        %1798 = vmatprep.subr.bf16.mxu0 0
        %1799 = vmatpush1.bf16.msra.mxu0 %v1790
        %1800 = vmatprep.subr.bf16.mxu0 0
        %1801 = vmatpush1.bf16.msra.mxu0 %v1791
        %1802 = vmatprep.subr.bf16.mxu0 0
        %1803 = vmatpush1.bf16.msra.mxu0 %v1792
        %1804 = vmatprep.subr.bf16.mxu0 0
        %1805 = vmatpush1.bf16.msra.mxu0 %v1793
        %1806 = vmatprep.subr.bf16.mxu0 0
        %1807 = vmatpush1.bf16.msra.mxu0 0
        %1808 = vmatprep.subr.bf16.mxu0 0
        %1809 = vmatpush1.bf16.msra.mxu0 0
        %1810 = vmatprep.subr.bf16.mxu0 0
        %1811 = vmatpush1.bf16.msra.mxu0 0
        %1812 = vmatprep.subr.bf16.mxu0 0
        %1813 = vmatpush1.bf16.msra.mxu0 0
        %1814 = vmatprep.subr.bf16.mxu0 0
        %1815 = vmatpush1.bf16.msra.mxu0 0
        %1816 = vmatprep.subr.bf16.mxu0 0
        %1817 = vmatpush1.bf16.msra.mxu0 0
        %1818 = vmatprep.subr.bf16.mxu0 0
        %1819 = vmatpush1.bf16.msra.mxu0 0
        %1820 = vmatprep.subr.bf16.mxu0 0
        %1821 = vmatpush1.bf16.msra.mxu0 0
        %1822 = vmatprep.subr.bf16.mxu0 0
        %1823 = vmatpush1.bf16.msra.mxu0 0
        %1824 = vmatprep.subr.bf16.mxu0 0
        %1825 = vmatpush1.bf16.msra.mxu0 0
        %1826 = vmatprep.subr.bf16.mxu0 0
        %1827 = vmatpush1.bf16.msra.mxu0 0
        %1828 = vmatprep.subr.bf16.mxu0 0
        %1829 = vmatpush1.bf16.msra.mxu0 0
        %1830 = vmatprep.mubr.bf16.mxu0 0
        %1831 = vmatmul.mubr.bf16.gmra.mrb[0].mxu0 %v605
        %v1832 = vpop.f32.mrb[0].mxu0
        %v1833 = vadd.f32 0.0, %v1832
        %v1834 = vpop.f32.mrb[0].mxu0
        %v1835 = vpop.f32.mrb[0].mxu0
        %v1836 = vpop.f32.mrb[0].mxu0
        %1837 = vdwg.mxu0
        %v1846 = vunpack.c.l.b16 %v1542
        %v1847 = vunpack.c.l.b16 %v1543
        %v1848 = vunpack.c.l.b16 %v1544
        %v1849 = vunpack.c.l.b16 %v1545
        %v1850 = vunpack.c.l.b16 %v1546
        %v1851 = vunpack.c.l.b16 %v1547
        %v1852 = vunpack.c.l.b16 %v1548
        %v1853 = vunpack.c.l.b16 %v1549
        %v1854 = vpack.c.b16 %v1847, %v1846
        %v1855 = vpack.c.b16 %v1849, %v1848
        %v1856 = vpack.c.b16 %v1851, %v1850
        %v1857 = vpack.c.b16 %v1853, %v1852
        %1862 = vmatprep.subr.bf16.mxu0 0
        %1863 = vmatpush1.bf16.msra.mxu0 %v1854
        %1864 = vmatprep.subr.bf16.mxu0 0
        %1865 = vmatpush1.bf16.msra.mxu0 %v1855
        %1866 = vmatprep.subr.bf16.mxu0 0
        %1867 = vmatpush1.bf16.msra.mxu0 %v1856
        %1868 = vmatprep.subr.bf16.mxu0 0
        %1869 = vmatpush1.bf16.msra.mxu0 %v1857
        %1870 = vmatprep.subr.bf16.mxu0 0
        %1871 = vmatpush1.bf16.msra.mxu0 0
        %1872 = vmatprep.subr.bf16.mxu0 0
        %1873 = vmatpush1.bf16.msra.mxu0 0
        %1874 = vmatprep.subr.bf16.mxu0 0
        %1875 = vmatpush1.bf16.msra.mxu0 0
        %1876 = vmatprep.subr.bf16.mxu0 0
        %1877 = vmatpush1.bf16.msra.mxu0 0
        %1878 = vmatprep.subr.bf16.mxu0 0
        %1879 = vmatpush1.bf16.msra.mxu0 0
        %1880 = vmatprep.subr.bf16.mxu0 0
        %1881 = vmatpush1.bf16.msra.mxu0 0
        %1882 = vmatprep.subr.bf16.mxu0 0
        %1883 = vmatpush1.bf16.msra.mxu0 0
        %1884 = vmatprep.subr.bf16.mxu0 0
        %1885 = vmatpush1.bf16.msra.mxu0 0
        %1886 = vmatprep.subr.bf16.mxu0 0
        %1887 = vmatpush1.bf16.msra.mxu0 0
        %1888 = vmatprep.subr.bf16.mxu0 0
        %1889 = vmatpush1.bf16.msra.mxu0 0
        %1890 = vmatprep.subr.bf16.mxu0 0
        %1891 = vmatpush1.bf16.msra.mxu0 0
        %1892 = vmatprep.subr.bf16.mxu0 0
        %1893 = vmatpush1.bf16.msra.mxu0 0
        %1894 = vmatprep.mubr.bf16.mxu0 0
        %1895 = vmatmul.mubr.bf16.gmra.mrb[0].mxu0 %v672
        %v1896 = vpop.f32.mrb[0].mxu0
        %v1897 = vadd.f32 0.0, %v1896
        %v1898 = vpop.f32.mrb[0].mxu0
        %v1899 = vpop.f32.mrb[0].mxu0
        %v1900 = vpop.f32.mrb[0].mxu0
        %1901 = vdwg.mxu0
        %v1910 = vunpack.c.l.b16 %v1550
        %v1911 = vunpack.c.l.b16 %v1551
        %v1912 = vunpack.c.l.b16 %v1552
        %v1913 = vunpack.c.l.b16 %v1553
        %v1914 = vunpack.c.l.b16 %v1554
        %v1915 = vunpack.c.l.b16 %v1555
        %v1916 = vunpack.c.l.b16 %v1556
        %v1917 = vunpack.c.l.b16 %v1557
        %v1918 = vpack.c.b16 %v1911, %v1910
        %v1919 = vpack.c.b16 %v1913, %v1912
        %v1920 = vpack.c.b16 %v1915, %v1914
        %v1921 = vpack.c.b16 %v1917, %v1916
        %1926 = vmatprep.subr.bf16.mxu0 0
        %1927 = vmatpush1.bf16.msra.mxu0 %v1918
        %1928 = vmatprep.subr.bf16.mxu0 0
        %1929 = vmatpush1.bf16.msra.mxu0 %v1919
        %1930 = vmatprep.subr.bf16.mxu0 0
        %1931 = vmatpush1.bf16.msra.mxu0 %v1920
        %1932 = vmatprep.subr.bf16.mxu0 0
        %1933 = vmatpush1.bf16.msra.mxu0 %v1921
        %1934 = vmatprep.subr.bf16.mxu0 0
        %1935 = vmatpush1.bf16.msra.mxu0 0
        %1936 = vmatprep.subr.bf16.mxu0 0
        %1937 = vmatpush1.bf16.msra.mxu0 0
        %1938 = vmatprep.subr.bf16.mxu0 0
        %1939 = vmatpush1.bf16.msra.mxu0 0
        %1940 = vmatprep.subr.bf16.mxu0 0
        %1941 = vmatpush1.bf16.msra.mxu0 0
        %1942 = vmatprep.subr.bf16.mxu0 0
        %1943 = vmatpush1.bf16.msra.mxu0 0
        %1944 = vmatprep.subr.bf16.mxu0 0
        %1945 = vmatpush1.bf16.msra.mxu0 0
        %1946 = vmatprep.subr.bf16.mxu0 0
        %1947 = vmatpush1.bf16.msra.mxu0 0
        %1948 = vmatprep.subr.bf16.mxu0 0
        %1949 = vmatpush1.bf16.msra.mxu0 0
        %1950 = vmatprep.subr.bf16.mxu0 0
        %1951 = vmatpush1.bf16.msra.mxu0 0
        %1952 = vmatprep.subr.bf16.mxu0 0
        %1953 = vmatpush1.bf16.msra.mxu0 0
        %1954 = vmatprep.subr.bf16.mxu0 0
        %1955 = vmatpush1.bf16.msra.mxu0 0
        %1956 = vmatprep.subr.bf16.mxu0 0
        %1957 = vmatpush1.bf16.msra.mxu0 0
        %1958 = vmatprep.mubr.bf16.mxu0 0
        %1959 = vmatmul.mubr.bf16.gmra.mrb[0].mxu0 %v739
        %v1960 = vpop.f32.mrb[0].mxu0
        %v1961 = vadd.f32 0.0, %v1960
        %v1962 = vpop.f32.mrb[0].mxu0
        %v1963 = vpop.f32.mrb[0].mxu0
        %v1964 = vpop.f32.mrb[0].mxu0
        %1965 = vdwg.mxu0
        %v1974 = vunpack.c.l.b16 %v1558
        %v1975 = vunpack.c.l.b16 %v1559
        %v1976 = vunpack.c.l.b16 %v1560
        %v1977 = vunpack.c.l.b16 %v1561
        %v1978 = vunpack.c.l.b16 %v1562
        %v1979 = vunpack.c.l.b16 %v1563
        %v1980 = vunpack.c.l.b16 %v1564
        %v1981 = vunpack.c.l.b16 %v1565
        %v1982 = vpack.c.b16 %v1975, %v1974
        %v1983 = vpack.c.b16 %v1977, %v1976
        %v1984 = vpack.c.b16 %v1979, %v1978
        %v1985 = vpack.c.b16 %v1981, %v1980
        %1990 = vmatprep.subr.bf16.mxu0 0
        %1991 = vmatpush1.bf16.msra.mxu0 %v1982
        %1992 = vmatprep.subr.bf16.mxu0 0
        %1993 = vmatpush1.bf16.msra.mxu0 %v1983
        %1994 = vmatprep.subr.bf16.mxu0 0
        %1995 = vmatpush1.bf16.msra.mxu0 %v1984
        %1996 = vmatprep.subr.bf16.mxu0 0
        %1997 = vmatpush1.bf16.msra.mxu0 %v1985
        %1998 = vmatprep.subr.bf16.mxu0 0
        %1999 = vmatpush1.bf16.msra.mxu0 0
        %2000 = vmatprep.subr.bf16.mxu0 0
        %2001 = vmatpush1.bf16.msra.mxu0 0
        %2002 = vmatprep.subr.bf16.mxu0 0
        %2003 = vmatpush1.bf16.msra.mxu0 0
        %2004 = vmatprep.subr.bf16.mxu0 0
        %2005 = vmatpush1.bf16.msra.mxu0 0
        %2006 = vmatprep.subr.bf16.mxu0 0
        %2007 = vmatpush1.bf16.msra.mxu0 0
        %2008 = vmatprep.subr.bf16.mxu0 0
        %2009 = vmatpush1.bf16.msra.mxu0 0
        %2010 = vmatprep.subr.bf16.mxu0 0
        %2011 = vmatpush1.bf16.msra.mxu0 0
        %2012 = vmatprep.subr.bf16.mxu0 0
        %2013 = vmatpush1.bf16.msra.mxu0 0
        %2014 = vmatprep.subr.bf16.mxu0 0
        %2015 = vmatpush1.bf16.msra.mxu0 0
        %2016 = vmatprep.subr.bf16.mxu0 0
        %2017 = vmatpush1.bf16.msra.mxu0 0
        %2018 = vmatprep.subr.bf16.mxu0 0
        %2019 = vmatpush1.bf16.msra.mxu0 0
        %2020 = vmatprep.subr.bf16.mxu0 0
        %2021 = vmatpush1.bf16.msra.mxu0 0
        %2022 = vmatprep.mubr.bf16.mxu0 0
        %2023 = vmatmul.mubr.bf16.gmra.mrb[0].mxu0 %v806
        %v2024 = vpop.f32.mrb[0].mxu0
        %v2025 = vadd.f32 0.0, %v2024
        %v2026 = vpop.f32.mrb[0].mxu0
        %v2027 = vpop.f32.mrb[0].mxu0
        %v2028 = vpop.f32.mrb[0].mxu0
        %2029 = vdwg.mxu0
        %v2038 = vunpack.c.l.b16 %v1566
        %v2039 = vunpack.c.l.b16 %v1567
        %v2040 = vunpack.c.l.b16 %v1568
        %v2041 = vunpack.c.l.b16 %v1569
        %v2042 = vunpack.c.l.b16 %v1570
        %v2043 = vunpack.c.l.b16 %v1571
        %v2044 = vunpack.c.l.b16 %v1572
        %v2045 = vunpack.c.l.b16 %v1573
        %v2046 = vpack.c.b16 %v2039, %v2038
        %v2047 = vpack.c.b16 %v2041, %v2040
        %v2048 = vpack.c.b16 %v2043, %v2042
        %v2049 = vpack.c.b16 %v2045, %v2044
        %2054 = vmatprep.subr.bf16.mxu0 0
        %2055 = vmatpush1.bf16.msra.mxu0 %v2046
        %2056 = vmatprep.subr.bf16.mxu0 0
        %2057 = vmatpush1.bf16.msra.mxu0 %v2047
        %2058 = vmatprep.subr.bf16.mxu0 0
        %2059 = vmatpush1.bf16.msra.mxu0 %v2048
        %2060 = vmatprep.subr.bf16.mxu0 0
        %2061 = vmatpush1.bf16.msra.mxu0 %v2049
        %2062 = vmatprep.subr.bf16.mxu0 0
        %2063 = vmatpush1.bf16.msra.mxu0 0
        %2064 = vmatprep.subr.bf16.mxu0 0
        %2065 = vmatpush1.bf16.msra.mxu0 0
        %2066 = vmatprep.subr.bf16.mxu0 0
        %2067 = vmatpush1.bf16.msra.mxu0 0
        %2068 = vmatprep.subr.bf16.mxu0 0
        %2069 = vmatpush1.bf16.msra.mxu0 0
        %2070 = vmatprep.subr.bf16.mxu0 0
        %2071 = vmatpush1.bf16.msra.mxu0 0
        %2072 = vmatprep.subr.bf16.mxu0 0
        %2073 = vmatpush1.bf16.msra.mxu0 0
        %2074 = vmatprep.subr.bf16.mxu0 0
        %2075 = vmatpush1.bf16.msra.mxu0 0
        %2076 = vmatprep.subr.bf16.mxu0 0
        %2077 = vmatpush1.bf16.msra.mxu0 0
        %2078 = vmatprep.subr.bf16.mxu0 0
        %2079 = vmatpush1.bf16.msra.mxu0 0
        %2080 = vmatprep.subr.bf16.mxu0 0
        %2081 = vmatpush1.bf16.msra.mxu0 0
        %2082 = vmatprep.subr.bf16.mxu0 0
        %2083 = vmatpush1.bf16.msra.mxu0 0
        %2084 = vmatprep.subr.bf16.mxu0 0
        %2085 = vmatpush1.bf16.msra.mxu0 0
        %2086 = vmatprep.mubr.bf16.mxu0 0
        %2087 = vmatmul.mubr.bf16.gmra.mrb[0].mxu0 %v873
        %v2088 = vpop.f32.mrb[0].mxu0
        %v2089 = vadd.f32 0.0, %v2088
        %v2090 = vpop.f32.mrb[0].mxu0
        %v2091 = vpop.f32.mrb[0].mxu0
        %v2092 = vpop.f32.mrb[0].mxu0
        %2093 = vdwg.mxu0
        %v2102 = vunpack.c.l.b16 %v1574
        %v2103 = vunpack.c.l.b16 %v1575
        %v2104 = vunpack.c.l.b16 %v1576
        %v2105 = vunpack.c.l.b16 %v1577
        %v2106 = vunpack.c.l.b16 %v1578
        %v2107 = vunpack.c.l.b16 %v1579
        %v2108 = vunpack.c.l.b16 %v1580
        %v2109 = vunpack.c.l.b16 %v1581
        %v2110 = vpack.c.b16 %v2103, %v2102
        %v2111 = vpack.c.b16 %v2105, %v2104
        %v2112 = vpack.c.b16 %v2107, %v2106
        %v2113 = vpack.c.b16 %v2109, %v2108
        %2118 = vmatprep.subr.bf16.mxu0 0
        %2119 = vmatpush1.bf16.msra.mxu0 %v2110
        %2120 = vmatprep.subr.bf16.mxu0 0
        %2121 = vmatpush1.bf16.msra.mxu0 %v2111
        %2122 = vmatprep.subr.bf16.mxu0 0
        %2123 = vmatpush1.bf16.msra.mxu0 %v2112
        %2124 = vmatprep.subr.bf16.mxu0 0
        %2125 = vmatpush1.bf16.msra.mxu0 %v2113
        %2126 = vmatprep.subr.bf16.mxu0 0
        %2127 = vmatpush1.bf16.msra.mxu0 0
        %2128 = vmatprep.subr.bf16.mxu0 0
        %2129 = vmatpush1.bf16.msra.mxu0 0
        %2130 = vmatprep.subr.bf16.mxu0 0
        %2131 = vmatpush1.bf16.msra.mxu0 0
        %2132 = vmatprep.subr.bf16.mxu0 0
        %2133 = vmatpush1.bf16.msra.mxu0 0
        %2134 = vmatprep.subr.bf16.mxu0 0
        %2135 = vmatpush1.bf16.msra.mxu0 0
        %2136 = vmatprep.subr.bf16.mxu0 0
        %2137 = vmatpush1.bf16.msra.mxu0 0
        %2138 = vmatprep.subr.bf16.mxu0 0
        %2139 = vmatpush1.bf16.msra.mxu0 0
        %2140 = vmatprep.subr.bf16.mxu0 0
        %2141 = vmatpush1.bf16.msra.mxu0 0
        %2142 = vmatprep.subr.bf16.mxu0 0
        %2143 = vmatpush1.bf16.msra.mxu0 0
        %2144 = vmatprep.subr.bf16.mxu0 0
        %2145 = vmatpush1.bf16.msra.mxu0 0
        %2146 = vmatprep.subr.bf16.mxu0 0
        %2147 = vmatpush1.bf16.msra.mxu0 0
        %2148 = vmatprep.subr.bf16.mxu0 0
        %2149 = vmatpush1.bf16.msra.mxu0 0
        %2150 = vmatprep.mubr.bf16.mxu0 0
        %2151 = vmatmul.mubr.bf16.gmra.mrb[0].mxu0 %v940
        %v2152 = vpop.f32.mrb[0].mxu0
        %v2153 = vadd.f32 0.0, %v2152
        %v2154 = vpop.f32.mrb[0].mxu0
        %v2155 = vpop.f32.mrb[0].mxu0
        %v2156 = vpop.f32.mrb[0].mxu0
        %2157 = vdwg.mxu0
        %v2166 = vunpack.c.l.b16 %v1582
        %v2167 = vunpack.c.l.b16 %v1583
        %v2168 = vunpack.c.l.b16 %v1584
        %v2169 = vunpack.c.l.b16 %v1585
        %v2170 = vunpack.c.l.b16 %v1586
        %v2171 = vunpack.c.l.b16 %v1587
        %v2172 = vunpack.c.l.b16 %v1588
        %v2173 = vunpack.c.l.b16 %v1589
        %v2174 = vpack.c.b16 %v2167, %v2166
        %v2175 = vpack.c.b16 %v2169, %v2168
        %v2176 = vpack.c.b16 %v2171, %v2170
        %v2177 = vpack.c.b16 %v2173, %v2172
        %2182 = vmatprep.subr.bf16.mxu0 0
        %2183 = vmatpush1.bf16.msra.mxu0 %v2174
        %2184 = vmatprep.subr.bf16.mxu0 0
        %2185 = vmatpush1.bf16.msra.mxu0 %v2175
        %2186 = vmatprep.subr.bf16.mxu0 0
        %2187 = vmatpush1.bf16.msra.mxu0 %v2176
        %2188 = vmatprep.subr.bf16.mxu0 0
        %2189 = vmatpush1.bf16.msra.mxu0 %v2177
        %2190 = vmatprep.subr.bf16.mxu0 0
        %2191 = vmatpush1.bf16.msra.mxu0 0
        %2192 = vmatprep.subr.bf16.mxu0 0
        %2193 = vmatpush1.bf16.msra.mxu0 0
        %2194 = vmatprep.subr.bf16.mxu0 0
        %2195 = vmatpush1.bf16.msra.mxu0 0
        %2196 = vmatprep.subr.bf16.mxu0 0
        %2197 = vmatpush1.bf16.msra.mxu0 0
        %2198 = vmatprep.subr.bf16.mxu0 0
        %2199 = vmatpush1.bf16.msra.mxu0 0
        %2200 = vmatprep.subr.bf16.mxu0 0
        %2201 = vmatpush1.bf16.msra.mxu0 0
        %2202 = vmatprep.subr.bf16.mxu0 0
        %2203 = vmatpush1.bf16.msra.mxu0 0
        %2204 = vmatprep.subr.bf16.mxu0 0
        %2205 = vmatpush1.bf16.msra.mxu0 0
        %2206 = vmatprep.subr.bf16.mxu0 0
        %2207 = vmatpush1.bf16.msra.mxu0 0
        %2208 = vmatprep.subr.bf16.mxu0 0
        %2209 = vmatpush1.bf16.msra.mxu0 0
        %2210 = vmatprep.subr.bf16.mxu0 0
        %2211 = vmatpush1.bf16.msra.mxu0 0
        %2212 = vmatprep.subr.bf16.mxu0 0
        %2213 = vmatpush1.bf16.msra.mxu0 0
        %2214 = vmatprep.mubr.bf16.mxu0 0
        %2215 = vmatmul.mubr.bf16.gmra.mrb[0].mxu0 %v1007
        %v2216 = vpop.f32.mrb[0].mxu0
        %v2217 = vadd.f32 0.0, %v2216
        %v2218 = vpop.f32.mrb[0].mxu0
        %v2219 = vpop.f32.mrb[0].mxu0
        %v2220 = vpop.f32.mrb[0].mxu0
        %2221 = vdwg.mxu0
        %v2230 = vunpack.c.l.b16 %v1590
        %v2231 = vunpack.c.l.b16 %v1591
        %v2232 = vunpack.c.l.b16 %v1592
        %v2233 = vunpack.c.l.b16 %v1593
        %v2234 = vunpack.c.l.b16 %v1594
        %v2235 = vunpack.c.l.b16 %v1595
        %v2236 = vunpack.c.l.b16 %v1596
        %v2237 = vunpack.c.l.b16 %v1597
        %v2238 = vpack.c.b16 %v2231, %v2230
        %v2239 = vpack.c.b16 %v2233, %v2232
        %v2240 = vpack.c.b16 %v2235, %v2234
        %v2241 = vpack.c.b16 %v2237, %v2236
        %2246 = vmatprep.subr.bf16.mxu0 0
        %2247 = vmatpush1.bf16.msra.mxu0 %v2238
        %2248 = vmatprep.subr.bf16.mxu0 0
        %2249 = vmatpush1.bf16.msra.mxu0 %v2239
        %2250 = vmatprep.subr.bf16.mxu0 0
        %2251 = vmatpush1.bf16.msra.mxu0 %v2240
        %2252 = vmatprep.subr.bf16.mxu0 0
        %2253 = vmatpush1.bf16.msra.mxu0 %v2241
        %2254 = vmatprep.subr.bf16.mxu0 0
        %2255 = vmatpush1.bf16.msra.mxu0 0
        %2256 = vmatprep.subr.bf16.mxu0 0
        %2257 = vmatpush1.bf16.msra.mxu0 0
        %2258 = vmatprep.subr.bf16.mxu0 0
        %2259 = vmatpush1.bf16.msra.mxu0 0
        %2260 = vmatprep.subr.bf16.mxu0 0
        %2261 = vmatpush1.bf16.msra.mxu0 0
        %2262 = vmatprep.subr.bf16.mxu0 0
        %2263 = vmatpush1.bf16.msra.mxu0 0
        %2264 = vmatprep.subr.bf16.mxu0 0
        %2265 = vmatpush1.bf16.msra.mxu0 0
        %2266 = vmatprep.subr.bf16.mxu0 0
        %2267 = vmatpush1.bf16.msra.mxu0 0
        %2268 = vmatprep.subr.bf16.mxu0 0
        %2269 = vmatpush1.bf16.msra.mxu0 0
        %2270 = vmatprep.subr.bf16.mxu0 0
        %2271 = vmatpush1.bf16.msra.mxu0 0
        %2272 = vmatprep.subr.bf16.mxu0 0
        %2273 = vmatpush1.bf16.msra.mxu0 0
        %2274 = vmatprep.subr.bf16.mxu0 0
        %2275 = vmatpush1.bf16.msra.mxu0 0
        %2276 = vmatprep.subr.bf16.mxu0 0
        %2277 = vmatpush1.bf16.msra.mxu0 0
        %2278 = vmatprep.mubr.bf16.mxu0 0
        %2279 = vmatmul.mubr.bf16.gmra.mrb[0].mxu0 %v1074
        %v2280 = vpop.f32.mrb[0].mxu0
        %v2281 = vadd.f32 0.0, %v2280
        %v2282 = vpop.f32.mrb[0].mxu0
        %v2283 = vpop.f32.mrb[0].mxu0
        %v2284 = vpop.f32.mrb[0].mxu0
        %2285 = vdwg.mxu0
        %v2294 = vunpack.c.l.b16 %v1598
        %v2295 = vunpack.c.l.b16 %v1599
        %v2296 = vunpack.c.l.b16 %v1600
        %v2297 = vunpack.c.l.b16 %v1601
        %v2298 = vunpack.c.l.b16 %v1602
        %v2299 = vunpack.c.l.b16 %v1603
        %v2300 = vunpack.c.l.b16 %v1604
        %v2301 = vunpack.c.l.b16 %v1605
        %v2302 = vpack.c.b16 %v2295, %v2294
        %v2303 = vpack.c.b16 %v2297, %v2296
        %v2304 = vpack.c.b16 %v2299, %v2298
        %v2305 = vpack.c.b16 %v2301, %v2300
        %2310 = vmatprep.subr.bf16.mxu0 0
        %2311 = vmatpush1.bf16.msra.mxu0 %v2302
        %2312 = vmatprep.subr.bf16.mxu0 0
        %2313 = vmatpush1.bf16.msra.mxu0 %v2303
        %2314 = vmatprep.subr.bf16.mxu0 0
        %2315 = vmatpush1.bf16.msra.mxu0 %v2304
        %2316 = vmatprep.subr.bf16.mxu0 0
        %2317 = vmatpush1.bf16.msra.mxu0 %v2305
        %2318 = vmatprep.subr.bf16.mxu0 0
        %2319 = vmatpush1.bf16.msra.mxu0 0
        %2320 = vmatprep.subr.bf16.mxu0 0
        %2321 = vmatpush1.bf16.msra.mxu0 0
        %2322 = vmatprep.subr.bf16.mxu0 0
        %2323 = vmatpush1.bf16.msra.mxu0 0
        %2324 = vmatprep.subr.bf16.mxu0 0
        %2325 = vmatpush1.bf16.msra.mxu0 0
        %2326 = vmatprep.subr.bf16.mxu0 0
        %2327 = vmatpush1.bf16.msra.mxu0 0
        %2328 = vmatprep.subr.bf16.mxu0 0
        %2329 = vmatpush1.bf16.msra.mxu0 0
        %2330 = vmatprep.subr.bf16.mxu0 0
        %2331 = vmatpush1.bf16.msra.mxu0 0
        %2332 = vmatprep.subr.bf16.mxu0 0
        %2333 = vmatpush1.bf16.msra.mxu0 0
        %2334 = vmatprep.subr.bf16.mxu0 0
        %2335 = vmatpush1.bf16.msra.mxu0 0
        %2336 = vmatprep.subr.bf16.mxu0 0
        %2337 = vmatpush1.bf16.msra.mxu0 0
        %2338 = vmatprep.subr.bf16.mxu0 0
        %2339 = vmatpush1.bf16.msra.mxu0 0
        %2340 = vmatprep.subr.bf16.mxu0 0
        %2341 = vmatpush1.bf16.msra.mxu0 0
        %2342 = vmatprep.mubr.bf16.mxu0 0
        %2343 = vmatmul.mubr.bf16.gmra.mrb[0].mxu0 %v1141
        %v2344 = vpop.f32.mrb[0].mxu0
        %v2345 = vadd.f32 0.0, %v2344
        %v2346 = vpop.f32.mrb[0].mxu0
        %v2347 = vpop.f32.mrb[0].mxu0
        %v2348 = vpop.f32.mrb[0].mxu0
        %2349 = vdwg.mxu0
        %v2358 = vunpack.c.l.b16 %v1606
        %v2359 = vunpack.c.l.b16 %v1607
        %v2360 = vunpack.c.l.b16 %v1608
        %v2361 = vunpack.c.l.b16 %v1609
        %v2362 = vunpack.c.l.b16 %v1610
        %v2363 = vunpack.c.l.b16 %v1611
        %v2364 = vunpack.c.l.b16 %v1612
        %v2365 = vunpack.c.l.b16 %v1613
        %v2366 = vpack.c.b16 %v2359, %v2358
        %v2367 = vpack.c.b16 %v2361, %v2360
        %v2368 = vpack.c.b16 %v2363, %v2362
        %v2369 = vpack.c.b16 %v2365, %v2364
        %2374 = vmatprep.subr.bf16.mxu0 0
        %2375 = vmatpush1.bf16.msra.mxu0 %v2366
        %2376 = vmatprep.subr.bf16.mxu0 0
        %2377 = vmatpush1.bf16.msra.mxu0 %v2367
        %2378 = vmatprep.subr.bf16.mxu0 0
        %2379 = vmatpush1.bf16.msra.mxu0 %v2368
        %2380 = vmatprep.subr.bf16.mxu0 0
        %2381 = vmatpush1.bf16.msra.mxu0 %v2369
        %2382 = vmatprep.subr.bf16.mxu0 0
        %2383 = vmatpush1.bf16.msra.mxu0 0
        %2384 = vmatprep.subr.bf16.mxu0 0
        %2385 = vmatpush1.bf16.msra.mxu0 0
        %2386 = vmatprep.subr.bf16.mxu0 0
        %2387 = vmatpush1.bf16.msra.mxu0 0
        %2388 = vmatprep.subr.bf16.mxu0 0
        %2389 = vmatpush1.bf16.msra.mxu0 0
        %2390 = vmatprep.subr.bf16.mxu0 0
        %2391 = vmatpush1.bf16.msra.mxu0 0
        %2392 = vmatprep.subr.bf16.mxu0 0
        %2393 = vmatpush1.bf16.msra.mxu0 0
        %2394 = vmatprep.subr.bf16.mxu0 0
        %2395 = vmatpush1.bf16.msra.mxu0 0
        %2396 = vmatprep.subr.bf16.mxu0 0
        %2397 = vmatpush1.bf16.msra.mxu0 0
        %2398 = vmatprep.subr.bf16.mxu0 0
        %2399 = vmatpush1.bf16.msra.mxu0 0
        %2400 = vmatprep.subr.bf16.mxu0 0
        %2401 = vmatpush1.bf16.msra.mxu0 0
        %2402 = vmatprep.subr.bf16.mxu0 0
        %2403 = vmatpush1.bf16.msra.mxu0 0
        %2404 = vmatprep.subr.bf16.mxu0 0
        %2405 = vmatpush1.bf16.msra.mxu0 0
        %2406 = vmatprep.mubr.bf16.mxu0 0
        %2407 = vmatmul.mubr.bf16.gmra.mrb[0].mxu0 %v1208
        %v2408 = vpop.f32.mrb[0].mxu0
        %v2409 = vadd.f32 0.0, %v2408
        %v2410 = vpop.f32.mrb[0].mxu0
        %v2411 = vpop.f32.mrb[0].mxu0
        %v2412 = vpop.f32.mrb[0].mxu0
        %2413 = vdwg.mxu0
        %v2422 = vunpack.c.l.b16 %v1614
        %v2423 = vunpack.c.l.b16 %v1615
        %v2424 = vunpack.c.l.b16 %v1616
        %v2425 = vunpack.c.l.b16 %v1617
        %v2426 = vunpack.c.l.b16 %v1618
        %v2427 = vunpack.c.l.b16 %v1619
        %v2428 = vunpack.c.l.b16 %v1620
        %v2429 = vunpack.c.l.b16 %v1621
        %v2430 = vpack.c.b16 %v2423, %v2422
        %v2431 = vpack.c.b16 %v2425, %v2424
        %v2432 = vpack.c.b16 %v2427, %v2426
        %v2433 = vpack.c.b16 %v2429, %v2428
        %2438 = vmatprep.subr.bf16.mxu0 0
        %2439 = vmatpush1.bf16.msra.mxu0 %v2430
        %2440 = vmatprep.subr.bf16.mxu0 0
        %2441 = vmatpush1.bf16.msra.mxu0 %v2431
        %2442 = vmatprep.subr.bf16.mxu0 0
        %2443 = vmatpush1.bf16.msra.mxu0 %v2432
        %2444 = vmatprep.subr.bf16.mxu0 0
        %2445 = vmatpush1.bf16.msra.mxu0 %v2433
        %2446 = vmatprep.subr.bf16.mxu0 0
        %2447 = vmatpush1.bf16.msra.mxu0 0
        %2448 = vmatprep.subr.bf16.mxu0 0
        %2449 = vmatpush1.bf16.msra.mxu0 0
        %2450 = vmatprep.subr.bf16.mxu0 0
        %2451 = vmatpush1.bf16.msra.mxu0 0
        %2452 = vmatprep.subr.bf16.mxu0 0
        %2453 = vmatpush1.bf16.msra.mxu0 0
        %2454 = vmatprep.subr.bf16.mxu0 0
        %2455 = vmatpush1.bf16.msra.mxu0 0
        %2456 = vmatprep.subr.bf16.mxu0 0
        %2457 = vmatpush1.bf16.msra.mxu0 0
        %2458 = vmatprep.subr.bf16.mxu0 0
        %2459 = vmatpush1.bf16.msra.mxu0 0
        %2460 = vmatprep.subr.bf16.mxu0 0
        %2461 = vmatpush1.bf16.msra.mxu0 0
        %2462 = vmatprep.subr.bf16.mxu0 0
        %2463 = vmatpush1.bf16.msra.mxu0 0
        %2464 = vmatprep.subr.bf16.mxu0 0
        %2465 = vmatpush1.bf16.msra.mxu0 0
        %2466 = vmatprep.subr.bf16.mxu0 0
        %2467 = vmatpush1.bf16.msra.mxu0 0
        %2468 = vmatprep.subr.bf16.mxu0 0
        %2469 = vmatpush1.bf16.msra.mxu0 0
        %2470 = vmatprep.mubr.bf16.mxu0 0
        %2471 = vmatmul.mubr.bf16.gmra.mrb[0].mxu0 %v1275
        %v2472 = vpop.f32.mrb[0].mxu0
        %v2473 = vadd.f32 0.0, %v2472
        %v2474 = vpop.f32.mrb[0].mxu0
        %v2475 = vpop.f32.mrb[0].mxu0
        %v2476 = vpop.f32.mrb[0].mxu0
        %2477 = vdwg.mxu0
        %v2486 = vunpack.c.l.b16 %v1622
        %v2487 = vunpack.c.l.b16 %v1623
        %v2488 = vunpack.c.l.b16 %v1624
        %v2489 = vunpack.c.l.b16 %v1625
        %v2490 = vunpack.c.l.b16 %v1626
        %v2491 = vunpack.c.l.b16 %v1627
        %v2492 = vunpack.c.l.b16 %v1628
        %v2493 = vunpack.c.l.b16 %v1629
        %v2494 = vpack.c.b16 %v2487, %v2486
        %v2495 = vpack.c.b16 %v2489, %v2488
        %v2496 = vpack.c.b16 %v2491, %v2490
        %v2497 = vpack.c.b16 %v2493, %v2492
        %2502 = vmatprep.subr.bf16.mxu0 0
        %2503 = vmatpush1.bf16.msra.mxu0 %v2494
        %2504 = vmatprep.subr.bf16.mxu0 0
        %2505 = vmatpush1.bf16.msra.mxu0 %v2495
        %2506 = vmatprep.subr.bf16.mxu0 0
        %2507 = vmatpush1.bf16.msra.mxu0 %v2496
        %2508 = vmatprep.subr.bf16.mxu0 0
        %2509 = vmatpush1.bf16.msra.mxu0 %v2497
        %2510 = vmatprep.subr.bf16.mxu0 0
        %2511 = vmatpush1.bf16.msra.mxu0 0
        %2512 = vmatprep.subr.bf16.mxu0 0
        %2513 = vmatpush1.bf16.msra.mxu0 0
        %2514 = vmatprep.subr.bf16.mxu0 0
        %2515 = vmatpush1.bf16.msra.mxu0 0
        %2516 = vmatprep.subr.bf16.mxu0 0
        %2517 = vmatpush1.bf16.msra.mxu0 0
        %2518 = vmatprep.subr.bf16.mxu0 0
        %2519 = vmatpush1.bf16.msra.mxu0 0
        %2520 = vmatprep.subr.bf16.mxu0 0
        %2521 = vmatpush1.bf16.msra.mxu0 0
        %2522 = vmatprep.subr.bf16.mxu0 0
        %2523 = vmatpush1.bf16.msra.mxu0 0
        %2524 = vmatprep.subr.bf16.mxu0 0
        %2525 = vmatpush1.bf16.msra.mxu0 0
        %2526 = vmatprep.subr.bf16.mxu0 0
        %2527 = vmatpush1.bf16.msra.mxu0 0
        %2528 = vmatprep.subr.bf16.mxu0 0
        %2529 = vmatpush1.bf16.msra.mxu0 0
        %2530 = vmatprep.subr.bf16.mxu0 0
        %2531 = vmatpush1.bf16.msra.mxu0 0
        %2532 = vmatprep.subr.bf16.mxu0 0
        %2533 = vmatpush1.bf16.msra.mxu0 0
        %2534 = vmatprep.mubr.bf16.mxu0 0
        %2535 = vmatmul.mubr.bf16.gmra.mrb[0].mxu0 %v1342
        %v2536 = vpop.f32.mrb[0].mxu0
        %v2537 = vadd.f32 0.0, %v2536
        %v2538 = vpop.f32.mrb[0].mxu0
        %v2539 = vpop.f32.mrb[0].mxu0
        %v2540 = vpop.f32.mrb[0].mxu0
        %2541 = vdwg.mxu0
        %v2550 = vunpack.c.l.b16 %v1630
        %v2551 = vunpack.c.l.b16 %v1631
        %v2552 = vunpack.c.l.b16 %v1632
        %v2553 = vunpack.c.l.b16 %v1633
        %v2554 = vunpack.c.l.b16 %v1634
        %v2555 = vunpack.c.l.b16 %v1635
        %v2556 = vunpack.c.l.b16 %v1636
        %v2557 = vunpack.c.l.b16 %v1637
        %v2558 = vpack.c.b16 %v2551, %v2550
        %v2559 = vpack.c.b16 %v2553, %v2552
        %v2560 = vpack.c.b16 %v2555, %v2554
        %v2561 = vpack.c.b16 %v2557, %v2556
        %2566 = vmatprep.subr.bf16.mxu0 0
        %2567 = vmatpush1.bf16.msra.mxu0 %v2558
        %2568 = vmatprep.subr.bf16.mxu0 0
        %2569 = vmatpush1.bf16.msra.mxu0 %v2559
        %2570 = vmatprep.subr.bf16.mxu0 0
        %2571 = vmatpush1.bf16.msra.mxu0 %v2560
        %2572 = vmatprep.subr.bf16.mxu0 0
        %2573 = vmatpush1.bf16.msra.mxu0 %v2561
        %2574 = vmatprep.subr.bf16.mxu0 0
        %2575 = vmatpush1.bf16.msra.mxu0 0
        %2576 = vmatprep.subr.bf16.mxu0 0
        %2577 = vmatpush1.bf16.msra.mxu0 0
        %2578 = vmatprep.subr.bf16.mxu0 0
        %2579 = vmatpush1.bf16.msra.mxu0 0
        %2580 = vmatprep.subr.bf16.mxu0 0
        %2581 = vmatpush1.bf16.msra.mxu0 0
        %2582 = vmatprep.subr.bf16.mxu0 0
        %2583 = vmatpush1.bf16.msra.mxu0 0
        %2584 = vmatprep.subr.bf16.mxu0 0
        %2585 = vmatpush1.bf16.msra.mxu0 0
        %2586 = vmatprep.subr.bf16.mxu0 0
        %2587 = vmatpush1.bf16.msra.mxu0 0
        %2588 = vmatprep.subr.bf16.mxu0 0
        %2589 = vmatpush1.bf16.msra.mxu0 0
        %2590 = vmatprep.subr.bf16.mxu0 0
        %2591 = vmatpush1.bf16.msra.mxu0 0
        %2592 = vmatprep.subr.bf16.mxu0 0
        %2593 = vmatpush1.bf16.msra.mxu0 0
        %2594 = vmatprep.subr.bf16.mxu0 0
        %2595 = vmatpush1.bf16.msra.mxu0 0
        %2596 = vmatprep.subr.bf16.mxu0 0
        %2597 = vmatpush1.bf16.msra.mxu0 0
        %2598 = vmatprep.mubr.bf16.mxu0 0
        %2599 = vmatmul.mubr.bf16.gmra.mrb[0].mxu0 %v1409
        %v2600 = vpop.f32.mrb[0].mxu0
        %v2601 = vadd.f32 0.0, %v2600
        %v2602 = vpop.f32.mrb[0].mxu0
        %v2603 = vpop.f32.mrb[0].mxu0
        %v2604 = vpop.f32.mrb[0].mxu0
        %2605 = vdwg.mxu0
        %v2614 = vunpack.c.l.b16 %v1638
        %v2615 = vunpack.c.l.b16 %v1639
        %v2616 = vunpack.c.l.b16 %v1640
        %v2617 = vunpack.c.l.b16 %v1641
        %v2618 = vunpack.c.l.b16 %v1642
        %v2619 = vunpack.c.l.b16 %v1643
        %v2620 = vunpack.c.l.b16 %v1644
        %v2621 = vunpack.c.l.b16 %v1645
        %v2622 = vpack.c.b16 %v2615, %v2614
        %v2623 = vpack.c.b16 %v2617, %v2616
        %v2624 = vpack.c.b16 %v2619, %v2618
        %v2625 = vpack.c.b16 %v2621, %v2620
        %2630 = vmatprep.subr.bf16.mxu0 0
        %2631 = vmatpush1.bf16.msra.mxu0 %v2622
        %2632 = vmatprep.subr.bf16.mxu0 0
        %2633 = vmatpush1.bf16.msra.mxu0 %v2623
        %2634 = vmatprep.subr.bf16.mxu0 0
        %2635 = vmatpush1.bf16.msra.mxu0 %v2624
        %2636 = vmatprep.subr.bf16.mxu0 0
        %2637 = vmatpush1.bf16.msra.mxu0 %v2625
        %2638 = vmatprep.subr.bf16.mxu0 0
        %2639 = vmatpush1.bf16.msra.mxu0 0
        %2640 = vmatprep.subr.bf16.mxu0 0
        %2641 = vmatpush1.bf16.msra.mxu0 0
        %2642 = vmatprep.subr.bf16.mxu0 0
        %2643 = vmatpush1.bf16.msra.mxu0 0
        %2644 = vmatprep.subr.bf16.mxu0 0
        %2645 = vmatpush1.bf16.msra.mxu0 0
        %2646 = vmatprep.subr.bf16.mxu0 0
        %2647 = vmatpush1.bf16.msra.mxu0 0
        %2648 = vmatprep.subr.bf16.mxu0 0
        %2649 = vmatpush1.bf16.msra.mxu0 0
        %2650 = vmatprep.subr.bf16.mxu0 0
        %2651 = vmatpush1.bf16.msra.mxu0 0
        %2652 = vmatprep.subr.bf16.mxu0 0
        %2653 = vmatpush1.bf16.msra.mxu0 0
        %2654 = vmatprep.subr.bf16.mxu0 0
        %2655 = vmatpush1.bf16.msra.mxu0 0
        %2656 = vmatprep.subr.bf16.mxu0 0
        %2657 = vmatpush1.bf16.msra.mxu0 0
        %2658 = vmatprep.subr.bf16.mxu0 0
        %2659 = vmatpush1.bf16.msra.mxu0 0
        %2660 = vmatprep.subr.bf16.mxu0 0
        %2661 = vmatpush1.bf16.msra.mxu0 0
        %2662 = vmatprep.mubr.bf16.mxu0 0
        %2663 = vmatmul.mubr.bf16.gmra.mrb[0].mxu0 %v1476
        %v2664 = vpop.f32.mrb[0].mxu0
        %v2665 = vadd.f32 0.0, %v2664
        %v2666 = vpop.f32.mrb[0].mxu0
        %v2667 = vpop.f32.mrb[0].mxu0
        %v2668 = vpop.f32.mrb[0].mxu0
        %2669 = vdwg.mxu0
        %v2670 = vld [vmem:[#allocation8] sm:$0xf]
        %v2671 = vld [vmem:[#allocation8 + $0x4] sm:$0xf]
        %v2672 = vld [vmem:[#allocation8 + $0x8] sm:$0xf]
        %v2673 = vld [vmem:[#allocation8 + $0xc] sm:$0xf]
        %v2674 = vld [vmem:[#allocation8 + $0x10] sm:$0xf]
        %v2675 = vld [vmem:[#allocation8 + $0x14] sm:$0xf]
        %v2676 = vld [vmem:[#allocation8 + $0x18] sm:$0xf]
        %v2677 = vld [vmem:[#allocation8 + $0x1c] sm:$0xf]
        %v2678 = vld [vmem:[#allocation8 + $0x20] sm:$0xf]
        %v2679 = vld [vmem:[#allocation8 + $0x24] sm:$0xf]
        %v2680 = vld [vmem:[#allocation8 + $0x28] sm:$0xf]
        %v2681 = vld [vmem:[#allocation8 + $0x2c] sm:$0xf]
        %v2682 = vld [vmem:[#allocation8 + $0x30] sm:$0xf]
        %v2683 = vld [vmem:[#allocation8 + $0x34] sm:$0xf]
        %v2684 = vld [vmem:[#allocation8 + $0x38] sm:$0xf]
        %v2685 = vld [vmem:[#allocation8 + $0x3c] sm:$0xf]
        %v2686 = vld [vmem:[#allocation8 + $0x40] sm:$0xf]
        %v2687 = vld [vmem:[#allocation8 + $0x44] sm:$0xf]
        %v2688 = vld [vmem:[#allocation8 + $0x48] sm:$0xf]
        %v2689 = vld [vmem:[#allocation8 + $0x4c] sm:$0xf]
        %v2690 = vld [vmem:[#allocation8 + $0x50] sm:$0xf]
        %v2691 = vld [vmem:[#allocation8 + $0x54] sm:$0xf]
        %v2692 = vld [vmem:[#allocation8 + $0x58] sm:$0xf]
        %v2693 = vld [vmem:[#allocation8 + $0x5c] sm:$0xf]
        %v2694 = vld [vmem:[#allocation8 + $0x60] sm:$0xf]
        %v2695 = vld [vmem:[#allocation8 + $0x64] sm:$0xf]
        %v2696 = vld [vmem:[#allocation8 + $0x68] sm:$0xf]
        %v2697 = vld [vmem:[#allocation8 + $0x6c] sm:$0xf]
        %v2698 = vld [vmem:[#allocation8 + $0x70] sm:$0xf]
        %v2699 = vld [vmem:[#allocation8 + $0x74] sm:$0xf]
        %v2700 = vld [vmem:[#allocation8 + $0x78] sm:$0xf]
        %v2701 = vld [vmem:[#allocation8 + $0x7c] sm:$0xf]
        %v2702 = vld [vmem:[#allocation8 + $0x80] sm:$0xf]
        %v2703 = vld [vmem:[#allocation8 + $0x84] sm:$0xf]
        %v2704 = vld [vmem:[#allocation8 + $0x88] sm:$0xf]
        %v2705 = vld [vmem:[#allocation8 + $0x8c] sm:$0xf]
        %v2706 = vld [vmem:[#allocation8 + $0x90] sm:$0xf]
        %v2707 = vld [vmem:[#allocation8 + $0x94] sm:$0xf]
        %v2708 = vld [vmem:[#allocation8 + $0x98] sm:$0xf]
        %v2709 = vld [vmem:[#allocation8 + $0x9c] sm:$0xf]
        %v2710 = vld [vmem:[#allocation8 + $0xa0] sm:$0xf]
        %v2711 = vld [vmem:[#allocation8 + $0xa4] sm:$0xf]
        %v2712 = vld [vmem:[#allocation8 + $0xa8] sm:$0xf]
        %v2713 = vld [vmem:[#allocation8 + $0xac] sm:$0xf]
        %v2714 = vld [vmem:[#allocation8 + $0xb0] sm:$0xf]
        %v2715 = vld [vmem:[#allocation8 + $0xb4] sm:$0xf]
        %v2716 = vld [vmem:[#allocation8 + $0xb8] sm:$0xf]
        %v2717 = vld [vmem:[#allocation8 + $0xbc] sm:$0xf]
        %v2718 = vld [vmem:[#allocation8 + $0xc0] sm:$0xf]
        %v2719 = vld [vmem:[#allocation8 + $0xc4] sm:$0xf]
        %v2720 = vld [vmem:[#allocation8 + $0xc8] sm:$0xf]
        %v2721 = vld [vmem:[#allocation8 + $0xcc] sm:$0xf]
        %v2722 = vld [vmem:[#allocation8 + $0xd0] sm:$0xf]
        %v2723 = vld [vmem:[#allocation8 + $0xd4] sm:$0xf]
        %v2724 = vld [vmem:[#allocation8 + $0xd8] sm:$0xf]
        %v2725 = vld [vmem:[#allocation8 + $0xdc] sm:$0xf]
        %v2726 = vld [vmem:[#allocation8 + $0xe0] sm:$0xf]
        %v2727 = vld [vmem:[#allocation8 + $0xe4] sm:$0xf]
        %v2728 = vld [vmem:[#allocation8 + $0xe8] sm:$0xf]
        %v2729 = vld [vmem:[#allocation8 + $0xec] sm:$0xf]
        %v2730 = vld [vmem:[#allocation8 + $0xf0] sm:$0xf]
        %v2731 = vld [vmem:[#allocation8 + $0xf4] sm:$0xf]
        %v2732 = vld [vmem:[#allocation8 + $0xf8] sm:$0xf]
        %v2733 = vld [vmem:[#allocation8 + $0xfc] sm:$0xf]
        %v2734 = vld [vmem:[#allocation8 + $0x100] sm:$0xf]
        %v2735 = vld [vmem:[#allocation8 + $0x104] sm:$0xf]
        %v2736 = vld [vmem:[#allocation8 + $0x108] sm:$0xf]
        %v2737 = vld [vmem:[#allocation8 + $0x10c] sm:$0xf]
        %v2738 = vld [vmem:[#allocation8 + $0x110] sm:$0xf]
        %v2739 = vld [vmem:[#allocation8 + $0x114] sm:$0xf]
        %v2740 = vld [vmem:[#allocation8 + $0x118] sm:$0xf]
        %v2741 = vld [vmem:[#allocation8 + $0x11c] sm:$0xf]
        %v2742 = vld [vmem:[#allocation8 + $0x120] sm:$0xf]
        %v2743 = vld [vmem:[#allocation8 + $0x124] sm:$0xf]
        %v2744 = vld [vmem:[#allocation8 + $0x128] sm:$0xf]
        %v2745 = vld [vmem:[#allocation8 + $0x12c] sm:$0xf]
        %v2746 = vld [vmem:[#allocation8 + $0x130] sm:$0xf]
        %v2747 = vld [vmem:[#allocation8 + $0x134] sm:$0xf]
        %v2748 = vld [vmem:[#allocation8 + $0x138] sm:$0xf]
        %v2749 = vld [vmem:[#allocation8 + $0x13c] sm:$0xf]
        %v2750 = vld [vmem:[#allocation8 + $0x140] sm:$0xf]
        %v2751 = vld [vmem:[#allocation8 + $0x144] sm:$0xf]
        %v2752 = vld [vmem:[#allocation8 + $0x148] sm:$0xf]
        %v2753 = vld [vmem:[#allocation8 + $0x14c] sm:$0xf]
        %v2754 = vld [vmem:[#allocation8 + $0x150] sm:$0xf]
        %v2755 = vld [vmem:[#allocation8 + $0x154] sm:$0xf]
        %v2756 = vld [vmem:[#allocation8 + $0x158] sm:$0xf]
        %v2757 = vld [vmem:[#allocation8 + $0x15c] sm:$0xf]
        %v2758 = vld [vmem:[#allocation8 + $0x160] sm:$0xf]
        %v2759 = vld [vmem:[#allocation8 + $0x164] sm:$0xf]
        %v2760 = vld [vmem:[#allocation8 + $0x168] sm:$0xf]
        %v2761 = vld [vmem:[#allocation8 + $0x16c] sm:$0xf]
        %v2762 = vld [vmem:[#allocation8 + $0x170] sm:$0xf]
        %v2763 = vld [vmem:[#allocation8 + $0x174] sm:$0xf]
        %v2764 = vld [vmem:[#allocation8 + $0x178] sm:$0xf]
        %v2765 = vld [vmem:[#allocation8 + $0x17c] sm:$0xf]
        %v2766 = vld [vmem:[#allocation8 + $0x180] sm:$0xf]
        %v2767 = vld [vmem:[#allocation8 + $0x184] sm:$0xf]
        %v2768 = vld [vmem:[#allocation8 + $0x188] sm:$0xf]
        %v2769 = vld [vmem:[#allocation8 + $0x18c] sm:$0xf]
        %v2770 = vld [vmem:[#allocation8 + $0x190] sm:$0xf]
        %v2771 = vld [vmem:[#allocation8 + $0x194] sm:$0xf]
        %v2772 = vld [vmem:[#allocation8 + $0x198] sm:$0xf]
        %v2773 = vld [vmem:[#allocation8 + $0x19c] sm:$0xf]
        %v2774 = vld [vmem:[#allocation8 + $0x1a0] sm:$0xf]
        %v2775 = vld [vmem:[#allocation8 + $0x1a4] sm:$0xf]
        %v2776 = vld [vmem:[#allocation8 + $0x1a8] sm:$0xf]
        %v2777 = vld [vmem:[#allocation8 + $0x1ac] sm:$0xf]
        %v2778 = vld [vmem:[#allocation8 + $0x1b0] sm:$0xf]
        %v2779 = vld [vmem:[#allocation8 + $0x1b4] sm:$0xf]
        %v2780 = vld [vmem:[#allocation8 + $0x1b8] sm:$0xf]
        %v2781 = vld [vmem:[#allocation8 + $0x1bc] sm:$0xf]
        %v2782 = vld [vmem:[#allocation8 + $0x1c0] sm:$0xf]
        %v2783 = vld [vmem:[#allocation8 + $0x1c4] sm:$0xf]
        %v2784 = vld [vmem:[#allocation8 + $0x1c8] sm:$0xf]
        %v2785 = vld [vmem:[#allocation8 + $0x1cc] sm:$0xf]
        %v2786 = vld [vmem:[#allocation8 + $0x1d0] sm:$0xf]
        %v2787 = vld [vmem:[#allocation8 + $0x1d4] sm:$0xf]
        %v2788 = vld [vmem:[#allocation8 + $0x1d8] sm:$0xf]
        %v2789 = vld [vmem:[#allocation8 + $0x1dc] sm:$0xf]
        %v2790 = vld [vmem:[#allocation8 + $0x1e0] sm:$0xf]
        %v2791 = vld [vmem:[#allocation8 + $0x1e4] sm:$0xf]
        %v2792 = vld [vmem:[#allocation8 + $0x1e8] sm:$0xf]
        %v2793 = vld [vmem:[#allocation8 + $0x1ec] sm:$0xf]
        %v2794 = vld [vmem:[#allocation8 + $0x1f0] sm:$0xf]
        %v2795 = vld [vmem:[#allocation8 + $0x1f4] sm:$0xf]
        %v2796 = vld [vmem:[#allocation8 + $0x1f8] sm:$0xf]
        %v2797 = vld [vmem:[#allocation8 + $0x1fc] sm:$0xf]
        %v2806 = vunpack.c.l.b16 %v2670
        %v2807 = vunpack.c.l.b16 %v2671
        %v2808 = vunpack.c.l.b16 %v2672
        %v2809 = vunpack.c.l.b16 %v2673
        %v2810 = vunpack.c.l.b16 %v2674
        %v2811 = vunpack.c.l.b16 %v2675
        %v2812 = vunpack.c.l.b16 %v2676
        %v2813 = vunpack.c.l.b16 %v2677
        %v2814 = vpack.c.b16 %v2807, %v2806
        %v2815 = vpack.c.b16 %v2809, %v2808
        %v2816 = vpack.c.b16 %v2811, %v2810
        %v2817 = vpack.c.b16 %v2813, %v2812
        %2822 = vmatprep.subr.bf16.mxu0 0
        %2823 = vmatpush1.bf16.msra.mxu0 %v2814
        %2824 = vmatprep.subr.bf16.mxu0 0
        %2825 = vmatpush1.bf16.msra.mxu0 %v2815
        %2826 = vmatprep.subr.bf16.mxu0 0
        %2827 = vmatpush1.bf16.msra.mxu0 %v2816
        %2828 = vmatprep.subr.bf16.mxu0 0
        %2829 = vmatpush1.bf16.msra.mxu0 %v2817
        %2830 = vmatprep.subr.bf16.mxu0 0
        %2831 = vmatpush1.bf16.msra.mxu0 0
        %2832 = vmatprep.subr.bf16.mxu0 0
        %2833 = vmatpush1.bf16.msra.mxu0 0
        %2834 = vmatprep.subr.bf16.mxu0 0
        %2835 = vmatpush1.bf16.msra.mxu0 0
        %2836 = vmatprep.subr.bf16.mxu0 0
        %2837 = vmatpush1.bf16.msra.mxu0 0
        %2838 = vmatprep.subr.bf16.mxu0 0
        %2839 = vmatpush1.bf16.msra.mxu0 0
        %2840 = vmatprep.subr.bf16.mxu0 0
        %2841 = vmatpush1.bf16.msra.mxu0 0
        %2842 = vmatprep.subr.bf16.mxu0 0
        %2843 = vmatpush1.bf16.msra.mxu0 0
        %2844 = vmatprep.subr.bf16.mxu0 0
        %2845 = vmatpush1.bf16.msra.mxu0 0
        %2846 = vmatprep.subr.bf16.mxu0 0
        %2847 = vmatpush1.bf16.msra.mxu0 0
        %2848 = vmatprep.subr.bf16.mxu0 0
        %2849 = vmatpush1.bf16.msra.mxu0 0
        %2850 = vmatprep.subr.bf16.mxu0 0
        %2851 = vmatpush1.bf16.msra.mxu0 0
        %2852 = vmatprep.subr.bf16.mxu0 0
        %2853 = vmatpush1.bf16.msra.mxu0 0
        %2854 = vmatprep.mubr.bf16.mxu0 0
        %2855 = vmatmul.mubr.bf16.gmra.mrb[0].mxu0 %v471
        %v2856 = vpop.f32.mrb[0].mxu0
        %v2857 = vadd.f32 0.0, %v2856
        %v2858 = vpop.f32.mrb[0].mxu0
        %v2859 = vpop.f32.mrb[0].mxu0
        %v2860 = vpop.f32.mrb[0].mxu0
        %2861 = vdwg.mxu0
        %v2870 = vunpack.c.l.b16 %v2678
        %v2871 = vunpack.c.l.b16 %v2679
        %v2872 = vunpack.c.l.b16 %v2680
        %v2873 = vunpack.c.l.b16 %v2681
        %v2874 = vunpack.c.l.b16 %v2682
        %v2875 = vunpack.c.l.b16 %v2683
        %v2876 = vunpack.c.l.b16 %v2684
        %v2877 = vunpack.c.l.b16 %v2685
        %v2878 = vpack.c.b16 %v2871, %v2870
        %v2879 = vpack.c.b16 %v2873, %v2872
        %v2880 = vpack.c.b16 %v2875, %v2874
        %v2881 = vpack.c.b16 %v2877, %v2876
        %2886 = vmatprep.subr.bf16.mxu0 0
        %2887 = vmatpush1.bf16.msra.mxu0 %v2878
        %2888 = vmatprep.subr.bf16.mxu0 0
        %2889 = vmatpush1.bf16.msra.mxu0 %v2879
        %2890 = vmatprep.subr.bf16.mxu0 0
        %2891 = vmatpush1.bf16.msra.mxu0 %v2880
        %2892 = vmatprep.subr.bf16.mxu0 0
        %2893 = vmatpush1.bf16.msra.mxu0 %v2881
        %2894 = vmatprep.subr.bf16.mxu0 0
        %2895 = vmatpush1.bf16.msra.mxu0 0
        %2896 = vmatprep.subr.bf16.mxu0 0
        %2897 = vmatpush1.bf16.msra.mxu0 0
        %2898 = vmatprep.subr.bf16.mxu0 0
        %2899 = vmatpush1.bf16.msra.mxu0 0
        %2900 = vmatprep.subr.bf16.mxu0 0
        %2901 = vmatpush1.bf16.msra.mxu0 0
        %2902 = vmatprep.subr.bf16.mxu0 0
        %2903 = vmatpush1.bf16.msra.mxu0 0
        %2904 = vmatprep.subr.bf16.mxu0 0
        %2905 = vmatpush1.bf16.msra.mxu0 0
        %2906 = vmatprep.subr.bf16.mxu0 0
        %2907 = vmatpush1.bf16.msra.mxu0 0
        %2908 = vmatprep.subr.bf16.mxu0 0
        %2909 = vmatpush1.bf16.msra.mxu0 0
        %2910 = vmatprep.subr.bf16.mxu0 0
        %2911 = vmatpush1.bf16.msra.mxu0 0
        %2912 = vmatprep.subr.bf16.mxu0 0
        %2913 = vmatpush1.bf16.msra.mxu0 0
        %2914 = vmatprep.subr.bf16.mxu0 0
        %2915 = vmatpush1.bf16.msra.mxu0 0
        %2916 = vmatprep.subr.bf16.mxu0 0
        %2917 = vmatpush1.bf16.msra.mxu0 0
        %2918 = vmatprep.mubr.bf16.mxu0 0
        %2919 = vmatmul.mubr.bf16.gmra.mrb[0].mxu0 %v538
        %v2920 = vpop.f32.mrb[0].mxu0
        %v2921 = vadd.f32 0.0, %v2920
        %v2922 = vpop.f32.mrb[0].mxu0
        %v2923 = vpop.f32.mrb[0].mxu0
        %v2924 = vpop.f32.mrb[0].mxu0
        %2925 = vdwg.mxu0
        %v2934 = vunpack.c.l.b16 %v2686
        %v2935 = vunpack.c.l.b16 %v2687
        %v2936 = vunpack.c.l.b16 %v2688
        %v2937 = vunpack.c.l.b16 %v2689
        %v2938 = vunpack.c.l.b16 %v2690
        %v2939 = vunpack.c.l.b16 %v2691
        %v2940 = vunpack.c.l.b16 %v2692
        %v2941 = vunpack.c.l.b16 %v2693
        %v2942 = vpack.c.b16 %v2935, %v2934
        %v2943 = vpack.c.b16 %v2937, %v2936
        %v2944 = vpack.c.b16 %v2939, %v2938
        %v2945 = vpack.c.b16 %v2941, %v2940
        %2950 = vmatprep.subr.bf16.mxu0 0
        %2951 = vmatpush1.bf16.msra.mxu0 %v2942
        %2952 = vmatprep.subr.bf16.mxu0 0
        %2953 = vmatpush1.bf16.msra.mxu0 %v2943
        %2954 = vmatprep.subr.bf16.mxu0 0
        %2955 = vmatpush1.bf16.msra.mxu0 %v2944
        %2956 = vmatprep.subr.bf16.mxu0 0
        %2957 = vmatpush1.bf16.msra.mxu0 %v2945
        %2958 = vmatprep.subr.bf16.mxu0 0
        %2959 = vmatpush1.bf16.msra.mxu0 0
        %2960 = vmatprep.subr.bf16.mxu0 0
        %2961 = vmatpush1.bf16.msra.mxu0 0
        %2962 = vmatprep.subr.bf16.mxu0 0
        %2963 = vmatpush1.bf16.msra.mxu0 0
        %2964 = vmatprep.subr.bf16.mxu0 0
        %2965 = vmatpush1.bf16.msra.mxu0 0
        %2966 = vmatprep.subr.bf16.mxu0 0
        %2967 = vmatpush1.bf16.msra.mxu0 0
        %2968 = vmatprep.subr.bf16.mxu0 0
        %2969 = vmatpush1.bf16.msra.mxu0 0
        %2970 = vmatprep.subr.bf16.mxu0 0
        %2971 = vmatpush1.bf16.msra.mxu0 0
        %2972 = vmatprep.subr.bf16.mxu0 0
        %2973 = vmatpush1.bf16.msra.mxu0 0
        %2974 = vmatprep.subr.bf16.mxu0 0
        %2975 = vmatpush1.bf16.msra.mxu0 0
        %2976 = vmatprep.subr.bf16.mxu0 0
        %2977 = vmatpush1.bf16.msra.mxu0 0
        %2978 = vmatprep.subr.bf16.mxu0 0
        %2979 = vmatpush1.bf16.msra.mxu0 0
        %2980 = vmatprep.subr.bf16.mxu0 0
        %2981 = vmatpush1.bf16.msra.mxu0 0
        %2982 = vmatprep.mubr.bf16.mxu0 0
        %2983 = vmatmul.mubr.bf16.gmra.mrb[0].mxu0 %v605
        %v2984 = vpop.f32.mrb[0].mxu0
        %v2985 = vadd.f32 0.0, %v2984
        %v2986 = vpop.f32.mrb[0].mxu0
        %v2987 = vpop.f32.mrb[0].mxu0
        %v2988 = vpop.f32.mrb[0].mxu0
        %2989 = vdwg.mxu0
        %v2998 = vunpack.c.l.b16 %v2694
        %v2999 = vunpack.c.l.b16 %v2695
        %v3000 = vunpack.c.l.b16 %v2696
        %v3001 = vunpack.c.l.b16 %v2697
        %v3002 = vunpack.c.l.b16 %v2698
        %v3003 = vunpack.c.l.b16 %v2699
        %v3004 = vunpack.c.l.b16 %v2700
        %v3005 = vunpack.c.l.b16 %v2701
        %v3006 = vpack.c.b16 %v2999, %v2998
        %v3007 = vpack.c.b16 %v3001, %v3000
        %v3008 = vpack.c.b16 %v3003, %v3002
        %v3009 = vpack.c.b16 %v3005, %v3004
        %3014 = vmatprep.subr.bf16.mxu0 0
        %3015 = vmatpush1.bf16.msra.mxu0 %v3006
        %3016 = vmatprep.subr.bf16.mxu0 0
        %3017 = vmatpush1.bf16.msra.mxu0 %v3007
        %3018 = vmatprep.subr.bf16.mxu0 0
        %3019 = vmatpush1.bf16.msra.mxu0 %v3008
        %3020 = vmatprep.subr.bf16.mxu0 0
        %3021 = vmatpush1.bf16.msra.mxu0 %v3009
        %3022 = vmatprep.subr.bf16.mxu0 0
        %3023 = vmatpush1.bf16.msra.mxu0 0
        %3024 = vmatprep.subr.bf16.mxu0 0
        %3025 = vmatpush1.bf16.msra.mxu0 0
        %3026 = vmatprep.subr.bf16.mxu0 0
        %3027 = vmatpush1.bf16.msra.mxu0 0
        %3028 = vmatprep.subr.bf16.mxu0 0
        %3029 = vmatpush1.bf16.msra.mxu0 0
        %3030 = vmatprep.subr.bf16.mxu0 0
        %3031 = vmatpush1.bf16.msra.mxu0 0
        %3032 = vmatprep.subr.bf16.mxu0 0
        %3033 = vmatpush1.bf16.msra.mxu0 0
        %3034 = vmatprep.subr.bf16.mxu0 0
        %3035 = vmatpush1.bf16.msra.mxu0 0
        %3036 = vmatprep.subr.bf16.mxu0 0
        %3037 = vmatpush1.bf16.msra.mxu0 0
        %3038 = vmatprep.subr.bf16.mxu0 0
        %3039 = vmatpush1.bf16.msra.mxu0 0
        %3040 = vmatprep.subr.bf16.mxu0 0
        %3041 = vmatpush1.bf16.msra.mxu0 0
        %3042 = vmatprep.subr.bf16.mxu0 0
        %3043 = vmatpush1.bf16.msra.mxu0 0
        %3044 = vmatprep.subr.bf16.mxu0 0
        %3045 = vmatpush1.bf16.msra.mxu0 0
        %3046 = vmatprep.mubr.bf16.mxu0 0
        %3047 = vmatmul.mubr.bf16.gmra.mrb[0].mxu0 %v672
        %v3048 = vpop.f32.mrb[0].mxu0
        %v3049 = vadd.f32 0.0, %v3048
        %v3050 = vpop.f32.mrb[0].mxu0
        %v3051 = vpop.f32.mrb[0].mxu0
        %v3052 = vpop.f32.mrb[0].mxu0
        %3053 = vdwg.mxu0
        %v3062 = vunpack.c.l.b16 %v2702
        %v3063 = vunpack.c.l.b16 %v2703
        %v3064 = vunpack.c.l.b16 %v2704
        %v3065 = vunpack.c.l.b16 %v2705
        %v3066 = vunpack.c.l.b16 %v2706
        %v3067 = vunpack.c.l.b16 %v2707
        %v3068 = vunpack.c.l.b16 %v2708
        %v3069 = vunpack.c.l.b16 %v2709
        %v3070 = vpack.c.b16 %v3063, %v3062
        %v3071 = vpack.c.b16 %v3065, %v3064
        %v3072 = vpack.c.b16 %v3067, %v3066
        %v3073 = vpack.c.b16 %v3069, %v3068
        %3078 = vmatprep.subr.bf16.mxu0 0
        %3079 = vmatpush1.bf16.msra.mxu0 %v3070
        %3080 = vmatprep.subr.bf16.mxu0 0
        %3081 = vmatpush1.bf16.msra.mxu0 %v3071
        %3082 = vmatprep.subr.bf16.mxu0 0
        %3083 = vmatpush1.bf16.msra.mxu0 %v3072
        %3084 = vmatprep.subr.bf16.mxu0 0
        %3085 = vmatpush1.bf16.msra.mxu0 %v3073
        %3086 = vmatprep.subr.bf16.mxu0 0
        %3087 = vmatpush1.bf16.msra.mxu0 0
        %3088 = vmatprep.subr.bf16.mxu0 0
        %3089 = vmatpush1.bf16.msra.mxu0 0
        %3090 = vmatprep.subr.bf16.mxu0 0
        %3091 = vmatpush1.bf16.msra.mxu0 0
        %3092 = vmatprep.subr.bf16.mxu0 0
        %3093 = vmatpush1.bf16.msra.mxu0 0
        %3094 = vmatprep.subr.bf16.mxu0 0
        %3095 = vmatpush1.bf16.msra.mxu0 0
        %3096 = vmatprep.subr.bf16.mxu0 0
        %3097 = vmatpush1.bf16.msra.mxu0 0
        %3098 = vmatprep.subr.bf16.mxu0 0
        %3099 = vmatpush1.bf16.msra.mxu0 0
        %3100 = vmatprep.subr.bf16.mxu0 0
        %3101 = vmatpush1.bf16.msra.mxu0 0
        %3102 = vmatprep.subr.bf16.mxu0 0
        %3103 = vmatpush1.bf16.msra.mxu0 0
        %3104 = vmatprep.subr.bf16.mxu0 0
        %3105 = vmatpush1.bf16.msra.mxu0 0
        %3106 = vmatprep.subr.bf16.mxu0 0
        %3107 = vmatpush1.bf16.msra.mxu0 0
        %3108 = vmatprep.subr.bf16.mxu0 0
        %3109 = vmatpush1.bf16.msra.mxu0 0
        %3110 = vmatprep.mubr.bf16.mxu0 0
        %3111 = vmatmul.mubr.bf16.gmra.mrb[0].mxu0 %v739
        %v3112 = vpop.f32.mrb[0].mxu0
        %v3113 = vadd.f32 0.0, %v3112
        %v3114 = vpop.f32.mrb[0].mxu0
        %v3115 = vpop.f32.mrb[0].mxu0
        %v3116 = vpop.f32.mrb[0].mxu0
        %3117 = vdwg.mxu0
        %v3126 = vunpack.c.l.b16 %v2710
        %v3127 = vunpack.c.l.b16 %v2711
        %v3128 = vunpack.c.l.b16 %v2712
        %v3129 = vunpack.c.l.b16 %v2713
        %v3130 = vunpack.c.l.b16 %v2714
        %v3131 = vunpack.c.l.b16 %v2715
        %v3132 = vunpack.c.l.b16 %v2716
        %v3133 = vunpack.c.l.b16 %v2717
        %v3134 = vpack.c.b16 %v3127, %v3126
        %v3135 = vpack.c.b16 %v3129, %v3128
        %v3136 = vpack.c.b16 %v3131, %v3130
        %v3137 = vpack.c.b16 %v3133, %v3132
        %3142 = vmatprep.subr.bf16.mxu0 0
        %3143 = vmatpush1.bf16.msra.mxu0 %v3134
        %3144 = vmatprep.subr.bf16.mxu0 0
        %3145 = vmatpush1.bf16.msra.mxu0 %v3135
        %3146 = vmatprep.subr.bf16.mxu0 0
        %3147 = vmatpush1.bf16.msra.mxu0 %v3136
        %3148 = vmatprep.subr.bf16.mxu0 0
        %3149 = vmatpush1.bf16.msra.mxu0 %v3137
        %3150 = vmatprep.subr.bf16.mxu0 0
        %3151 = vmatpush1.bf16.msra.mxu0 0
        %3152 = vmatprep.subr.bf16.mxu0 0
        %3153 = vmatpush1.bf16.msra.mxu0 0
        %3154 = vmatprep.subr.bf16.mxu0 0
        %3155 = vmatpush1.bf16.msra.mxu0 0
        %3156 = vmatprep.subr.bf16.mxu0 0
        %3157 = vmatpush1.bf16.msra.mxu0 0
        %3158 = vmatprep.subr.bf16.mxu0 0
        %3159 = vmatpush1.bf16.msra.mxu0 0
        %3160 = vmatprep.subr.bf16.mxu0 0
        %3161 = vmatpush1.bf16.msra.mxu0 0
        %3162 = vmatprep.subr.bf16.mxu0 0
        %3163 = vmatpush1.bf16.msra.mxu0 0
        %3164 = vmatprep.subr.bf16.mxu0 0
        %3165 = vmatpush1.bf16.msra.mxu0 0
        %3166 = vmatprep.subr.bf16.mxu0 0
        %3167 = vmatpush1.bf16.msra.mxu0 0
        %3168 = vmatprep.subr.bf16.mxu0 0
        %3169 = vmatpush1.bf16.msra.mxu0 0
        %3170 = vmatprep.subr.bf16.mxu0 0
        %3171 = vmatpush1.bf16.msra.mxu0 0
        %3172 = vmatprep.subr.bf16.mxu0 0
        %3173 = vmatpush1.bf16.msra.mxu0 0
        %3174 = vmatprep.mubr.bf16.mxu0 0
        %3175 = vmatmul.mubr.bf16.gmra.mrb[0].mxu0 %v806
        %v3176 = vpop.f32.mrb[0].mxu0
        %v3177 = vadd.f32 0.0, %v3176
        %v3178 = vpop.f32.mrb[0].mxu0
        %v3179 = vpop.f32.mrb[0].mxu0
        %v3180 = vpop.f32.mrb[0].mxu0
        %3181 = vdwg.mxu0
        %v3190 = vunpack.c.l.b16 %v2718
        %v3191 = vunpack.c.l.b16 %v2719
        %v3192 = vunpack.c.l.b16 %v2720
        %v3193 = vunpack.c.l.b16 %v2721
        %v3194 = vunpack.c.l.b16 %v2722
        %v3195 = vunpack.c.l.b16 %v2723
        %v3196 = vunpack.c.l.b16 %v2724
        %v3197 = vunpack.c.l.b16 %v2725
        %v3198 = vpack.c.b16 %v3191, %v3190
        %v3199 = vpack.c.b16 %v3193, %v3192
        %v3200 = vpack.c.b16 %v3195, %v3194
        %v3201 = vpack.c.b16 %v3197, %v3196
        %3206 = vmatprep.subr.bf16.mxu0 0
        %3207 = vmatpush1.bf16.msra.mxu0 %v3198
        %3208 = vmatprep.subr.bf16.mxu0 0
        %3209 = vmatpush1.bf16.msra.mxu0 %v3199
        %3210 = vmatprep.subr.bf16.mxu0 0
        %3211 = vmatpush1.bf16.msra.mxu0 %v3200
        %3212 = vmatprep.subr.bf16.mxu0 0
        %3213 = vmatpush1.bf16.msra.mxu0 %v3201
        %3214 = vmatprep.subr.bf16.mxu0 0
        %3215 = vmatpush1.bf16.msra.mxu0 0
        %3216 = vmatprep.subr.bf16.mxu0 0
        %3217 = vmatpush1.bf16.msra.mxu0 0
        %3218 = vmatprep.subr.bf16.mxu0 0
        %3219 = vmatpush1.bf16.msra.mxu0 0
        %3220 = vmatprep.subr.bf16.mxu0 0
        %3221 = vmatpush1.bf16.msra.mxu0 0
        %3222 = vmatprep.subr.bf16.mxu0 0
        %3223 = vmatpush1.bf16.msra.mxu0 0
        %3224 = vmatprep.subr.bf16.mxu0 0
        %3225 = vmatpush1.bf16.msra.mxu0 0
        %3226 = vmatprep.subr.bf16.mxu0 0
        %3227 = vmatpush1.bf16.msra.mxu0 0
        %3228 = vmatprep.subr.bf16.mxu0 0
        %3229 = vmatpush1.bf16.msra.mxu0 0
        %3230 = vmatprep.subr.bf16.mxu0 0
        %3231 = vmatpush1.bf16.msra.mxu0 0
        %3232 = vmatprep.subr.bf16.mxu0 0
        %3233 = vmatpush1.bf16.msra.mxu0 0
        %3234 = vmatprep.subr.bf16.mxu0 0
        %3235 = vmatpush1.bf16.msra.mxu0 0
        %3236 = vmatprep.subr.bf16.mxu0 0
        %3237 = vmatpush1.bf16.msra.mxu0 0
        %3238 = vmatprep.mubr.bf16.mxu0 0
        %3239 = vmatmul.mubr.bf16.gmra.mrb[0].mxu0 %v873
        %v3240 = vpop.f32.mrb[0].mxu0
        %v3241 = vadd.f32 0.0, %v3240
        %v3242 = vpop.f32.mrb[0].mxu0
        %v3243 = vpop.f32.mrb[0].mxu0
        %v3244 = vpop.f32.mrb[0].mxu0
        %3245 = vdwg.mxu0
        %v3254 = vunpack.c.l.b16 %v2726
        %v3255 = vunpack.c.l.b16 %v2727
        %v3256 = vunpack.c.l.b16 %v2728
        %v3257 = vunpack.c.l.b16 %v2729
        %v3258 = vunpack.c.l.b16 %v2730
        %v3259 = vunpack.c.l.b16 %v2731
        %v3260 = vunpack.c.l.b16 %v2732
        %v3261 = vunpack.c.l.b16 %v2733
        %v3262 = vpack.c.b16 %v3255, %v3254
        %v3263 = vpack.c.b16 %v3257, %v3256
        %v3264 = vpack.c.b16 %v3259, %v3258
        %v3265 = vpack.c.b16 %v3261, %v3260
        %3270 = vmatprep.subr.bf16.mxu0 0
        %3271 = vmatpush1.bf16.msra.mxu0 %v3262
        %3272 = vmatprep.subr.bf16.mxu0 0
        %3273 = vmatpush1.bf16.msra.mxu0 %v3263
        %3274 = vmatprep.subr.bf16.mxu0 0
        %3275 = vmatpush1.bf16.msra.mxu0 %v3264
        %3276 = vmatprep.subr.bf16.mxu0 0
        %3277 = vmatpush1.bf16.msra.mxu0 %v3265
        %3278 = vmatprep.subr.bf16.mxu0 0
        %3279 = vmatpush1.bf16.msra.mxu0 0
        %3280 = vmatprep.subr.bf16.mxu0 0
        %3281 = vmatpush1.bf16.msra.mxu0 0
        %3282 = vmatprep.subr.bf16.mxu0 0
        %3283 = vmatpush1.bf16.msra.mxu0 0
        %3284 = vmatprep.subr.bf16.mxu0 0
        %3285 = vmatpush1.bf16.msra.mxu0 0
        %3286 = vmatprep.subr.bf16.mxu0 0
        %3287 = vmatpush1.bf16.msra.mxu0 0
        %3288 = vmatprep.subr.bf16.mxu0 0
        %3289 = vmatpush1.bf16.msra.mxu0 0
        %3290 = vmatprep.subr.bf16.mxu0 0
        %3291 = vmatpush1.bf16.msra.mxu0 0
        %3292 = vmatprep.subr.bf16.mxu0 0
        %3293 = vmatpush1.bf16.msra.mxu0 0
        %3294 = vmatprep.subr.bf16.mxu0 0
        %3295 = vmatpush1.bf16.msra.mxu0 0
        %3296 = vmatprep.subr.bf16.mxu0 0
        %3297 = vmatpush1.bf16.msra.mxu0 0
        %3298 = vmatprep.subr.bf16.mxu0 0
        %3299 = vmatpush1.bf16.msra.mxu0 0
        %3300 = vmatprep.subr.bf16.mxu0 0
        %3301 = vmatpush1.bf16.msra.mxu0 0
        %3302 = vmatprep.mubr.bf16.mxu0 0
        %3303 = vmatmul.mubr.bf16.gmra.mrb[0].mxu0 %v940
        %v3304 = vpop.f32.mrb[0].mxu0
        %v3305 = vadd.f32 0.0, %v3304
        %v3306 = vpop.f32.mrb[0].mxu0
        %v3307 = vpop.f32.mrb[0].mxu0
        %v3308 = vpop.f32.mrb[0].mxu0
        %3309 = vdwg.mxu0
        %v3318 = vunpack.c.l.b16 %v2734
        %v3319 = vunpack.c.l.b16 %v2735
        %v3320 = vunpack.c.l.b16 %v2736
        %v3321 = vunpack.c.l.b16 %v2737
        %v3322 = vunpack.c.l.b16 %v2738
        %v3323 = vunpack.c.l.b16 %v2739
        %v3324 = vunpack.c.l.b16 %v2740
        %v3325 = vunpack.c.l.b16 %v2741
        %v3326 = vpack.c.b16 %v3319, %v3318
        %v3327 = vpack.c.b16 %v3321, %v3320
        %v3328 = vpack.c.b16 %v3323, %v3322
        %v3329 = vpack.c.b16 %v3325, %v3324
        %3334 = vmatprep.subr.bf16.mxu0 0
        %3335 = vmatpush1.bf16.msra.mxu0 %v3326
        %3336 = vmatprep.subr.bf16.mxu0 0
        %3337 = vmatpush1.bf16.msra.mxu0 %v3327
        %3338 = vmatprep.subr.bf16.mxu0 0
        %3339 = vmatpush1.bf16.msra.mxu0 %v3328
        %3340 = vmatprep.subr.bf16.mxu0 0
        %3341 = vmatpush1.bf16.msra.mxu0 %v3329
        %3342 = vmatprep.subr.bf16.mxu0 0
        %3343 = vmatpush1.bf16.msra.mxu0 0
        %3344 = vmatprep.subr.bf16.mxu0 0
        %3345 = vmatpush1.bf16.msra.mxu0 0
        %3346 = vmatprep.subr.bf16.mxu0 0
        %3347 = vmatpush1.bf16.msra.mxu0 0
        %3348 = vmatprep.subr.bf16.mxu0 0
        %3349 = vmatpush1.bf16.msra.mxu0 0
        %3350 = vmatprep.subr.bf16.mxu0 0
        %3351 = vmatpush1.bf16.msra.mxu0 0
        %3352 = vmatprep.subr.bf16.mxu0 0
        %3353 = vmatpush1.bf16.msra.mxu0 0
        %3354 = vmatprep.subr.bf16.mxu0 0
        %3355 = vmatpush1.bf16.msra.mxu0 0
        %3356 = vmatprep.subr.bf16.mxu0 0
        %3357 = vmatpush1.bf16.msra.mxu0 0
        %3358 = vmatprep.subr.bf16.mxu0 0
        %3359 = vmatpush1.bf16.msra.mxu0 0
        %3360 = vmatprep.subr.bf16.mxu0 0
        %3361 = vmatpush1.bf16.msra.mxu0 0
        %3362 = vmatprep.subr.bf16.mxu0 0
        %3363 = vmatpush1.bf16.msra.mxu0 0
        %3364 = vmatprep.subr.bf16.mxu0 0
        %3365 = vmatpush1.bf16.msra.mxu0 0
        %3366 = vmatprep.mubr.bf16.mxu0 0
        %3367 = vmatmul.mubr.bf16.gmra.mrb[0].mxu0 %v1007
        %v3368 = vpop.f32.mrb[0].mxu0
        %v3369 = vadd.f32 0.0, %v3368
        %v3370 = vpop.f32.mrb[0].mxu0
        %v3371 = vpop.f32.mrb[0].mxu0
        %v3372 = vpop.f32.mrb[0].mxu0
        %3373 = vdwg.mxu0
        %v3382 = vunpack.c.l.b16 %v2742
        %v3383 = vunpack.c.l.b16 %v2743
        %v3384 = vunpack.c.l.b16 %v2744
        %v3385 = vunpack.c.l.b16 %v2745
        %v3386 = vunpack.c.l.b16 %v2746
        %v3387 = vunpack.c.l.b16 %v2747
        %v3388 = vunpack.c.l.b16 %v2748
        %v3389 = vunpack.c.l.b16 %v2749
        %v3390 = vpack.c.b16 %v3383, %v3382
        %v3391 = vpack.c.b16 %v3385, %v3384
        %v3392 = vpack.c.b16 %v3387, %v3386
        %v3393 = vpack.c.b16 %v3389, %v3388
        %3398 = vmatprep.subr.bf16.mxu0 0
        %3399 = vmatpush1.bf16.msra.mxu0 %v3390
        %3400 = vmatprep.subr.bf16.mxu0 0
        %3401 = vmatpush1.bf16.msra.mxu0 %v3391
        %3402 = vmatprep.subr.bf16.mxu0 0
        %3403 = vmatpush1.bf16.msra.mxu0 %v3392
        %3404 = vmatprep.subr.bf16.mxu0 0
        %3405 = vmatpush1.bf16.msra.mxu0 %v3393
        %3406 = vmatprep.subr.bf16.mxu0 0
        %3407 = vmatpush1.bf16.msra.mxu0 0
        %3408 = vmatprep.subr.bf16.mxu0 0
        %3409 = vmatpush1.bf16.msra.mxu0 0
        %3410 = vmatprep.subr.bf16.mxu0 0
        %3411 = vmatpush1.bf16.msra.mxu0 0
        %3412 = vmatprep.subr.bf16.mxu0 0
        %3413 = vmatpush1.bf16.msra.mxu0 0
        %3414 = vmatprep.subr.bf16.mxu0 0
        %3415 = vmatpush1.bf16.msra.mxu0 0
        %3416 = vmatprep.subr.bf16.mxu0 0
        %3417 = vmatpush1.bf16.msra.mxu0 0
        %3418 = vmatprep.subr.bf16.mxu0 0
        %3419 = vmatpush1.bf16.msra.mxu0 0
        %3420 = vmatprep.subr.bf16.mxu0 0
        %3421 = vmatpush1.bf16.msra.mxu0 0
        %3422 = vmatprep.subr.bf16.mxu0 0
        %3423 = vmatpush1.bf16.msra.mxu0 0
        %3424 = vmatprep.subr.bf16.mxu0 0
        %3425 = vmatpush1.bf16.msra.mxu0 0
        %3426 = vmatprep.subr.bf16.mxu0 0
        %3427 = vmatpush1.bf16.msra.mxu0 0
        %3428 = vmatprep.subr.bf16.mxu0 0
        %3429 = vmatpush1.bf16.msra.mxu0 0
        %3430 = vmatprep.mubr.bf16.mxu0 0
        %3431 = vmatmul.mubr.bf16.gmra.mrb[0].mxu0 %v1074
        %v3432 = vpop.f32.mrb[0].mxu0
        %v3433 = vadd.f32 0.0, %v3432
        %v3434 = vpop.f32.mrb[0].mxu0
        %v3435 = vpop.f32.mrb[0].mxu0
        %v3436 = vpop.f32.mrb[0].mxu0
        %3437 = vdwg.mxu0
        %v3446 = vunpack.c.l.b16 %v2750
        %v3447 = vunpack.c.l.b16 %v2751
        %v3448 = vunpack.c.l.b16 %v2752
        %v3449 = vunpack.c.l.b16 %v2753
        %v3450 = vunpack.c.l.b16 %v2754
        %v3451 = vunpack.c.l.b16 %v2755
        %v3452 = vunpack.c.l.b16 %v2756
        %v3453 = vunpack.c.l.b16 %v2757
        %v3454 = vpack.c.b16 %v3447, %v3446
        %v3455 = vpack.c.b16 %v3449, %v3448
        %v3456 = vpack.c.b16 %v3451, %v3450
        %v3457 = vpack.c.b16 %v3453, %v3452
        %3462 = vmatprep.subr.bf16.mxu0 0
        %3463 = vmatpush1.bf16.msra.mxu0 %v3454
        %3464 = vmatprep.subr.bf16.mxu0 0
        %3465 = vmatpush1.bf16.msra.mxu0 %v3455
        %3466 = vmatprep.subr.bf16.mxu0 0
        %3467 = vmatpush1.bf16.msra.mxu0 %v3456
        %3468 = vmatprep.subr.bf16.mxu0 0
        %3469 = vmatpush1.bf16.msra.mxu0 %v3457
        %3470 = vmatprep.subr.bf16.mxu0 0
        %3471 = vmatpush1.bf16.msra.mxu0 0
        %3472 = vmatprep.subr.bf16.mxu0 0
        %3473 = vmatpush1.bf16.msra.mxu0 0
        %3474 = vmatprep.subr.bf16.mxu0 0
        %3475 = vmatpush1.bf16.msra.mxu0 0
        %3476 = vmatprep.subr.bf16.mxu0 0
        %3477 = vmatpush1.bf16.msra.mxu0 0
        %3478 = vmatprep.subr.bf16.mxu0 0
        %3479 = vmatpush1.bf16.msra.mxu0 0
        %3480 = vmatprep.subr.bf16.mxu0 0
        %3481 = vmatpush1.bf16.msra.mxu0 0
        %3482 = vmatprep.subr.bf16.mxu0 0
        %3483 = vmatpush1.bf16.msra.mxu0 0
        %3484 = vmatprep.subr.bf16.mxu0 0
        %3485 = vmatpush1.bf16.msra.mxu0 0
        %3486 = vmatprep.subr.bf16.mxu0 0
        %3487 = vmatpush1.bf16.msra.mxu0 0
        %3488 = vmatprep.subr.bf16.mxu0 0
        %3489 = vmatpush1.bf16.msra.mxu0 0
        %3490 = vmatprep.subr.bf16.mxu0 0
        %3491 = vmatpush1.bf16.msra.mxu0 0
        %3492 = vmatprep.subr.bf16.mxu0 0
        %3493 = vmatpush1.bf16.msra.mxu0 0
        %3494 = vmatprep.mubr.bf16.mxu0 0
        %3495 = vmatmul.mubr.bf16.gmra.mrb[0].mxu0 %v1141
        %v3496 = vpop.f32.mrb[0].mxu0
        %v3497 = vadd.f32 0.0, %v3496
        %v3498 = vpop.f32.mrb[0].mxu0
        %v3499 = vpop.f32.mrb[0].mxu0
        %v3500 = vpop.f32.mrb[0].mxu0
        %3501 = vdwg.mxu0
        %v3510 = vunpack.c.l.b16 %v2758
        %v3511 = vunpack.c.l.b16 %v2759
        %v3512 = vunpack.c.l.b16 %v2760
        %v3513 = vunpack.c.l.b16 %v2761
        %v3514 = vunpack.c.l.b16 %v2762
        %v3515 = vunpack.c.l.b16 %v2763
        %v3516 = vunpack.c.l.b16 %v2764
        %v3517 = vunpack.c.l.b16 %v2765
        %v3518 = vpack.c.b16 %v3511, %v3510
        %v3519 = vpack.c.b16 %v3513, %v3512
        %v3520 = vpack.c.b16 %v3515, %v3514
        %v3521 = vpack.c.b16 %v3517, %v3516
        %3526 = vmatprep.subr.bf16.mxu0 0
        %3527 = vmatpush1.bf16.msra.mxu0 %v3518
        %3528 = vmatprep.subr.bf16.mxu0 0
        %3529 = vmatpush1.bf16.msra.mxu0 %v3519
        %3530 = vmatprep.subr.bf16.mxu0 0
        %3531 = vmatpush1.bf16.msra.mxu0 %v3520
        %3532 = vmatprep.subr.bf16.mxu0 0
        %3533 = vmatpush1.bf16.msra.mxu0 %v3521
        %3534 = vmatprep.subr.bf16.mxu0 0
        %3535 = vmatpush1.bf16.msra.mxu0 0
        %3536 = vmatprep.subr.bf16.mxu0 0
        %3537 = vmatpush1.bf16.msra.mxu0 0
        %3538 = vmatprep.subr.bf16.mxu0 0
        %3539 = vmatpush1.bf16.msra.mxu0 0
        %3540 = vmatprep.subr.bf16.mxu0 0
        %3541 = vmatpush1.bf16.msra.mxu0 0
        %3542 = vmatprep.subr.bf16.mxu0 0
        %3543 = vmatpush1.bf16.msra.mxu0 0
        %3544 = vmatprep.subr.bf16.mxu0 0
        %3545 = vmatpush1.bf16.msra.mxu0 0
        %3546 = vmatprep.subr.bf16.mxu0 0
        %3547 = vmatpush1.bf16.msra.mxu0 0
        %3548 = vmatprep.subr.bf16.mxu0 0
        %3549 = vmatpush1.bf16.msra.mxu0 0
        %3550 = vmatprep.subr.bf16.mxu0 0
        %3551 = vmatpush1.bf16.msra.mxu0 0
        %3552 = vmatprep.subr.bf16.mxu0 0
        %3553 = vmatpush1.bf16.msra.mxu0 0
        %3554 = vmatprep.subr.bf16.mxu0 0
        %3555 = vmatpush1.bf16.msra.mxu0 0
        %3556 = vmatprep.subr.bf16.mxu0 0
        %3557 = vmatpush1.bf16.msra.mxu0 0
        %3558 = vmatprep.mubr.bf16.mxu0 0
        %3559 = vmatmul.mubr.bf16.gmra.mrb[0].mxu0 %v1208
        %v3560 = vpop.f32.mrb[0].mxu0
        %v3561 = vadd.f32 0.0, %v3560
        %v3562 = vpop.f32.mrb[0].mxu0
        %v3563 = vpop.f32.mrb[0].mxu0
        %v3564 = vpop.f32.mrb[0].mxu0
        %3565 = vdwg.mxu0
        %v3574 = vunpack.c.l.b16 %v2766
        %v3575 = vunpack.c.l.b16 %v2767
        %v3576 = vunpack.c.l.b16 %v2768
        %v3577 = vunpack.c.l.b16 %v2769
        %v3578 = vunpack.c.l.b16 %v2770
        %v3579 = vunpack.c.l.b16 %v2771
        %v3580 = vunpack.c.l.b16 %v2772
        %v3581 = vunpack.c.l.b16 %v2773
        %v3582 = vpack.c.b16 %v3575, %v3574
        %v3583 = vpack.c.b16 %v3577, %v3576
        %v3584 = vpack.c.b16 %v3579, %v3578
        %v3585 = vpack.c.b16 %v3581, %v3580
        %3590 = vmatprep.subr.bf16.mxu0 0
        %3591 = vmatpush1.bf16.msra.mxu0 %v3582
        %3592 = vmatprep.subr.bf16.mxu0 0
        %3593 = vmatpush1.bf16.msra.mxu0 %v3583
        %3594 = vmatprep.subr.bf16.mxu0 0
        %3595 = vmatpush1.bf16.msra.mxu0 %v3584
        %3596 = vmatprep.subr.bf16.mxu0 0
        %3597 = vmatpush1.bf16.msra.mxu0 %v3585
        %3598 = vmatprep.subr.bf16.mxu0 0
        %3599 = vmatpush1.bf16.msra.mxu0 0
        %3600 = vmatprep.subr.bf16.mxu0 0
        %3601 = vmatpush1.bf16.msra.mxu0 0
        %3602 = vmatprep.subr.bf16.mxu0 0
        %3603 = vmatpush1.bf16.msra.mxu0 0
        %3604 = vmatprep.subr.bf16.mxu0 0
        %3605 = vmatpush1.bf16.msra.mxu0 0
        %3606 = vmatprep.subr.bf16.mxu0 0
        %3607 = vmatpush1.bf16.msra.mxu0 0
        %3608 = vmatprep.subr.bf16.mxu0 0
        %3609 = vmatpush1.bf16.msra.mxu0 0
        %3610 = vmatprep.subr.bf16.mxu0 0
        %3611 = vmatpush1.bf16.msra.mxu0 0
        %3612 = vmatprep.subr.bf16.mxu0 0
        %3613 = vmatpush1.bf16.msra.mxu0 0
        %3614 = vmatprep.subr.bf16.mxu0 0
        %3615 = vmatpush1.bf16.msra.mxu0 0
        %3616 = vmatprep.subr.bf16.mxu0 0
        %3617 = vmatpush1.bf16.msra.mxu0 0
        %3618 = vmatprep.subr.bf16.mxu0 0
        %3619 = vmatpush1.bf16.msra.mxu0 0
        %3620 = vmatprep.subr.bf16.mxu0 0
        %3621 = vmatpush1.bf16.msra.mxu0 0
        %3622 = vmatprep.mubr.bf16.mxu0 0
        %3623 = vmatmul.mubr.bf16.gmra.mrb[0].mxu0 %v1275
        %v3624 = vpop.f32.mrb[0].mxu0
        %v3625 = vadd.f32 0.0, %v3624
        %v3626 = vpop.f32.mrb[0].mxu0
        %v3627 = vpop.f32.mrb[0].mxu0
        %v3628 = vpop.f32.mrb[0].mxu0
        %3629 = vdwg.mxu0
        %v3638 = vunpack.c.l.b16 %v2774
        %v3639 = vunpack.c.l.b16 %v2775
        %v3640 = vunpack.c.l.b16 %v2776
        %v3641 = vunpack.c.l.b16 %v2777
        %v3642 = vunpack.c.l.b16 %v2778
        %v3643 = vunpack.c.l.b16 %v2779
        %v3644 = vunpack.c.l.b16 %v2780
        %v3645 = vunpack.c.l.b16 %v2781
        %v3646 = vpack.c.b16 %v3639, %v3638
        %v3647 = vpack.c.b16 %v3641, %v3640
        %v3648 = vpack.c.b16 %v3643, %v3642
        %v3649 = vpack.c.b16 %v3645, %v3644
        %3654 = vmatprep.subr.bf16.mxu0 0
        %3655 = vmatpush1.bf16.msra.mxu0 %v3646
        %3656 = vmatprep.subr.bf16.mxu0 0
        %3657 = vmatpush1.bf16.msra.mxu0 %v3647
        %3658 = vmatprep.subr.bf16.mxu0 0
        %3659 = vmatpush1.bf16.msra.mxu0 %v3648
        %3660 = vmatprep.subr.bf16.mxu0 0
        %3661 = vmatpush1.bf16.msra.mxu0 %v3649
        %3662 = vmatprep.subr.bf16.mxu0 0
        %3663 = vmatpush1.bf16.msra.mxu0 0
        %3664 = vmatprep.subr.bf16.mxu0 0
        %3665 = vmatpush1.bf16.msra.mxu0 0
        %3666 = vmatprep.subr.bf16.mxu0 0
        %3667 = vmatpush1.bf16.msra.mxu0 0
        %3668 = vmatprep.subr.bf16.mxu0 0
        %3669 = vmatpush1.bf16.msra.mxu0 0
        %3670 = vmatprep.subr.bf16.mxu0 0
        %3671 = vmatpush1.bf16.msra.mxu0 0
        %3672 = vmatprep.subr.bf16.mxu0 0
        %3673 = vmatpush1.bf16.msra.mxu0 0
        %3674 = vmatprep.subr.bf16.mxu0 0
        %3675 = vmatpush1.bf16.msra.mxu0 0
        %3676 = vmatprep.subr.bf16.mxu0 0
        %3677 = vmatpush1.bf16.msra.mxu0 0
        %3678 = vmatprep.subr.bf16.mxu0 0
        %3679 = vmatpush1.bf16.msra.mxu0 0
        %3680 = vmatprep.subr.bf16.mxu0 0
        %3681 = vmatpush1.bf16.msra.mxu0 0
        %3682 = vmatprep.subr.bf16.mxu0 0
        %3683 = vmatpush1.bf16.msra.mxu0 0
        %3684 = vmatprep.subr.bf16.mxu0 0
        %3685 = vmatpush1.bf16.msra.mxu0 0
        %3686 = vmatprep.mubr.bf16.mxu0 0
        %3687 = vmatmul.mubr.bf16.gmra.mrb[0].mxu0 %v1342
        %v3688 = vpop.f32.mrb[0].mxu0
        %v3689 = vadd.f32 0.0, %v3688
        %v3690 = vpop.f32.mrb[0].mxu0
        %v3691 = vpop.f32.mrb[0].mxu0
        %v3692 = vpop.f32.mrb[0].mxu0
        %3693 = vdwg.mxu0
        %v3702 = vunpack.c.l.b16 %v2782
        %v3703 = vunpack.c.l.b16 %v2783
        %v3704 = vunpack.c.l.b16 %v2784
        %v3705 = vunpack.c.l.b16 %v2785
        %v3706 = vunpack.c.l.b16 %v2786
        %v3707 = vunpack.c.l.b16 %v2787
        %v3708 = vunpack.c.l.b16 %v2788
        %v3709 = vunpack.c.l.b16 %v2789
        %v3710 = vpack.c.b16 %v3703, %v3702
        %v3711 = vpack.c.b16 %v3705, %v3704
        %v3712 = vpack.c.b16 %v3707, %v3706
        %v3713 = vpack.c.b16 %v3709, %v3708
        %3718 = vmatprep.subr.bf16.mxu0 0
        %3719 = vmatpush1.bf16.msra.mxu0 %v3710
        %3720 = vmatprep.subr.bf16.mxu0 0
        %3721 = vmatpush1.bf16.msra.mxu0 %v3711
        %3722 = vmatprep.subr.bf16.mxu0 0
        %3723 = vmatpush1.bf16.msra.mxu0 %v3712
        %3724 = vmatprep.subr.bf16.mxu0 0
        %3725 = vmatpush1.bf16.msra.mxu0 %v3713
        %3726 = vmatprep.subr.bf16.mxu0 0
        %3727 = vmatpush1.bf16.msra.mxu0 0
        %3728 = vmatprep.subr.bf16.mxu0 0
        %3729 = vmatpush1.bf16.msra.mxu0 0
        %3730 = vmatprep.subr.bf16.mxu0 0
        %3731 = vmatpush1.bf16.msra.mxu0 0
        %3732 = vmatprep.subr.bf16.mxu0 0
        %3733 = vmatpush1.bf16.msra.mxu0 0
        %3734 = vmatprep.subr.bf16.mxu0 0
        %3735 = vmatpush1.bf16.msra.mxu0 0
        %3736 = vmatprep.subr.bf16.mxu0 0
        %3737 = vmatpush1.bf16.msra.mxu0 0
        %3738 = vmatprep.subr.bf16.mxu0 0
        %3739 = vmatpush1.bf16.msra.mxu0 0
        %3740 = vmatprep.subr.bf16.mxu0 0
        %3741 = vmatpush1.bf16.msra.mxu0 0
        %3742 = vmatprep.subr.bf16.mxu0 0
        %3743 = vmatpush1.bf16.msra.mxu0 0
        %3744 = vmatprep.subr.bf16.mxu0 0
        %3745 = vmatpush1.bf16.msra.mxu0 0
        %3746 = vmatprep.subr.bf16.mxu0 0
        %3747 = vmatpush1.bf16.msra.mxu0 0
        %3748 = vmatprep.subr.bf16.mxu0 0
        %3749 = vmatpush1.bf16.msra.mxu0 0
        %3750 = vmatprep.mubr.bf16.mxu0 0
        %3751 = vmatmul.mubr.bf16.gmra.mrb[0].mxu0 %v1409
        %v3752 = vpop.f32.mrb[0].mxu0
        %v3753 = vadd.f32 0.0, %v3752
        %v3754 = vpop.f32.mrb[0].mxu0
        %v3755 = vpop.f32.mrb[0].mxu0
        %v3756 = vpop.f32.mrb[0].mxu0
        %3757 = vdwg.mxu0
        %v3766 = vunpack.c.l.b16 %v2790
        %v3767 = vunpack.c.l.b16 %v2791
        %v3768 = vunpack.c.l.b16 %v2792
        %v3769 = vunpack.c.l.b16 %v2793
        %v3770 = vunpack.c.l.b16 %v2794
        %v3771 = vunpack.c.l.b16 %v2795
        %v3772 = vunpack.c.l.b16 %v2796
        %v3773 = vunpack.c.l.b16 %v2797
        %v3774 = vpack.c.b16 %v3767, %v3766
        %v3775 = vpack.c.b16 %v3769, %v3768
        %v3776 = vpack.c.b16 %v3771, %v3770
        %v3777 = vpack.c.b16 %v3773, %v3772
        %3782 = vmatprep.subr.bf16.mxu0 0
        %3783 = vmatpush1.bf16.msra.mxu0 %v3774
        %3784 = vmatprep.subr.bf16.mxu0 0
        %3785 = vmatpush1.bf16.msra.mxu0 %v3775
        %3786 = vmatprep.subr.bf16.mxu0 0
        %3787 = vmatpush1.bf16.msra.mxu0 %v3776
        %3788 = vmatprep.subr.bf16.mxu0 0
        %3789 = vmatpush1.bf16.msra.mxu0 %v3777
        %3790 = vmatprep.subr.bf16.mxu0 0
        %3791 = vmatpush1.bf16.msra.mxu0 0
        %3792 = vmatprep.subr.bf16.mxu0 0
        %3793 = vmatpush1.bf16.msra.mxu0 0
        %3794 = vmatprep.subr.bf16.mxu0 0
        %3795 = vmatpush1.bf16.msra.mxu0 0
        %3796 = vmatprep.subr.bf16.mxu0 0
        %3797 = vmatpush1.bf16.msra.mxu0 0
        %3798 = vmatprep.subr.bf16.mxu0 0
        %3799 = vmatpush1.bf16.msra.mxu0 0
        %3800 = vmatprep.subr.bf16.mxu0 0
        %3801 = vmatpush1.bf16.msra.mxu0 0
        %3802 = vmatprep.subr.bf16.mxu0 0
        %3803 = vmatpush1.bf16.msra.mxu0 0
        %3804 = vmatprep.subr.bf16.mxu0 0
        %3805 = vmatpush1.bf16.msra.mxu0 0
        %3806 = vmatprep.subr.bf16.mxu0 0
        %3807 = vmatpush1.bf16.msra.mxu0 0
        %3808 = vmatprep.subr.bf16.mxu0 0
        %3809 = vmatpush1.bf16.msra.mxu0 0
        %3810 = vmatprep.subr.bf16.mxu0 0
        %3811 = vmatpush1.bf16.msra.mxu0 0
        %3812 = vmatprep.subr.bf16.mxu0 0
        %3813 = vmatpush1.bf16.msra.mxu0 0
        %3814 = vmatprep.mubr.bf16.mxu0 0
        %3815 = vmatmul.mubr.bf16.gmra.mrb[0].mxu0 %v1476
        %v3816 = vpop.f32.mrb[0].mxu0
        %v3817 = vadd.f32 0.0, %v3816
        %v3818 = vpop.f32.mrb[0].mxu0
        %v3819 = vpop.f32.mrb[0].mxu0
        %v3820 = vpop.f32.mrb[0].mxu0
        %3821 = vdwg.mxu0
        %v3822 = vmul.f32 %v508, %v1705
        %v3823 = vmul.f32 %v575, %v1769
        %v3824 = vmul.f32 %v642, %v1833
        %v3825 = vmul.f32 %v709, %v1897
        %v3826 = vmul.f32 %v776, %v1961
        %v3827 = vmul.f32 %v843, %v2025
        %v3828 = vmul.f32 %v910, %v2089
        %v3829 = vmul.f32 %v977, %v2153
        %v3830 = vmul.f32 %v1044, %v2217
        %v3831 = vmul.f32 %v1111, %v2281
        %v3832 = vmul.f32 %v1178, %v2345
        %v3833 = vmul.f32 %v1245, %v2409
        %v3834 = vmul.f32 %v1312, %v2473
        %v3835 = vmul.f32 %v1379, %v2537
        %v3836 = vmul.f32 %v1446, %v2601
        %v3837 = vmul.f32 %v1513, %v2665
        %v3838 = vld [vmem:[#allocation10] sm:$0xff]
        %v3839 = vld [vmem:[#allocation10 + $0x8] sm:$0xff]
        %v3840 = vld [vmem:[#allocation10 + $0x10] sm:$0xff]
        %v3841 = vld [vmem:[#allocation10 + $0x18] sm:$0xff]
        %v3842 = vld [vmem:[#allocation10 + $0x20] sm:$0xff]
        %v3843 = vld [vmem:[#allocation10 + $0x28] sm:$0xff]
        %v3844 = vld [vmem:[#allocation10 + $0x30] sm:$0xff]
        %v3845 = vld [vmem:[#allocation10 + $0x38] sm:$0xff]
        %v3846 = vld [vmem:[#allocation10 + $0x40] sm:$0xff]
        %v3847 = vld [vmem:[#allocation10 + $0x48] sm:$0xff]
        %v3848 = vld [vmem:[#allocation10 + $0x50] sm:$0xff]
        %v3849 = vld [vmem:[#allocation10 + $0x58] sm:$0xff]
        %vm3850 = vcmask 785408
        %v3852 = vsel %vm3850, %v3822, 0
        %v3855 = vsel %vm3850, %v3823, 0
        %v3858 = vsel %vm3850, %v3824, 0
        %v3861 = vsel %vm3850, %v3825, 0
        %v3864 = vsel %vm3850, %v3826, 0
        %v3867 = vsel %vm3850, %v3827, 0
        %v3870 = vsel %vm3850, %v3828, 0
        %v3873 = vsel %vm3850, %v3829, 0
        %v3876 = vsel %vm3850, %v3830, 0
        %v3879 = vsel %vm3850, %v3831, 0
        %v3882 = vsel %vm3850, %v3832, 0
        %v3885 = vsel %vm3850, %v3833, 0
        %v3888 = vsel %vm3850, %v3834, 0
        %v3891 = vsel %vm3850, %v3835, 0
        %v3894 = vsel %vm3850, %v3836, 0
        %v3897 = vsel %vm3850, %v3837, 0
        %3899 = vmatprep.subr.mxu0 0.0
        %3900 = vmatpush1.msra.mxu0 %v3838
        %3901 = vmatprep.subr.mxu0 0.0
        %3902 = vmatpush1.msra.mxu0 %v3839
        %3903 = vmatprep.subr.mxu0 0.0
        %3904 = vmatpush1.msra.mxu0 %v3840
        %3905 = vmatprep.subr.mxu0 0.0
        %3906 = vmatpush1.msra.mxu0 %v3841
        %3907 = vmatprep.subr.mxu0 0.0
        %3908 = vmatpush1.msra.mxu0 %v3842
        %3909 = vmatprep.subr.mxu0 0.0
        %3910 = vmatpush1.msra.mxu0 %v3843
        %3911 = vmatprep.subr.mxu0 0.0
        %3912 = vmatpush1.msra.mxu0 %v3844
        %3913 = vmatprep.subr.mxu0 0.0
        %3914 = vmatpush1.msra.mxu0 %v3845
        %3915 = vmatprep.subr.mxu0 0.0
        %3916 = vmatpush1.msra.mxu0 %v3846
        %3917 = vmatprep.subr.mxu0 0.0
        %3918 = vmatpush1.msra.mxu0 %v3847
        %3919 = vmatprep.subr.mxu0 0.0
        %3920 = vmatpush1.msra.mxu0 %v3848
        %3921 = vmatprep.subr.mxu0 0.0
        %3922 = vmatpush1.msra.mxu0 %v3849
        %3923 = vmatprep.subr.mxu0 0.0
        %3924 = vmatpush1.msra.mxu0 0.0
        %3925 = vmatprep.subr.mxu0 0.0
        %3926 = vmatpush1.msra.mxu0 0.0
        %3927 = vmatprep.subr.mxu0 0.0
        %3928 = vmatpush1.msra.mxu0 0.0
        %3929 = vmatprep.subr.mxu0 0.0
        %3930 = vmatpush1.msra.mxu0 0.0
        %3931 = vmatprep.subr.mxu0 0.0
        %3932 = vmatpush1.msra.mxu0 0.0
        %3933 = vmatprep.subr.mxu0 0.0
        %3934 = vmatpush1.msra.mxu0 0.0
        %3935 = vmatprep.subr.mxu0 0.0
        %3936 = vmatpush1.msra.mxu0 0.0
        %3937 = vmatprep.subr.mxu0 0.0
        %3938 = vmatpush1.msra.mxu0 0.0
        %3939 = vmatprep.subr.mxu0 0.0
        %3940 = vmatpush1.msra.mxu0 0.0
        %3941 = vmatprep.subr.mxu0 0.0
        %3942 = vmatpush1.msra.mxu0 0.0
        %3943 = vmatprep.subr.mxu0 0.0
        %3944 = vmatpush1.msra.mxu0 0.0
        %3945 = vmatprep.subr.mxu0 0.0
        %3946 = vmatpush1.msra.mxu0 0.0
        %3947 = vmatprep.subr.mxu0 0.0
        %3948 = vmatpush1.msra.mxu0 0.0
        %3949 = vmatprep.subr.mxu0 0.0
        %3950 = vmatpush1.msra.mxu0 0.0
        %3951 = vmatprep.subr.mxu0 0.0
        %3952 = vmatpush1.msra.mxu0 0.0
        %3953 = vmatprep.subr.mxu0 0.0
        %3954 = vmatpush1.msra.mxu0 0.0
        %3955 = vmatprep.subr.mxu0 0.0
        %3956 = vmatpush1.msra.mxu0 0.0
        %3957 = vmatprep.subr.mxu0 0.0
        %3958 = vmatpush1.msra.mxu0 0.0
        %3959 = vmatprep.subr.mxu0 0.0
        %3960 = vmatpush1.msra.mxu0 0.0
        %3961 = vmatprep.subr.mxu0 0.0
        %3962 = vmatpush1.msra.mxu0 0.0
        %3963 = vmatprep.mubr.f32.mxu0 0.0
        %3964 = vmatmul.mubr.f32.gmra.mrb[0].mxu0 %v3852
        %v3965 = vpop.f32.mrb[0].mxu0
        %v3966 = vadd.f32 0.0, %v3965
        %v3967 = vpop.f32.mrb[0].mxu0
        %3968 = vmatprep.mubr.f32.mxu0 0.0
        %3969 = vmatmul.mubr.f32.gmra.mrb[0].mxu0 %v3855
        %v3970 = vpop.f32.mrb[0].mxu0
        %v3971 = vadd.f32 0.0, %v3970
        %v3972 = vpop.f32.mrb[0].mxu0
        %3973 = vmatprep.mubr.f32.mxu0 0.0
        %3974 = vmatmul.mubr.f32.gmra.mrb[0].mxu0 %v3858
        %v3975 = vpop.f32.mrb[0].mxu0
        %v3976 = vadd.f32 0.0, %v3975
        %v3977 = vpop.f32.mrb[0].mxu0
        %3978 = vmatprep.mubr.f32.mxu0 0.0
        %3979 = vmatmul.mubr.f32.gmra.mrb[0].mxu0 %v3861
        %v3980 = vpop.f32.mrb[0].mxu0
        %v3981 = vadd.f32 0.0, %v3980
        %v3982 = vpop.f32.mrb[0].mxu0
        %3983 = vmatprep.mubr.f32.mxu0 0.0
        %3984 = vmatmul.mubr.f32.gmra.mrb[0].mxu0 %v3864
        %v3985 = vpop.f32.mrb[0].mxu0
        %v3986 = vadd.f32 0.0, %v3985
        %v3987 = vpop.f32.mrb[0].mxu0
        %3988 = vmatprep.mubr.f32.mxu0 0.0
        %3989 = vmatmul.mubr.f32.gmra.mrb[0].mxu0 %v3867
        %v3990 = vpop.f32.mrb[0].mxu0
        %v3991 = vadd.f32 0.0, %v3990
        %v3992 = vpop.f32.mrb[0].mxu0
        %3993 = vmatprep.mubr.f32.mxu0 0.0
        %3994 = vmatmul.mubr.f32.gmra.mrb[0].mxu0 %v3870
        %v3995 = vpop.f32.mrb[0].mxu0
        %v3996 = vadd.f32 0.0, %v3995
        %v3997 = vpop.f32.mrb[0].mxu0
        %3998 = vmatprep.mubr.f32.mxu0 0.0
        %3999 = vmatmul.mubr.f32.gmra.mrb[0].mxu0 %v3873
        %v4000 = vpop.f32.mrb[0].mxu0
        %v4001 = vadd.f32 0.0, %v4000
        %v4002 = vpop.f32.mrb[0].mxu0
        %4003 = vmatprep.mubr.f32.mxu0 0.0
        %4004 = vmatmul.mubr.f32.gmra.mrb[0].mxu0 %v3876
        %v4005 = vpop.f32.mrb[0].mxu0
        %v4006 = vadd.f32 0.0, %v4005
        %v4007 = vpop.f32.mrb[0].mxu0
        %4008 = vmatprep.mubr.f32.mxu0 0.0
        %4009 = vmatmul.mubr.f32.gmra.mrb[0].mxu0 %v3879
        %v4010 = vpop.f32.mrb[0].mxu0
        %v4011 = vadd.f32 0.0, %v4010
        %v4012 = vpop.f32.mrb[0].mxu0
        %4013 = vmatprep.mubr.f32.mxu0 0.0
        %4014 = vmatmul.mubr.f32.gmra.mrb[0].mxu0 %v3882
        %v4015 = vpop.f32.mrb[0].mxu0
        %v4016 = vadd.f32 0.0, %v4015
        %v4017 = vpop.f32.mrb[0].mxu0
        %4018 = vmatprep.mubr.f32.mxu0 0.0
        %4019 = vmatmul.mubr.f32.gmra.mrb[0].mxu0 %v3885
        %v4020 = vpop.f32.mrb[0].mxu0
        %v4021 = vadd.f32 0.0, %v4020
        %v4022 = vpop.f32.mrb[0].mxu0
        %4023 = vmatprep.mubr.f32.mxu0 0.0
        %4024 = vmatmul.mubr.f32.gmra.mrb[0].mxu0 %v3888
        %v4025 = vpop.f32.mrb[0].mxu0
        %v4026 = vadd.f32 0.0, %v4025
        %v4027 = vpop.f32.mrb[0].mxu0
        %4028 = vmatprep.mubr.f32.mxu0 0.0
        %4029 = vmatmul.mubr.f32.gmra.mrb[0].mxu0 %v3891
        %v4030 = vpop.f32.mrb[0].mxu0
        %v4031 = vadd.f32 0.0, %v4030
        %v4032 = vpop.f32.mrb[0].mxu0
        %4033 = vmatprep.mubr.f32.mxu0 0.0
        %4034 = vmatmul.mubr.f32.gmra.mrb[0].mxu0 %v3894
        %v4035 = vpop.f32.mrb[0].mxu0
        %v4036 = vadd.f32 0.0, %v4035
        %v4037 = vpop.f32.mrb[0].mxu0
        %4038 = vmatprep.mubr.f32.mxu0 0.0
        %4039 = vmatmul.mubr.f32.gmra.mrb[0].mxu0 %v3897
        %v4040 = vpop.f32.mrb[0].mxu0
        %v4041 = vadd.f32 0.0, %v4040
        %v4042 = vpop.f32.mrb[0].mxu0
        %4043 = vdwg.mxu0
        %v4044 = vmul.f32 %v3966, %v3966
        %v4045 = vmul.f32 %v3971, %v3971
        %v4046 = vmul.f32 %v3976, %v3976
        %v4047 = vmul.f32 %v3981, %v3981
        %v4048 = vmul.f32 %v3986, %v3986
        %v4049 = vmul.f32 %v3991, %v3991
        %v4050 = vmul.f32 %v3996, %v3996
        %v4051 = vmul.f32 %v4001, %v4001
        %v4052 = vmul.f32 %v4006, %v4006
        %v4053 = vmul.f32 %v4011, %v4011
        %v4054 = vmul.f32 %v4016, %v4016
        %v4055 = vmul.f32 %v4021, %v4021
        %v4056 = vmul.f32 %v4026, %v4026
        %v4057 = vmul.f32 %v4031, %v4031
        %v4058 = vmul.f32 %v4036, %v4036
        %v4059 = vmul.f32 %v4041, %v4041
        %v4060 = vsel %vm3850, %v4044, 0.0
        %v4061 = vsel %vm3850, %v4045, 0.0
        %v4062 = vadd.f32 %v4060, %v4061
        %v4063 = vsel %vm3850, %v4046, 0.0
        %v4064 = vadd.f32 %v4062, %v4063
        %v4065 = vsel %vm3850, %v4047, 0.0
        %v4066 = vadd.f32 %v4064, %v4065
        %v4067 = vsel %vm3850, %v4048, 0.0
        %v4068 = vadd.f32 %v4066, %v4067
        %v4069 = vsel %vm3850, %v4049, 0.0
        %v4070 = vadd.f32 %v4068, %v4069
        %v4071 = vsel %vm3850, %v4050, 0.0
        %v4072 = vadd.f32 %v4070, %v4071
        %v4073 = vsel %vm3850, %v4051, 0.0
        %v4074 = vadd.f32 %v4072, %v4073
        %v4075 = vsel %vm3850, %v4052, 0.0
        %v4076 = vadd.f32 %v4074, %v4075
        %v4077 = vsel %vm3850, %v4053, 0.0
        %v4078 = vadd.f32 %v4076, %v4077
        %v4079 = vsel %vm3850, %v4054, 0.0
        %v4080 = vadd.f32 %v4078, %v4079
        %v4081 = vsel %vm3850, %v4055, 0.0
        %v4082 = vadd.f32 %v4080, %v4081
        %v4083 = vsel %vm3850, %v4056, 0.0
        %v4084 = vadd.f32 %v4082, %v4083
        %v4085 = vsel %vm3850, %v4057, 0.0
        %v4086 = vadd.f32 %v4084, %v4085
        %v4087 = vsel %vm3850, %v4058, 0.0
        %v4088 = vadd.f32 %v4086, %v4087
        %v4089 = vsel %vm3850, %v4059, 0.0
        %v4090 = vadd.f32 %v4088, %v4089
        %v4091 = vmul.f32 %v3966, %v2857
        %v4092 = vmul.f32 %v3971, %v2921
        %v4093 = vmul.f32 %v3976, %v2985
        %v4094 = vmul.f32 %v3981, %v3049
        %v4095 = vmul.f32 %v3986, %v3113
        %v4096 = vmul.f32 %v3991, %v3177
        %v4097 = vmul.f32 %v3996, %v3241
        %v4098 = vmul.f32 %v4001, %v3305
        %v4099 = vmul.f32 %v4006, %v3369
        %v4100 = vmul.f32 %v4011, %v3433
        %v4101 = vmul.f32 %v4016, %v3497
        %v4102 = vmul.f32 %v4021, %v3561
        %v4103 = vmul.f32 %v4026, %v3625
        %v4104 = vmul.f32 %v4031, %v3689
        %v4105 = vmul.f32 %v4036, %v3753
        %v4106 = vmul.f32 %v4041, %v3817
        %v4107 = vsel %vm3850, %v4091, 0.0
        %v4108 = vsel %vm3850, %v4092, 0.0
        %v4109 = vadd.f32 %v4107, %v4108
        %v4110 = vsel %vm3850, %v4093, 0.0
        %v4111 = vadd.f32 %v4109, %v4110
        %v4112 = vsel %vm3850, %v4094, 0.0
        %v4113 = vadd.f32 %v4111, %v4112
        %v4114 = vsel %vm3850, %v4095, 0.0
        %v4115 = vadd.f32 %v4113, %v4114
        %v4116 = vsel %vm3850, %v4096, 0.0
        %v4117 = vadd.f32 %v4115, %v4116
        %v4118 = vsel %vm3850, %v4097, 0.0
        %v4119 = vadd.f32 %v4117, %v4118
        %v4120 = vsel %vm3850, %v4098, 0.0
        %v4121 = vadd.f32 %v4119, %v4120
        %v4122 = vsel %vm3850, %v4099, 0.0
        %v4123 = vadd.f32 %v4121, %v4122
        %v4124 = vsel %vm3850, %v4100, 0.0
        %v4125 = vadd.f32 %v4123, %v4124
        %v4126 = vsel %vm3850, %v4101, 0.0
        %v4127 = vadd.f32 %v4125, %v4126
        %v4128 = vsel %vm3850, %v4102, 0.0
        %v4129 = vadd.f32 %v4127, %v4128
        %v4130 = vsel %vm3850, %v4103, 0.0
        %v4131 = vadd.f32 %v4129, %v4130
        %v4132 = vsel %vm3850, %v4104, 0.0
        %v4133 = vadd.f32 %v4131, %v4132
        %v4134 = vsel %vm3850, %v4105, 0.0
        %v4135 = vadd.f32 %v4133, %v4134
        %v4136 = vsel %vm3850, %v4106, 0.0
        %v4137 = vadd.f32 %v4135, %v4136
        %v4138 = vrsqrt.pop %v4090
        %v4139 = vmul.f32 %v4137, %v4138
        %4140 = vst.msk [vmem:[%s299] sm:$0xff] %vm3850, %v4139
        %s4141 = sand.u32 %s142, 1
        %s4142 = scalar_lea.sflag [#allocation4], %s4141
        %s4143 = sand.u32 %s142, 1
        %s4144 = smul.addr %s4143, 8
        %s4145 = scalar_lea.vmem [#allocation11], %s4144
        // Predicated region
        $region61: #{tpu_custom_call.1} parent=39 // pred_check
          %p4146 = pneg %p152
        $region62: #{tpu_custom_call.1} parent=39 // pred_check_branch
          %4148 = sbr.rel (%p4146) target = $region64
        $region63: #{tpu_custom_call.1} parent=39 // pred_region
          %s4150 = ssub.s32 128, 128
          %4151 = vsyncadd %s4142, %s4150
          %s4152 = smul.addr %s24, 128
          %s4153 = scalar_lea.hbm %s5, %s4152
          %s4155 = sshll.u32 %s4145, 4
          %s4156 = int_to_ptr.vmem [resolvable:$true] %s4155
          %4158 = dma.vmem_to_hbm [thread:$0]  %s4156, 128, %s4153, %s4142
        $region64: #{tpu_custom_call.1} parent=39 // pred_fallthru
          _
      $region40: #{tpu_custom_call.1} parent=5 // pred_fallthru
        _
      %p4159 = scmp.le.s32.totalorder 2, %s19
      // Predicated region
      $region65: #{tpu_custom_call.1} parent=5 // pred_check
        %p4160 = pneg %p4159
      $region66: #{tpu_custom_call.1} parent=5 // pred_check_branch
        %4162 = sbr.rel (%p4160) target = $region68
      $region67: #{tpu_custom_call.1} parent=5 // pred_region
        %s4163 = ssub.s32 %s19, 2
        // Predicated region
        $region69: #{tpu_custom_call.1} parent=67 // pred_check
          %p4164 = pneg %p158
        $region70: #{tpu_custom_call.1} parent=67 // pred_check_branch
          %4166 = sbr.rel (%p4164) target = $region72
        $region71: #{tpu_custom_call.1} parent=67 // pred_region
          %s4167 = sand.u32 %s143, 1
          %s4168 = scalar_lea.sflag [#allocation4], %s4167
          %s4169 = sand.u32 %s143, 1
          %s4170 = smul.addr %s4169, 8
          %s4171 = scalar_lea.vmem [#allocation11], %s4170
          %4172 = dma.done %s4168, 128
        $region72: #{tpu_custom_call.1} parent=67 // pred_fallthru
          _
      $region68: #{tpu_custom_call.1} parent=5 // pred_fallthru
        _
    $region6: #{tpu_custom_call.1} parent=1 // loop_footer
      %s23 = sadd.s32 1, %s19
    $region7: #{tpu_custom_call.1} parent=1 // loop_footer_branch
      %18 = sbr.rel target = $region3
    $region8: #{tpu_custom_call.1} parent=1 // loop_exit
      _
    %4173 = vsyncpa [#allocation3], 1
    %s4174 = scalar_lea.sflag [#allocation3], 1
    %4175 = vsyncpa %s4174, 1
    %4176 = vsyncpa [#allocation6], 1
    %4177 = vsyncpa [#allocation9], 1
    %4178 = vsyncpa [#allocation4], 1
    %s4179 = scalar_lea.sflag [#allocation4], 1
    %4180 = vsyncpa %s4179, 1

</llo_original>
